<compile_context>
chip_gen: v7x
topology: tpu7x:2x2x1
jax: 0.10.0
libtpu: 0.0.40
codegen_flags: <defaults>
</compile_context>

<pallas_src>
import functools

import jax
import jax.numpy as jnp
from jax import lax
from jax.experimental import pallas as pl
from jax.experimental.pallas import tpu as pltpu


# ----------------------------------------------------------------------------
# The single fused encoder kernel (gridless; everything VMEM/vreg resident)
# ----------------------------------------------------------------------------
def _encoder_fused_kernel(
        x_ref, cond_ref,
        w1_ref, t1_ref,
        w2_ref, t2_ref,
        w3_ref, b3_ref,
        wf_ref, tf_ref,
        wh_ref, bh_ref, lg_ref, lb_ref,
        wmv_ref, bmv_ref,
        o_ref, *, batch):
    """Whole encoder forward.

    Spatial sizes are fixed by the architecture:
      8x8 --conv1(3x3,s2,p1)--> 4x4 --conv2(3x3,s2,p1)--> 2x2 --conv3(2x2)--> 1x1
    x_ref holds the input with rows ordered spatial-major / batch-minor
    (row = (h*8 + w)*batch + b) and channels on lanes, so every tap read is a
    contiguous, sublane-aligned (batch, C_in) row block.
    """
    f32 = jnp.float32
    cdt = w2_ref.dtype          # matmul input dtype (bf16 in prod, f32 in test)
    B = batch
    c_in = x_ref.shape[-1]

    def leaky(v):
        return jnp.where(v >= 0.0, v, 0.2 * v)

    # ---- conv1: in-kernel im2col -> one (16*B, 9*C_in) @ (9*C_in, C1) ------
    zero_x = jnp.zeros((B, c_in), f32)
    tap_slabs = []
    for kh in range(3):
        for kw in range(3):
            blocks = []
            for oh in range(4):
                for ow in range(4):
                    r = 2 * oh + kh - 1
                    c = 2 * ow + kw - 1
                    if 0 <= r < 8 and 0 <= c < 8:
                        blocks.append(x_ref[(r * 8 + c) * B:(r * 8 + c + 1) * B, :])
                    else:
                        blocks.append(zero_x)
            tap_slabs.append(jnp.concatenate(blocks, axis=0))      # (16*B, C_in)
    patches1 = jnp.concatenate(tap_slabs, axis=-1)                 # (16*B, 9*C_in)

    # BN scale is folded into w1; only shift + ReLU remain.
    h1 = jnp.dot(patches1.astype(cdt), w1_ref[...], preferred_element_type=f32)
    h1 = jnp.maximum(h1 + t1_ref[...], 0.0)                        # (16*B, C1)

    # ---- conv2: single (4*B, 9*C1) @ (9*C1, C2) matmul ----------------------
    c1 = h1.shape[-1]
    zero_h1 = jnp.zeros((B, c1), f32)
    tap_slabs = []
    for kh in range(3):
        for kw in range(3):
            blocks = []
            for oh in range(2):
                for ow in range(2):
                    r = 2 * oh + kh - 1
                    c = 2 * ow + kw - 1
                    if 0 <= r < 4 and 0 <= c < 4:
                        blocks.append(h1[(r * 4 + c) * B:(r * 4 + c + 1) * B, :])
                    else:
                        blocks.append(zero_h1)
            tap_slabs.append(jnp.concatenate(blocks, axis=0))      # (4*B, C1)
    patches2 = jnp.concatenate(tap_slabs, axis=-1)                 # (4*B, 9*C1)

    h2 = jnp.dot(patches2.astype(cdt), w2_ref[...], preferred_element_type=f32)
    h2 = jnp.maximum(h2 + t2_ref[...], 0.0)                        # (4*B, C2)

    # ---- conv3: 2x2 valid on the 2x2 map -> one (B, 4*C2) @ (4*C2, C3) ------
    h2cat = jnp.concatenate([h2[q * B:(q + 1) * B, :] for q in range(4)],
                            axis=-1)                               # (B, 4*C2)
    h3 = jnp.dot(h2cat.astype(cdt), w3_ref[...], preferred_element_type=f32)
    h3 = h3 + b3_ref[...]                                          # (B, C3)

    # ---- FC_input on concat([h3, condition]) (BN scale folded) + LeakyReLU -
    # Dropout(p=0.3) is identity in eval mode.
    yin = jnp.concatenate([h3.astype(cdt), cond_ref[...].astype(cdt)], axis=-1)
    y = jnp.dot(yin, wf_ref[...], preferred_element_type=f32)
    y = leaky(y + tf_ref[...])                                     # (B, C3)

    # ---- FC_hidden + LayerNorm(eps=1e-5) + LeakyReLU(0.2) -------------------
    z = jnp.dot(y.astype(cdt), wh_ref[...], preferred_element_type=f32)
    z = z + bh_ref[...]
    mu = jnp.mean(z, axis=-1, keepdims=True)
    var = jnp.mean((z - mu) ** 2, axis=-1, keepdims=True)
    z = (z - mu) * lax.rsqrt(var + 1e-5)
    z = leaky(z * lg_ref[...] + lb_ref[...])                       # (B, hidden2)

    # ---- merged, lane-padded FC_mean || FC_var head -------------------------
    out = jnp.dot(z.astype(cdt), wmv_ref[...], preferred_element_type=f32)
    o_ref[...] = (out + bmv_ref[...]).astype(o_ref.dtype)          # (B, 128)


# ----------------------------------------------------------------------------
# Forward wrapper: one tiny layout copy + one pallas_call
# ----------------------------------------------------------------------------
@functools.partial(jax.jit, static_argnames=("latent_dim",))
def encoder_forward(prep, x_nchw, condition, *, latent_dim):
    """Returns (mean, logvar) of the CMLP encoder (eval-mode semantics)."""
    b, c_in, h, w = x_nchw.shape
    assert (h, w) == (8, 8), "architecture requires 8x8 spatial input"
    assert condition.shape[0] == b
    assert prep["wf"].shape[0] == prep["w3"].shape[1] + condition.shape[1]

    # Pad batch to a multiple of 8 (f32 sublane) so all row slices in the
    # kernel stay tile-aligned; the pad rows are sliced off at the end.
    b_pad = -(-b // 8) * 8
    if b_pad != b:
        x_nchw = jnp.pad(x_nchw, ((0, b_pad - b), (0, 0), (0, 0), (0, 0)))
        condition = jnp.pad(condition, ((0, b_pad - b), (0, 0)))

    # Single small copy fusion: spatial-major / batch-minor rows, channel lanes.
    x_sp = jnp.transpose(x_nchw, (2, 3, 0, 1)).reshape(h * w * b_pad, c_in)

    operands = (x_sp, condition,
                prep["w1"], prep["t1"], prep["w2"], prep["t2"],
                prep["w3"], prep["b3"], prep["wf"], prep["tf"],
                prep["wh"], prep["bh"], prep["lg"], prep["lb"],
                prep["wmv"], prep["bmv"])
    n_out = prep["wmv"].shape[1]          # lane-padded to a multiple of 128

    out = pl.pallas_call(
        functools.partial(_encoder_fused_kernel, batch=b_pad),
        out_shape=jax.ShapeDtypeStruct((b_pad, n_out), jnp.float32),
        in_specs=[pl.BlockSpec(memory_space=pltpu.MemorySpace.VMEM)
                  for _ in operands],
        out_specs=pl.BlockSpec(memory_space=pltpu.MemorySpace.VMEM),
        compiler_params=pltpu.CompilerParams(
            vmem_limit_bytes=16 * 1024 * 1024),
    )(*operands)

    return out[:b, :latent_dim], out[:b, latent_dim:2 * latent_dim]


# ----------------------------------------------------------------------------
# One-time parameter packing / BN folding (kept OFF the per-step path)
# ----------------------------------------------------------------------------
def fold_bias_bn(bias, gamma, beta, running_mean, running_var, eps=1e-5):
    scale = gamma / jnp.sqrt(running_var + eps)
    shift = (bias - running_mean) * scale + beta
    return scale, shift


def prepare_params(p, *, compute_dtype=jnp.bfloat16):
    """Pack weights for the fused kernel.  Matmul weights are stored in
    `compute_dtype` (bf16 in production); BN shifts / biases / LN stay f32."""
    row = lambda v: v.reshape(1, -1).astype(jnp.float32)
    wcast = lambda v: v.astype(compute_dtype)
    prep = {}

    # conv1: rows ordered (kh, kw, c_in); BN scale folded into the weights.
    s1, t1 = fold_bias_bn(p["c1_b"], p["bn2d1_g"], p["bn2d1_b"],
                          p["bn2d1_rm"], p["bn2d1_rv"])
    w1 = jnp.transpose(p["c1_w"], (2, 3, 1, 0)).reshape(-1, p["c1_w"].shape[0])
    prep["w1"], prep["t1"] = wcast(w1 * s1[None, :]), row(t1)

    # conv2: rows ordered (kh, kw, c_in); BN scale folded in.
    s2, t2 = fold_bias_bn(p["c2_b"], p["bn2d2_g"], p["bn2d2_b"],
                          p["bn2d2_rm"], p["bn2d2_rv"])
    w2 = jnp.transpose(p["c2_w"], (2, 3, 1, 0)).reshape(-1, p["c2_w"].shape[0])
    prep["w2"], prep["t2"] = wcast(w2 * s2[None, :]), row(t2)

    # conv3: rows ordered (kh, kw, c_in); bias only (no BN, no activation).
    w3 = jnp.transpose(p["c3_w"], (2, 3, 1, 0)).reshape(-1, p["c3_w"].shape[0])
    prep["w3"], prep["b3"] = wcast(w3), row(p["c3_b"])

    # FC_input on concat([conv features, condition]); BN1d scale folded in.
    sf, tf = fold_bias_bn(p["fc_in_b"], p["bn1_g"], p["bn1_b"],
                          p["bn1_rm"], p["bn1_rv"])
    wf = p["fc_in_w"].T                       # (hidden1 + cond_dim, hidden1)
    prep["wf"], prep["tf"] = wcast(wf * sf[None, :]), row(tf)

    # FC_hidden + LayerNorm params.
    prep["wh"], prep["bh"] = wcast(p["fc_hid_w"].T), row(p["fc_hid_b"])
    prep["lg"], prep["lb"] = row(p["ln_g"]), row(p["ln_b"])

    # FC_mean / FC_var merged into one head, lane-padded to a multiple of 128
    # so the final store is an unmasked full-lane vst.
    latent = p["fc_mean_w"].shape[0]
    hidden2 = p["fc_mean_w"].shape[1]
    n_head = 2 * latent
    n_pad = -(-n_head // 128) * 128
    wmv = jnp.zeros((hidden2, n_pad), jnp.float32)
    wmv = wmv.at[:, :latent].set(p["fc_mean_w"].T)
    wmv = wmv.at[:, latent:n_head].set(p["fc_var_w"].T)
    bmv = jnp.zeros((n_pad,), jnp.float32)
    bmv = bmv.at[:latent].set(p["fc_mean_b"])
    bmv = bmv.at[latent:n_head].set(p["fc_var_b"])
    prep["wmv"], prep["bmv"] = wcast(wmv), row(bmv)
    return prep


def init_params(key, input_channels, condition_dim,
                hidden_dim1=256, hidden_dim2=128, latent_dim=32):
    ks = jax.random.split(key, 20)
    n = lambda k, shape, s=0.02: s * jax.random.normal(k, shape, jnp.float32)
    return {
        "c1_w": n(ks[0], (hidden_dim2, input_channels, 3, 3)),
        "c1_b": n(ks[1], (hidden_dim2,)),
        "bn2d1_g": 1.0 + n(ks[2], (hidden_dim2,)),
        "bn2d1_b": n(ks[3], (hidden_dim2,)),
        "bn2d1_rm": jnp.zeros((hidden_dim2,), jnp.float32),
        "bn2d1_rv": jnp.ones((hidden_dim2,), jnp.float32),
        "c2_w": n(ks[4], (hidden_dim1, hidden_dim2, 3, 3)),
        "c2_b": n(ks[5], (hidden_dim1,)),
        "bn2d2_g": 1.0 + n(ks[6], (hidden_dim1,)),
        "bn2d2_b": n(ks[7], (hidden_dim1,)),
        "bn2d2_rm": jnp.zeros((hidden_dim1,), jnp.float32),
        "bn2d2_rv": jnp.ones((hidden_dim1,), jnp.float32),
        "c3_w": n(ks[8], (hidden_dim1, hidden_dim1, 2, 2)),
        "c3_b": n(ks[9], (hidden_dim1,)),
        "fc_in_w": n(ks[10], (hidden_dim1, hidden_dim1 + condition_dim)),
        "fc_in_b": n(ks[11], (hidden_dim1,)),
        "bn1_g": 1.0 + n(ks[12], (hidden_dim1,)),
        "bn1_b": n(ks[13], (hidden_dim1,)),
        "bn1_rm": jnp.zeros((hidden_dim1,), jnp.float32),
        "bn1_rv": jnp.ones((hidden_dim1,), jnp.float32),
        "fc_hid_w": n(ks[14], (hidden_dim2, hidden_dim1)),
        "fc_hid_b": n(ks[15], (hidden_dim2,)),
        "ln_g": jnp.ones((hidden_dim2,), jnp.float32),
        "ln_b": jnp.zeros((hidden_dim2,), jnp.float32),
        "fc_mean_w": n(ks[16], (latent_dim, hidden_dim2)),
        "fc_mean_b": n(ks[17], (latent_dim,)),
        "fc_var_w": n(ks[18], (latent_dim, hidden_dim2)),
        "fc_var_b": n(ks[19], (latent_dim,)),
    }


# ----------------------------------------------------------------------------
# CVAE_Model pieces that are plain (tiny) JAX
# ----------------------------------------------------------------------------
def reparameterize(key, mean, logvar):
    std = jnp.exp(0.5 * logvar)
    eps = jax.random.normal(key, std.shape, std.dtype)
    return mean + eps * std


def kl_divergence(x, mu, logvar):
    kld = -0.5 * jnp.sum(1.0 + logvar - mu ** 2 - jnp.exp(logvar))
    return kld / x.shape[0]


# ----------------------------------------------------------------------------
# Pure-XLA reference (same eval-mode semantics) for validation
# ----------------------------------------------------------------------------
def encoder_reference(p, x_nchw, condition, eps=1e-5):
    hi = lax.Precision.HIGHEST

    def conv(x, w, stride, pad):
        return lax.conv_general_dilated(
            x, w, window_strides=(stride, stride),
            padding=((pad, pad), (pad, pad)),
            dimension_numbers=("NCHW", "OIHW", "NCHW"), precision=hi)

    def bn2d(x, g, bta, rm, rv):
        inv = (g / jnp.sqrt(rv + eps))[None, :, None, None]
        return (x - rm[None, :, None, None]) * inv + bta[None, :, None, None]

    h = conv(x_nchw, p["c1_w"], 2, 1) + p["c1_b"][None, :, None, None]
    h = jnp.maximum(bn2d(h, p["bn2d1_g"], p["bn2d1_b"],
                         p["bn2d1_rm"], p["bn2d1_rv"]), 0.0)
    h = conv(h, p["c2_w"], 2, 1) + p["c2_b"][None, :, None, None]
    h = jnp.maximum(bn2d(h, p["bn2d2_g"], p["bn2d2_b"],
                         p["bn2d2_rm"], p["bn2d2_rv"]), 0.0)
    h = conv(h, p["c3_w"], 1, 0) + p["c3_b"][None, :, None, None]
    h = h.reshape(h.shape[0], -1)
    h = jnp.concatenate([h, condition], axis=1)

    y = jnp.dot(h, p["fc_in_w"].T, precision=hi) + p["fc_in_b"]
    y = (y - p["bn1_rm"]) * (p["bn1_g"] / jnp.sqrt(p["bn1_rv"] + eps)) + p["bn1_b"]
    y = jnp.where(y >= 0, y, 0.2 * y)

    z = jnp.dot(y, p["fc_hid_w"].T, precision=hi) + p["fc_hid_b"]
    mu = z.mean(-1, keepdims=True)
    var = ((z - mu) ** 2).mean(-1, keepdims=True)
    z = (z - mu) / jnp.sqrt(var + eps) * p["ln_g"] + p["ln_b"]
    z = jnp.where(z >= 0, z, 0.2 * z)

    mean = jnp.dot(z, p["fc_mean_w"].T, precision=hi) + p["fc_mean_b"]
    logvar = jnp.dot(z, p["fc_var_w"].T, precision=hi) + p["fc_var_b"]
    return mean, logvar


# ----------------------------------------------------------------------------
# Main
# ----------------------------------------------------------------------------
if __name__ == "__main__":
    key = jax.random.PRNGKey(0)
    B, C, H, W = 8, 4, 8, 8            # 8x8 -> 4x4 -> 2x2 -> 1x1 through convs
    COND_DIM = 16
    LATENT = 32

    kx, kc, kp, ke = jax.random.split(key, 4)
    x = jax.random.normal(kx, (B, C, H, W), jnp.float32)
    condition = jax.random.normal(kc, (B, COND_DIM), jnp.float32)

    params = init_params(kp, C, COND_DIM, latent_dim=LATENT)
    mean_ref, logvar_ref = encoder_reference(params, x, condition)

    def rel_err(a, b):
        return float(jnp.linalg.norm(a - b) / (jnp.linalg.norm(b) + 1e-12))

    # (1) f32-weight path: tight check that catches tap/channel-ordering bugs
    #     in the in-kernel im2col / weight packing.
    prep32 = jax.block_until_ready(
        prepare_params(params, compute_dtype=jnp.float32))
    m32, lv32 = encoder_forward(prep32, x, condition, latent_dim=LATENT)
    jax.block_until_ready((m32, lv32))
    assert rel_err(m32, mean_ref) < 1e-2, rel_err(m32, mean_ref)
    assert rel_err(lv32, logvar_ref) < 1e-2, rel_err(lv32, logvar_ref)

    # (2) production bf16-weight path.
    prep = jax.block_until_ready(prepare_params(params))
    mean, logvar = encoder_forward(prep, x, condition, latent_dim=LATENT)
    z = reparameterize(ke, mean, logvar)
    kld = kl_divergence(x, mean, logvar)
    jax.block_until_ready((mean, logvar, z, kld))

    assert mean.shape == (B, LATENT), mean.shape
    assert logvar.shape == (B, LATENT), logvar.shape
    assert z.shape == (B, LATENT), z.shape
    assert bool(jnp.all(jnp.isfinite(mean))) and bool(jnp.all(jnp.isfinite(logvar)))
    assert bool(jnp.isfinite(kld))
    assert rel_err(mean, mean_ref) < 5e-2, rel_err(mean, mean_ref)
    assert rel_err(logvar, logvar_ref) < 5e-2, rel_err(logvar, logvar_ref)

    print("KERNEL_OK")
</pallas_src>

<mosaic_0001>
module attributes {stable_mosaic.version = 11 : i64} {
  func.func @_encoder_fused_kernel(%arg0: memref<512x4xf32, #tpu.memory_space<vmem>>, %arg1: memref<8x16xf32, #tpu.memory_space<vmem>>, %arg2: memref<36x128xf32, #tpu.memory_space<vmem>>, %arg3: memref<1x128xf32, #tpu.memory_space<vmem>>, %arg4: memref<1152x256xf32, #tpu.memory_space<vmem>>, %arg5: memref<1x256xf32, #tpu.memory_space<vmem>>, %arg6: memref<1024x256xf32, #tpu.memory_space<vmem>>, %arg7: memref<1x256xf32, #tpu.memory_space<vmem>>, %arg8: memref<272x256xf32, #tpu.memory_space<vmem>>, %arg9: memref<1x256xf32, #tpu.memory_space<vmem>>, %arg10: memref<256x128xf32, #tpu.memory_space<vmem>>, %arg11: memref<1x128xf32, #tpu.memory_space<vmem>>, %arg12: memref<1x128xf32, #tpu.memory_space<vmem>>, %arg13: memref<1x128xf32, #tpu.memory_space<vmem>>, %arg14: memref<128x128xf32, #tpu.memory_space<vmem>>, %arg15: memref<1x128xf32, #tpu.memory_space<vmem>>, %arg16: memref<8x128xf32, #tpu.memory_space<vmem>>) attributes {dimension_semantics = [], scalar_prefetch = 0 : i64, scratch_operands = 0 : i64, tpu.core_type = #tpu.core_type<tc>} {
    %cst = arith.constant 0.000000e+00 : f32
    %0 = vector.broadcast %cst : f32 to vector<8x4xf32>
    %c72 = arith.constant 72 : index
    %c0 = arith.constant 0 : index
    %1 = vector.load %arg0[%c72, %c0] : memref<512x4xf32, #tpu.memory_space<vmem>>, vector<8x4xf32>
    %c88 = arith.constant 88 : index
    %c0_0 = arith.constant 0 : index
    %2 = vector.load %arg0[%c88, %c0_0] : memref<512x4xf32, #tpu.memory_space<vmem>>, vector<8x4xf32>
    %c104 = arith.constant 104 : index
    %c0_1 = arith.constant 0 : index
    %3 = vector.load %arg0[%c104, %c0_1] : memref<512x4xf32, #tpu.memory_space<vmem>>, vector<8x4xf32>
    %c200 = arith.constant 200 : index
    %c0_2 = arith.constant 0 : index
    %4 = vector.load %arg0[%c200, %c0_2] : memref<512x4xf32, #tpu.memory_space<vmem>>, vector<8x4xf32>
    %c216 = arith.constant 216 : index
    %c0_3 = arith.constant 0 : index
    %5 = vector.load %arg0[%c216, %c0_3] : memref<512x4xf32, #tpu.memory_space<vmem>>, vector<8x4xf32>
    %c232 = arith.constant 232 : index
    %c0_4 = arith.constant 0 : index
    %6 = vector.load %arg0[%c232, %c0_4] : memref<512x4xf32, #tpu.memory_space<vmem>>, vector<8x4xf32>
    %c328 = arith.constant 328 : index
    %c0_5 = arith.constant 0 : index
    %7 = vector.load %arg0[%c328, %c0_5] : memref<512x4xf32, #tpu.memory_space<vmem>>, vector<8x4xf32>
    %c344 = arith.constant 344 : index
    %c0_6 = arith.constant 0 : index
    %8 = vector.load %arg0[%c344, %c0_6] : memref<512x4xf32, #tpu.memory_space<vmem>>, vector<8x4xf32>
    %c360 = arith.constant 360 : index
    %c0_7 = arith.constant 0 : index
    %9 = vector.load %arg0[%c360, %c0_7] : memref<512x4xf32, #tpu.memory_space<vmem>>, vector<8x4xf32>
    %10 = tpu.concatenate %0, %0, %0, %0, %0, %1, %2, %3, %0, %4, %5, %6, %0, %7, %8, %9 in 0 : vector<8x4xf32>, vector<8x4xf32>, vector<8x4xf32>, vector<8x4xf32>, vector<8x4xf32>, vector<8x4xf32>, vector<8x4xf32>, vector<8x4xf32>, vector<8x4xf32>, vector<8x4xf32>, vector<8x4xf32>, vector<8x4xf32>, vector<8x4xf32>, vector<8x4xf32>, vector<8x4xf32>, vector<8x4xf32> -> vector<128x4xf32>
    %c64 = arith.constant 64 : index
    %c0_8 = arith.constant 0 : index
    %11 = vector.load %arg0[%c64, %c0_8] : memref<512x4xf32, #tpu.memory_space<vmem>>, vector<8x4xf32>
    %c80 = arith.constant 80 : index
    %c0_9 = arith.constant 0 : index
    %12 = vector.load %arg0[%c80, %c0_9] : memref<512x4xf32, #tpu.memory_space<vmem>>, vector<8x4xf32>
    %c96 = arith.constant 96 : index
    %c0_10 = arith.constant 0 : index
    %13 = vector.load %arg0[%c96, %c0_10] : memref<512x4xf32, #tpu.memory_space<vmem>>, vector<8x4xf32>
    %c112 = arith.constant 112 : index
    %c0_11 = arith.constant 0 : index
    %14 = vector.load %arg0[%c112, %c0_11] : memref<512x4xf32, #tpu.memory_space<vmem>>, vector<8x4xf32>
    %c192 = arith.constant 192 : index
    %c0_12 = arith.constant 0 : index
    %15 = vector.load %arg0[%c192, %c0_12] : memref<512x4xf32, #tpu.memory_space<vmem>>, vector<8x4xf32>
    %c208 = arith.constant 208 : index
    %c0_13 = arith.constant 0 : index
    %16 = vector.load %arg0[%c208, %c0_13] : memref<512x4xf32, #tpu.memory_space<vmem>>, vector<8x4xf32>
    %c224 = arith.constant 224 : index
    %c0_14 = arith.constant 0 : index
    %17 = vector.load %arg0[%c224, %c0_14] : memref<512x4xf32, #tpu.memory_space<vmem>>, vector<8x4xf32>
    %c240 = arith.constant 240 : index
    %c0_15 = arith.constant 0 : index
    %18 = vector.load %arg0[%c240, %c0_15] : memref<512x4xf32, #tpu.memory_space<vmem>>, vector<8x4xf32>
    %c320 = arith.constant 320 : index
    %c0_16 = arith.constant 0 : index
    %19 = vector.load %arg0[%c320, %c0_16] : memref<512x4xf32, #tpu.memory_space<vmem>>, vector<8x4xf32>
    %c336 = arith.constant 336 : index
    %c0_17 = arith.constant 0 : index
    %20 = vector.load %arg0[%c336, %c0_17] : memref<512x4xf32, #tpu.memory_space<vmem>>, vector<8x4xf32>
    %c352 = arith.constant 352 : index
    %c0_18 = arith.constant 0 : index
    %21 = vector.load %arg0[%c352, %c0_18] : memref<512x4xf32, #tpu.memory_space<vmem>>, vector<8x4xf32>
    %c368 = arith.constant 368 : index
    %c0_19 = arith.constant 0 : index
    %22 = vector.load %arg0[%c368, %c0_19] : memref<512x4xf32, #tpu.memory_space<vmem>>, vector<8x4xf32>
    %23 = tpu.concatenate %0, %0, %0, %0, %11, %12, %13, %14, %15, %16, %17, %18, %19, %20, %21, %22 in 0 : vector<8x4xf32>, vector<8x4xf32>, vector<8x4xf32>, vector<8x4xf32>, vector<8x4xf32>, vector<8x4xf32>, vector<8x4xf32>, vector<8x4xf32>, vector<8x4xf32>, vector<8x4xf32>, vector<8x4xf32>, vector<8x4xf32>, vector<8x4xf32>, vector<8x4xf32>, vector<8x4xf32>, vector<8x4xf32> -> vector<128x4xf32>
    %c72_20 = arith.constant 72 : index
    %c0_21 = arith.constant 0 : index
    %24 = vector.load %arg0[%c72_20, %c0_21] : memref<512x4xf32, #tpu.memory_space<vmem>>, vector<8x4xf32>
    %c88_22 = arith.constant 88 : index
    %c0_23 = arith.constant 0 : index
    %25 = vector.load %arg0[%c88_22, %c0_23] : memref<512x4xf32, #tpu.memory_space<vmem>>, vector<8x4xf32>
    %c104_24 = arith.constant 104 : index
    %c0_25 = arith.constant 0 : index
    %26 = vector.load %arg0[%c104_24, %c0_25] : memref<512x4xf32, #tpu.memory_space<vmem>>, vector<8x4xf32>
    %c120 = arith.constant 120 : index
    %c0_26 = arith.constant 0 : index
    %27 = vector.load %arg0[%c120, %c0_26] : memref<512x4xf32, #tpu.memory_space<vmem>>, vector<8x4xf32>
    %c200_27 = arith.constant 200 : index
    %c0_28 = arith.constant 0 : index
    %28 = vector.load %arg0[%c200_27, %c0_28] : memref<512x4xf32, #tpu.memory_space<vmem>>, vector<8x4xf32>
    %c216_29 = arith.constant 216 : index
    %c0_30 = arith.constant 0 : index
    %29 = vector.load %arg0[%c216_29, %c0_30] : memref<512x4xf32, #tpu.memory_space<vmem>>, vector<8x4xf32>
    %c232_31 = arith.constant 232 : index
    %c0_32 = arith.constant 0 : index
    %30 = vector.load %arg0[%c232_31, %c0_32] : memref<512x4xf32, #tpu.memory_space<vmem>>, vector<8x4xf32>
    %c248 = arith.constant 248 : index
    %c0_33 = arith.constant 0 : index
    %31 = vector.load %arg0[%c248, %c0_33] : memref<512x4xf32, #tpu.memory_space<vmem>>, vector<8x4xf32>
    %c328_34 = arith.constant 328 : index
    %c0_35 = arith.constant 0 : index
    %32 = vector.load %arg0[%c328_34, %c0_35] : memref<512x4xf32, #tpu.memory_space<vmem>>, vector<8x4xf32>
    %c344_36 = arith.constant 344 : index
    %c0_37 = arith.constant 0 : index
    %33 = vector.load %arg0[%c344_36, %c0_37] : memref<512x4xf32, #tpu.memory_space<vmem>>, vector<8x4xf32>
    %c360_38 = arith.constant 360 : index
    %c0_39 = arith.constant 0 : index
    %34 = vector.load %arg0[%c360_38, %c0_39] : memref<512x4xf32, #tpu.memory_space<vmem>>, vector<8x4xf32>
    %c376 = arith.constant 376 : index
    %c0_40 = arith.constant 0 : index
    %35 = vector.load %arg0[%c376, %c0_40] : memref<512x4xf32, #tpu.memory_space<vmem>>, vector<8x4xf32>
    %36 = tpu.concatenate %0, %0, %0, %0, %24, %25, %26, %27, %28, %29, %30, %31, %32, %33, %34, %35 in 0 : vector<8x4xf32>, vector<8x4xf32>, vector<8x4xf32>, vector<8x4xf32>, vector<8x4xf32>, vector<8x4xf32>, vector<8x4xf32>, vector<8x4xf32>, vector<8x4xf32>, vector<8x4xf32>, vector<8x4xf32>, vector<8x4xf32>, vector<8x4xf32>, vector<8x4xf32>, vector<8x4xf32>, vector<8x4xf32> -> vector<128x4xf32>
    %c8 = arith.constant 8 : index
    %c0_41 = arith.constant 0 : index
    %37 = vector.load %arg0[%c8, %c0_41] : memref<512x4xf32, #tpu.memory_space<vmem>>, vector<8x4xf32>
    %c24 = arith.constant 24 : index
    %c0_42 = arith.constant 0 : index
    %38 = vector.load %arg0[%c24, %c0_42] : memref<512x4xf32, #tpu.memory_space<vmem>>, vector<8x4xf32>
    %c40 = arith.constant 40 : index
    %c0_43 = arith.constant 0 : index
    %39 = vector.load %arg0[%c40, %c0_43] : memref<512x4xf32, #tpu.memory_space<vmem>>, vector<8x4xf32>
    %c136 = arith.constant 136 : index
    %c0_44 = arith.constant 0 : index
    %40 = vector.load %arg0[%c136, %c0_44] : memref<512x4xf32, #tpu.memory_space<vmem>>, vector<8x4xf32>
    %c152 = arith.constant 152 : index
    %c0_45 = arith.constant 0 : index
    %41 = vector.load %arg0[%c152, %c0_45] : memref<512x4xf32, #tpu.memory_space<vmem>>, vector<8x4xf32>
    %c168 = arith.constant 168 : index
    %c0_46 = arith.constant 0 : index
    %42 = vector.load %arg0[%c168, %c0_46] : memref<512x4xf32, #tpu.memory_space<vmem>>, vector<8x4xf32>
    %c264 = arith.constant 264 : index
    %c0_47 = arith.constant 0 : index
    %43 = vector.load %arg0[%c264, %c0_47] : memref<512x4xf32, #tpu.memory_space<vmem>>, vector<8x4xf32>
    %c280 = arith.constant 280 : index
    %c0_48 = arith.constant 0 : index
    %44 = vector.load %arg0[%c280, %c0_48] : memref<512x4xf32, #tpu.memory_space<vmem>>, vector<8x4xf32>
    %c296 = arith.constant 296 : index
    %c0_49 = arith.constant 0 : index
    %45 = vector.load %arg0[%c296, %c0_49] : memref<512x4xf32, #tpu.memory_space<vmem>>, vector<8x4xf32>
    %c392 = arith.constant 392 : index
    %c0_50 = arith.constant 0 : index
    %46 = vector.load %arg0[%c392, %c0_50] : memref<512x4xf32, #tpu.memory_space<vmem>>, vector<8x4xf32>
    %c408 = arith.constant 408 : index
    %c0_51 = arith.constant 0 : index
    %47 = vector.load %arg0[%c408, %c0_51] : memref<512x4xf32, #tpu.memory_space<vmem>>, vector<8x4xf32>
    %c424 = arith.constant 424 : index
    %c0_52 = arith.constant 0 : index
    %48 = vector.load %arg0[%c424, %c0_52] : memref<512x4xf32, #tpu.memory_space<vmem>>, vector<8x4xf32>
    %49 = tpu.concatenate %0, %37, %38, %39, %0, %40, %41, %42, %0, %43, %44, %45, %0, %46, %47, %48 in 0 : vector<8x4xf32>, vector<8x4xf32>, vector<8x4xf32>, vector<8x4xf32>, vector<8x4xf32>, vector<8x4xf32>, vector<8x4xf32>, vector<8x4xf32>, vector<8x4xf32>, vector<8x4xf32>, vector<8x4xf32>, vector<8x4xf32>, vector<8x4xf32>, vector<8x4xf32>, vector<8x4xf32>, vector<8x4xf32> -> vector<128x4xf32>
    %c0_53 = arith.constant 0 : index
    %c0_54 = arith.constant 0 : index
    %50 = vector.load %arg0[%c0_53, %c0_54] : memref<512x4xf32, #tpu.memory_space<vmem>>, vector<8x4xf32>
    %c16 = arith.constant 16 : index
    %c0_55 = arith.constant 0 : index
    %51 = vector.load %arg0[%c16, %c0_55] : memref<512x4xf32, #tpu.memory_space<vmem>>, vector<8x4xf32>
    %c32 = arith.constant 32 : index
    %c0_56 = arith.constant 0 : index
    %52 = vector.load %arg0[%c32, %c0_56] : memref<512x4xf32, #tpu.memory_space<vmem>>, vector<8x4xf32>
    %c48 = arith.constant 48 : index
    %c0_57 = arith.constant 0 : index
    %53 = vector.load %arg0[%c48, %c0_57] : memref<512x4xf32, #tpu.memory_space<vmem>>, vector<8x4xf32>
    %c128 = arith.constant 128 : index
    %c0_58 = arith.constant 0 : index
    %54 = vector.load %arg0[%c128, %c0_58] : memref<512x4xf32, #tpu.memory_space<vmem>>, vector<8x4xf32>
    %c144 = arith.constant 144 : index
    %c0_59 = arith.constant 0 : index
    %55 = vector.load %arg0[%c144, %c0_59] : memref<512x4xf32, #tpu.memory_space<vmem>>, vector<8x4xf32>
    %c160 = arith.constant 160 : index
    %c0_60 = arith.constant 0 : index
    %56 = vector.load %arg0[%c160, %c0_60] : memref<512x4xf32, #tpu.memory_space<vmem>>, vector<8x4xf32>
    %c176 = arith.constant 176 : index
    %c0_61 = arith.constant 0 : index
    %57 = vector.load %arg0[%c176, %c0_61] : memref<512x4xf32, #tpu.memory_space<vmem>>, vector<8x4xf32>
    %c256 = arith.constant 256 : index
    %c0_62 = arith.constant 0 : index
    %58 = vector.load %arg0[%c256, %c0_62] : memref<512x4xf32, #tpu.memory_space<vmem>>, vector<8x4xf32>
    %c272 = arith.constant 272 : index
    %c0_63 = arith.constant 0 : index
    %59 = vector.load %arg0[%c272, %c0_63] : memref<512x4xf32, #tpu.memory_space<vmem>>, vector<8x4xf32>
    %c288 = arith.constant 288 : index
    %c0_64 = arith.constant 0 : index
    %60 = vector.load %arg0[%c288, %c0_64] : memref<512x4xf32, #tpu.memory_space<vmem>>, vector<8x4xf32>
    %c304 = arith.constant 304 : index
    %c0_65 = arith.constant 0 : index
    %61 = vector.load %arg0[%c304, %c0_65] : memref<512x4xf32, #tpu.memory_space<vmem>>, vector<8x4xf32>
    %c384 = arith.constant 384 : index
    %c0_66 = arith.constant 0 : index
    %62 = vector.load %arg0[%c384, %c0_66] : memref<512x4xf32, #tpu.memory_space<vmem>>, vector<8x4xf32>
    %c400 = arith.constant 400 : index
    %c0_67 = arith.constant 0 : index
    %63 = vector.load %arg0[%c400, %c0_67] : memref<512x4xf32, #tpu.memory_space<vmem>>, vector<8x4xf32>
    %c416 = arith.constant 416 : index
    %c0_68 = arith.constant 0 : index
    %64 = vector.load %arg0[%c416, %c0_68] : memref<512x4xf32, #tpu.memory_space<vmem>>, vector<8x4xf32>
    %c432 = arith.constant 432 : index
    %c0_69 = arith.constant 0 : index
    %65 = vector.load %arg0[%c432, %c0_69] : memref<512x4xf32, #tpu.memory_space<vmem>>, vector<8x4xf32>
    %66 = tpu.concatenate %50, %51, %52, %53, %54, %55, %56, %57, %58, %59, %60, %61, %62, %63, %64, %65 in 0 : vector<8x4xf32>, vector<8x4xf32>, vector<8x4xf32>, vector<8x4xf32>, vector<8x4xf32>, vector<8x4xf32>, vector<8x4xf32>, vector<8x4xf32>, vector<8x4xf32>, vector<8x4xf32>, vector<8x4xf32>, vector<8x4xf32>, vector<8x4xf32>, vector<8x4xf32>, vector<8x4xf32>, vector<8x4xf32> -> vector<128x4xf32>
    %c8_70 = arith.constant 8 : index
    %c0_71 = arith.constant 0 : index
    %67 = vector.load %arg0[%c8_70, %c0_71] : memref<512x4xf32, #tpu.memory_space<vmem>>, vector<8x4xf32>
    %c24_72 = arith.constant 24 : index
    %c0_73 = arith.constant 0 : index
    %68 = vector.load %arg0[%c24_72, %c0_73] : memref<512x4xf32, #tpu.memory_space<vmem>>, vector<8x4xf32>
    %c40_74 = arith.constant 40 : index
    %c0_75 = arith.constant 0 : index
    %69 = vector.load %arg0[%c40_74, %c0_75] : memref<512x4xf32, #tpu.memory_space<vmem>>, vector<8x4xf32>
    %c56 = arith.constant 56 : index
    %c0_76 = arith.constant 0 : index
    %70 = vector.load %arg0[%c56, %c0_76] : memref<512x4xf32, #tpu.memory_space<vmem>>, vector<8x4xf32>
    %c136_77 = arith.constant 136 : index
    %c0_78 = arith.constant 0 : index
    %71 = vector.load %arg0[%c136_77, %c0_78] : memref<512x4xf32, #tpu.memory_space<vmem>>, vector<8x4xf32>
    %c152_79 = arith.constant 152 : index
    %c0_80 = arith.constant 0 : index
    %72 = vector.load %arg0[%c152_79, %c0_80] : memref<512x4xf32, #tpu.memory_space<vmem>>, vector<8x4xf32>
    %c168_81 = arith.constant 168 : index
    %c0_82 = arith.constant 0 : index
    %73 = vector.load %arg0[%c168_81, %c0_82] : memref<512x4xf32, #tpu.memory_space<vmem>>, vector<8x4xf32>
    %c184 = arith.constant 184 : index
    %c0_83 = arith.constant 0 : index
    %74 = vector.load %arg0[%c184, %c0_83] : memref<512x4xf32, #tpu.memory_space<vmem>>, vector<8x4xf32>
    %c264_84 = arith.constant 264 : index
    %c0_85 = arith.constant 0 : index
    %75 = vector.load %arg0[%c264_84, %c0_85] : memref<512x4xf32, #tpu.memory_space<vmem>>, vector<8x4xf32>
    %c280_86 = arith.constant 280 : index
    %c0_87 = arith.constant 0 : index
    %76 = vector.load %arg0[%c280_86, %c0_87] : memref<512x4xf32, #tpu.memory_space<vmem>>, vector<8x4xf32>
    %c296_88 = arith.constant 296 : index
    %c0_89 = arith.constant 0 : index
    %77 = vector.load %arg0[%c296_88, %c0_89] : memref<512x4xf32, #tpu.memory_space<vmem>>, vector<8x4xf32>
    %c312 = arith.constant 312 : index
    %c0_90 = arith.constant 0 : index
    %78 = vector.load %arg0[%c312, %c0_90] : memref<512x4xf32, #tpu.memory_space<vmem>>, vector<8x4xf32>
    %c392_91 = arith.constant 392 : index
    %c0_92 = arith.constant 0 : index
    %79 = vector.load %arg0[%c392_91, %c0_92] : memref<512x4xf32, #tpu.memory_space<vmem>>, vector<8x4xf32>
    %c408_93 = arith.constant 408 : index
    %c0_94 = arith.constant 0 : index
    %80 = vector.load %arg0[%c408_93, %c0_94] : memref<512x4xf32, #tpu.memory_space<vmem>>, vector<8x4xf32>
    %c424_95 = arith.constant 424 : index
    %c0_96 = arith.constant 0 : index
    %81 = vector.load %arg0[%c424_95, %c0_96] : memref<512x4xf32, #tpu.memory_space<vmem>>, vector<8x4xf32>
    %c440 = arith.constant 440 : index
    %c0_97 = arith.constant 0 : index
    %82 = vector.load %arg0[%c440, %c0_97] : memref<512x4xf32, #tpu.memory_space<vmem>>, vector<8x4xf32>
    %83 = tpu.concatenate %67, %68, %69, %70, %71, %72, %73, %74, %75, %76, %77, %78, %79, %80, %81, %82 in 0 : vector<8x4xf32>, vector<8x4xf32>, vector<8x4xf32>, vector<8x4xf32>, vector<8x4xf32>, vector<8x4xf32>, vector<8x4xf32>, vector<8x4xf32>, vector<8x4xf32>, vector<8x4xf32>, vector<8x4xf32>, vector<8x4xf32>, vector<8x4xf32>, vector<8x4xf32>, vector<8x4xf32>, vector<8x4xf32> -> vector<128x4xf32>
    %c72_98 = arith.constant 72 : index
    %c0_99 = arith.constant 0 : index
    %84 = vector.load %arg0[%c72_98, %c0_99] : memref<512x4xf32, #tpu.memory_space<vmem>>, vector<8x4xf32>
    %c88_100 = arith.constant 88 : index
    %c0_101 = arith.constant 0 : index
    %85 = vector.load %arg0[%c88_100, %c0_101] : memref<512x4xf32, #tpu.memory_space<vmem>>, vector<8x4xf32>
    %c104_102 = arith.constant 104 : index
    %c0_103 = arith.constant 0 : index
    %86 = vector.load %arg0[%c104_102, %c0_103] : memref<512x4xf32, #tpu.memory_space<vmem>>, vector<8x4xf32>
    %c200_104 = arith.constant 200 : index
    %c0_105 = arith.constant 0 : index
    %87 = vector.load %arg0[%c200_104, %c0_105] : memref<512x4xf32, #tpu.memory_space<vmem>>, vector<8x4xf32>
    %c216_106 = arith.constant 216 : index
    %c0_107 = arith.constant 0 : index
    %88 = vector.load %arg0[%c216_106, %c0_107] : memref<512x4xf32, #tpu.memory_space<vmem>>, vector<8x4xf32>
    %c232_108 = arith.constant 232 : index
    %c0_109 = arith.constant 0 : index
    %89 = vector.load %arg0[%c232_108, %c0_109] : memref<512x4xf32, #tpu.memory_space<vmem>>, vector<8x4xf32>
    %c328_110 = arith.constant 328 : index
    %c0_111 = arith.constant 0 : index
    %90 = vector.load %arg0[%c328_110, %c0_111] : memref<512x4xf32, #tpu.memory_space<vmem>>, vector<8x4xf32>
    %c344_112 = arith.constant 344 : index
    %c0_113 = arith.constant 0 : index
    %91 = vector.load %arg0[%c344_112, %c0_113] : memref<512x4xf32, #tpu.memory_space<vmem>>, vector<8x4xf32>
    %c360_114 = arith.constant 360 : index
    %c0_115 = arith.constant 0 : index
    %92 = vector.load %arg0[%c360_114, %c0_115] : memref<512x4xf32, #tpu.memory_space<vmem>>, vector<8x4xf32>
    %c456 = arith.constant 456 : index
    %c0_116 = arith.constant 0 : index
    %93 = vector.load %arg0[%c456, %c0_116] : memref<512x4xf32, #tpu.memory_space<vmem>>, vector<8x4xf32>
    %c472 = arith.constant 472 : index
    %c0_117 = arith.constant 0 : index
    %94 = vector.load %arg0[%c472, %c0_117] : memref<512x4xf32, #tpu.memory_space<vmem>>, vector<8x4xf32>
    %c488 = arith.constant 488 : index
    %c0_118 = arith.constant 0 : index
    %95 = vector.load %arg0[%c488, %c0_118] : memref<512x4xf32, #tpu.memory_space<vmem>>, vector<8x4xf32>
    %96 = tpu.concatenate %0, %84, %85, %86, %0, %87, %88, %89, %0, %90, %91, %92, %0, %93, %94, %95 in 0 : vector<8x4xf32>, vector<8x4xf32>, vector<8x4xf32>, vector<8x4xf32>, vector<8x4xf32>, vector<8x4xf32>, vector<8x4xf32>, vector<8x4xf32>, vector<8x4xf32>, vector<8x4xf32>, vector<8x4xf32>, vector<8x4xf32>, vector<8x4xf32>, vector<8x4xf32>, vector<8x4xf32>, vector<8x4xf32> -> vector<128x4xf32>
    %c64_119 = arith.constant 64 : index
    %c0_120 = arith.constant 0 : index
    %97 = vector.load %arg0[%c64_119, %c0_120] : memref<512x4xf32, #tpu.memory_space<vmem>>, vector<8x4xf32>
    %c80_121 = arith.constant 80 : index
    %c0_122 = arith.constant 0 : index
    %98 = vector.load %arg0[%c80_121, %c0_122] : memref<512x4xf32, #tpu.memory_space<vmem>>, vector<8x4xf32>
    %c96_123 = arith.constant 96 : index
    %c0_124 = arith.constant 0 : index
    %99 = vector.load %arg0[%c96_123, %c0_124] : memref<512x4xf32, #tpu.memory_space<vmem>>, vector<8x4xf32>
    %c112_125 = arith.constant 112 : index
    %c0_126 = arith.constant 0 : index
    %100 = vector.load %arg0[%c112_125, %c0_126] : memref<512x4xf32, #tpu.memory_space<vmem>>, vector<8x4xf32>
    %c192_127 = arith.constant 192 : index
    %c0_128 = arith.constant 0 : index
    %101 = vector.load %arg0[%c192_127, %c0_128] : memref<512x4xf32, #tpu.memory_space<vmem>>, vector<8x4xf32>
    %c208_129 = arith.constant 208 : index
    %c0_130 = arith.constant 0 : index
    %102 = vector.load %arg0[%c208_129, %c0_130] : memref<512x4xf32, #tpu.memory_space<vmem>>, vector<8x4xf32>
    %c224_131 = arith.constant 224 : index
    %c0_132 = arith.constant 0 : index
    %103 = vector.load %arg0[%c224_131, %c0_132] : memref<512x4xf32, #tpu.memory_space<vmem>>, vector<8x4xf32>
    %c240_133 = arith.constant 240 : index
    %c0_134 = arith.constant 0 : index
    %104 = vector.load %arg0[%c240_133, %c0_134] : memref<512x4xf32, #tpu.memory_space<vmem>>, vector<8x4xf32>
    %c320_135 = arith.constant 320 : index
    %c0_136 = arith.constant 0 : index
    %105 = vector.load %arg0[%c320_135, %c0_136] : memref<512x4xf32, #tpu.memory_space<vmem>>, vector<8x4xf32>
    %c336_137 = arith.constant 336 : index
    %c0_138 = arith.constant 0 : index
    %106 = vector.load %arg0[%c336_137, %c0_138] : memref<512x4xf32, #tpu.memory_space<vmem>>, vector<8x4xf32>
    %c352_139 = arith.constant 352 : index
    %c0_140 = arith.constant 0 : index
    %107 = vector.load %arg0[%c352_139, %c0_140] : memref<512x4xf32, #tpu.memory_space<vmem>>, vector<8x4xf32>
    %c368_141 = arith.constant 368 : index
    %c0_142 = arith.constant 0 : index
    %108 = vector.load %arg0[%c368_141, %c0_142] : memref<512x4xf32, #tpu.memory_space<vmem>>, vector<8x4xf32>
    %c448 = arith.constant 448 : index
    %c0_143 = arith.constant 0 : index
    %109 = vector.load %arg0[%c448, %c0_143] : memref<512x4xf32, #tpu.memory_space<vmem>>, vector<8x4xf32>
    %c464 = arith.constant 464 : index
    %c0_144 = arith.constant 0 : index
    %110 = vector.load %arg0[%c464, %c0_144] : memref<512x4xf32, #tpu.memory_space<vmem>>, vector<8x4xf32>
    %c480 = arith.constant 480 : index
    %c0_145 = arith.constant 0 : index
    %111 = vector.load %arg0[%c480, %c0_145] : memref<512x4xf32, #tpu.memory_space<vmem>>, vector<8x4xf32>
    %c496 = arith.constant 496 : index
    %c0_146 = arith.constant 0 : index
    %112 = vector.load %arg0[%c496, %c0_146] : memref<512x4xf32, #tpu.memory_space<vmem>>, vector<8x4xf32>
    %113 = tpu.concatenate %97, %98, %99, %100, %101, %102, %103, %104, %105, %106, %107, %108, %109, %110, %111, %112 in 0 : vector<8x4xf32>, vector<8x4xf32>, vector<8x4xf32>, vector<8x4xf32>, vector<8x4xf32>, vector<8x4xf32>, vector<8x4xf32>, vector<8x4xf32>, vector<8x4xf32>, vector<8x4xf32>, vector<8x4xf32>, vector<8x4xf32>, vector<8x4xf32>, vector<8x4xf32>, vector<8x4xf32>, vector<8x4xf32> -> vector<128x4xf32>
    %c72_147 = arith.constant 72 : index
    %c0_148 = arith.constant 0 : index
    %114 = vector.load %arg0[%c72_147, %c0_148] : memref<512x4xf32, #tpu.memory_space<vmem>>, vector<8x4xf32>
    %c88_149 = arith.constant 88 : index
    %c0_150 = arith.constant 0 : index
    %115 = vector.load %arg0[%c88_149, %c0_150] : memref<512x4xf32, #tpu.memory_space<vmem>>, vector<8x4xf32>
    %c104_151 = arith.constant 104 : index
    %c0_152 = arith.constant 0 : index
    %116 = vector.load %arg0[%c104_151, %c0_152] : memref<512x4xf32, #tpu.memory_space<vmem>>, vector<8x4xf32>
    %c120_153 = arith.constant 120 : index
    %c0_154 = arith.constant 0 : index
    %117 = vector.load %arg0[%c120_153, %c0_154] : memref<512x4xf32, #tpu.memory_space<vmem>>, vector<8x4xf32>
    %c200_155 = arith.constant 200 : index
    %c0_156 = arith.constant 0 : index
    %118 = vector.load %arg0[%c200_155, %c0_156] : memref<512x4xf32, #tpu.memory_space<vmem>>, vector<8x4xf32>
    %c216_157 = arith.constant 216 : index
    %c0_158 = arith.constant 0 : index
    %119 = vector.load %arg0[%c216_157, %c0_158] : memref<512x4xf32, #tpu.memory_space<vmem>>, vector<8x4xf32>
    %c232_159 = arith.constant 232 : index
    %c0_160 = arith.constant 0 : index
    %120 = vector.load %arg0[%c232_159, %c0_160] : memref<512x4xf32, #tpu.memory_space<vmem>>, vector<8x4xf32>
    %c248_161 = arith.constant 248 : index
    %c0_162 = arith.constant 0 : index
    %121 = vector.load %arg0[%c248_161, %c0_162] : memref<512x4xf32, #tpu.memory_space<vmem>>, vector<8x4xf32>
    %c328_163 = arith.constant 328 : index
    %c0_164 = arith.constant 0 : index
    %122 = vector.load %arg0[%c328_163, %c0_164] : memref<512x4xf32, #tpu.memory_space<vmem>>, vector<8x4xf32>
    %c344_165 = arith.constant 344 : index
    %c0_166 = arith.constant 0 : index
    %123 = vector.load %arg0[%c344_165, %c0_166] : memref<512x4xf32, #tpu.memory_space<vmem>>, vector<8x4xf32>
    %c360_167 = arith.constant 360 : index
    %c0_168 = arith.constant 0 : index
    %124 = vector.load %arg0[%c360_167, %c0_168] : memref<512x4xf32, #tpu.memory_space<vmem>>, vector<8x4xf32>
    %c376_169 = arith.constant 376 : index
    %c0_170 = arith.constant 0 : index
    %125 = vector.load %arg0[%c376_169, %c0_170] : memref<512x4xf32, #tpu.memory_space<vmem>>, vector<8x4xf32>
    %c456_171 = arith.constant 456 : index
    %c0_172 = arith.constant 0 : index
    %126 = vector.load %arg0[%c456_171, %c0_172] : memref<512x4xf32, #tpu.memory_space<vmem>>, vector<8x4xf32>
    %c472_173 = arith.constant 472 : index
    %c0_174 = arith.constant 0 : index
    %127 = vector.load %arg0[%c472_173, %c0_174] : memref<512x4xf32, #tpu.memory_space<vmem>>, vector<8x4xf32>
    %c488_175 = arith.constant 488 : index
    %c0_176 = arith.constant 0 : index
    %128 = vector.load %arg0[%c488_175, %c0_176] : memref<512x4xf32, #tpu.memory_space<vmem>>, vector<8x4xf32>
    %c504 = arith.constant 504 : index
    %c0_177 = arith.constant 0 : index
    %129 = vector.load %arg0[%c504, %c0_177] : memref<512x4xf32, #tpu.memory_space<vmem>>, vector<8x4xf32>
    %130 = tpu.concatenate %114, %115, %116, %117, %118, %119, %120, %121, %122, %123, %124, %125, %126, %127, %128, %129 in 0 : vector<8x4xf32>, vector<8x4xf32>, vector<8x4xf32>, vector<8x4xf32>, vector<8x4xf32>, vector<8x4xf32>, vector<8x4xf32>, vector<8x4xf32>, vector<8x4xf32>, vector<8x4xf32>, vector<8x4xf32>, vector<8x4xf32>, vector<8x4xf32>, vector<8x4xf32>, vector<8x4xf32>, vector<8x4xf32> -> vector<128x4xf32>
    %131 = tpu.concatenate %10, %23, %36, %49, %66, %83, %96, %113, %130 in 1 : vector<128x4xf32>, vector<128x4xf32>, vector<128x4xf32>, vector<128x4xf32>, vector<128x4xf32>, vector<128x4xf32>, vector<128x4xf32>, vector<128x4xf32>, vector<128x4xf32> -> vector<128x36xf32>
    %c0_178 = arith.constant 0 : index
    %c0_179 = arith.constant 0 : index
    %132 = vector.load %arg2[%c0_178, %c0_179] : memref<36x128xf32, #tpu.memory_space<vmem>>, vector<36x128xf32>
    %cst_180 = arith.constant dense<0.000000e+00> : vector<128x128xf32>
    %133 = tpu.matmul %131, %132, %cst_180 {dimension_numbers = #tpu.dot_dimension_numbers<[1], [0], [0], [1], [0, 0, 1, 1], [], []>} : vector<128x36xf32>, vector<36x128xf32>, vector<128x128xf32> -> vector<128x128xf32>
    %c0_181 = arith.constant 0 : index
    %c0_182 = arith.constant 0 : index
    %134 = vector.load %arg3[%c0_181, %c0_182] : memref<1x128xf32, #tpu.memory_space<vmem>>, vector<1x128xf32>
    %135 = vector.broadcast %134 : vector<1x128xf32> to vector<128x128xf32>
    %136 = arith.addf %133, %135 : vector<128x128xf32>
    %cst_183 = arith.constant 0.000000e+00 : f32
    %137 = vector.broadcast %cst_183 : f32 to vector<128x128xf32>
    %138 = arith.maximumf %136, %137 : vector<128x128xf32>
    %cst_184 = arith.constant 0.000000e+00 : f32
    %139 = vector.broadcast %cst_184 : f32 to vector<8x128xf32>
    %140 = vector.extract_strided_slice %138 {offsets = [40, 0], sizes = [8, 128], strides = [1, 1]} : vector<128x128xf32> to vector<8x128xf32>
    %141 = tpu.concatenate %139, %139, %139, %140 in 0 : vector<8x128xf32>, vector<8x128xf32>, vector<8x128xf32>, vector<8x128xf32> -> vector<32x128xf32>
    %142 = vector.extract_strided_slice %138 {offsets = [32, 0], sizes = [8, 128], strides = [1, 1]} : vector<128x128xf32> to vector<8x128xf32>
    %143 = vector.extract_strided_slice %138 {offsets = [48, 0], sizes = [8, 128], strides = [1, 1]} : vector<128x128xf32> to vector<8x128xf32>
    %144 = tpu.concatenate %139, %139, %142, %143 in 0 : vector<8x128xf32>, vector<8x128xf32>, vector<8x128xf32>, vector<8x128xf32> -> vector<32x128xf32>
    %145 = vector.extract_strided_slice %138 {offsets = [40, 0], sizes = [8, 128], strides = [1, 1]} : vector<128x128xf32> to vector<8x128xf32>
    %146 = vector.extract_strided_slice %138 {offsets = [56, 0], sizes = [8, 128], strides = [1, 1]} : vector<128x128xf32> to vector<8x128xf32>
    %147 = tpu.concatenate %139, %139, %145, %146 in 0 : vector<8x128xf32>, vector<8x128xf32>, vector<8x128xf32>, vector<8x128xf32> -> vector<32x128xf32>
    %148 = vector.extract_strided_slice %138 {offsets = [8, 0], sizes = [8, 128], strides = [1, 1]} : vector<128x128xf32> to vector<8x128xf32>
    %149 = vector.extract_strided_slice %138 {offsets = [72, 0], sizes = [8, 128], strides = [1, 1]} : vector<128x128xf32> to vector<8x128xf32>
    %150 = tpu.concatenate %139, %148, %139, %149 in 0 : vector<8x128xf32>, vector<8x128xf32>, vector<8x128xf32>, vector<8x128xf32> -> vector<32x128xf32>
    %151 = vector.extract_strided_slice %138 {offsets = [0, 0], sizes = [8, 128], strides = [1, 1]} : vector<128x128xf32> to vector<8x128xf32>
    %152 = vector.extract_strided_slice %138 {offsets = [16, 0], sizes = [8, 128], strides = [1, 1]} : vector<128x128xf32> to vector<8x128xf32>
    %153 = vector.extract_strided_slice %138 {offsets = [64, 0], sizes = [8, 128], strides = [1, 1]} : vector<128x128xf32> to vector<8x128xf32>
    %154 = vector.extract_strided_slice %138 {offsets = [80, 0], sizes = [8, 128], strides = [1, 1]} : vector<128x128xf32> to vector<8x128xf32>
    %155 = tpu.concatenate %151, %152, %153, %154 in 0 : vector<8x128xf32>, vector<8x128xf32>, vector<8x128xf32>, vector<8x128xf32> -> vector<32x128xf32>
    %156 = vector.extract_strided_slice %138 {offsets = [8, 0], sizes = [8, 128], strides = [1, 1]} : vector<128x128xf32> to vector<8x128xf32>
    %157 = vector.extract_strided_slice %138 {offsets = [24, 0], sizes = [8, 128], strides = [1, 1]} : vector<128x128xf32> to vector<8x128xf32>
    %158 = vector.extract_strided_slice %138 {offsets = [72, 0], sizes = [8, 128], strides = [1, 1]} : vector<128x128xf32> to vector<8x128xf32>
    %159 = vector.extract_strided_slice %138 {offsets = [88, 0], sizes = [8, 128], strides = [1, 1]} : vector<128x128xf32> to vector<8x128xf32>
    %160 = tpu.concatenate %156, %157, %158, %159 in 0 : vector<8x128xf32>, vector<8x128xf32>, vector<8x128xf32>, vector<8x128xf32> -> vector<32x128xf32>
    %161 = vector.extract_strided_slice %138 {offsets = [40, 0], sizes = [8, 128], strides = [1, 1]} : vector<128x128xf32> to vector<8x128xf32>
    %162 = vector.extract_strided_slice %138 {offsets = [104, 0], sizes = [8, 128], strides = [1, 1]} : vector<128x128xf32> to vector<8x128xf32>
    %163 = tpu.concatenate %139, %161, %139, %162 in 0 : vector<8x128xf32>, vector<8x128xf32>, vector<8x128xf32>, vector<8x128xf32> -> vector<32x128xf32>
    %164 = vector.extract_strided_slice %138 {offsets = [32, 0], sizes = [8, 128], strides = [1, 1]} : vector<128x128xf32> to vector<8x128xf32>
    %165 = vector.extract_strided_slice %138 {offsets = [48, 0], sizes = [8, 128], strides = [1, 1]} : vector<128x128xf32> to vector<8x128xf32>
    %166 = vector.extract_strided_slice %138 {offsets = [96, 0], sizes = [8, 128], strides = [1, 1]} : vector<128x128xf32> to vector<8x128xf32>
    %167 = vector.extract_strided_slice %138 {offsets = [112, 0], sizes = [8, 128], strides = [1, 1]} : vector<128x128xf32> to vector<8x128xf32>
    %168 = tpu.concatenate %164, %165, %166, %167 in 0 : vector<8x128xf32>, vector<8x128xf32>, vector<8x128xf32>, vector<8x128xf32> -> vector<32x128xf32>
    %169 = vector.extract_strided_slice %138 {offsets = [40, 0], sizes = [8, 128], strides = [1, 1]} : vector<128x128xf32> to vector<8x128xf32>
    %170 = vector.extract_strided_slice %138 {offsets = [56, 0], sizes = [8, 128], strides = [1, 1]} : vector<128x128xf32> to vector<8x128xf32>
    %171 = vector.extract_strided_slice %138 {offsets = [104, 0], sizes = [8, 128], strides = [1, 1]} : vector<128x128xf32> to vector<8x128xf32>
    %172 = vector.extract_strided_slice %138 {offsets = [120, 0], sizes = [8, 128], strides = [1, 1]} : vector<128x128xf32> to vector<8x128xf32>
    %173 = tpu.concatenate %169, %170, %171, %172 in 0 : vector<8x128xf32>, vector<8x128xf32>, vector<8x128xf32>, vector<8x128xf32> -> vector<32x128xf32>
    %174 = tpu.concatenate %141, %144, %147, %150, %155, %160, %163, %168, %173 in 1 : vector<32x128xf32>, vector<32x128xf32>, vector<32x128xf32>, vector<32x128xf32>, vector<32x128xf32>, vector<32x128xf32>, vector<32x128xf32>, vector<32x128xf32>, vector<32x128xf32> -> vector<32x1152xf32>
    %c0_185 = arith.constant 0 : index
    %c0_186 = arith.constant 0 : index
    %175 = vector.load %arg4[%c0_185, %c0_186] : memref<1152x256xf32, #tpu.memory_space<vmem>>, vector<1152x256xf32>
    %cst_187 = arith.constant dense<0.000000e+00> : vector<32x256xf32>
    %176 = tpu.matmul %174, %175, %cst_187 {dimension_numbers = #tpu.dot_dimension_numbers<[1], [0], [0], [1], [0, 0, 1, 1], [], []>} : vector<32x1152xf32>, vector<1152x256xf32>, vector<32x256xf32> -> vector<32x256xf32>
    %c0_188 = arith.constant 0 : index
    %c0_189 = arith.constant 0 : index
    %177 = vector.load %arg5[%c0_188, %c0_189] : memref<1x256xf32, #tpu.memory_space<vmem>>, vector<1x256xf32>
    %178 = vector.broadcast %177 : vector<1x256xf32> to vector<32x256xf32>
    %179 = arith.addf %176, %178 : vector<32x256xf32>
    %cst_190 = arith.constant 0.000000e+00 : f32
    %180 = vector.broadcast %cst_190 : f32 to vector<32x256xf32>
    %181 = arith.maximumf %179, %180 : vector<32x256xf32>
    %182 = vector.extract_strided_slice %181 {offsets = [0, 0], sizes = [8, 256], strides = [1, 1]} : vector<32x256xf32> to vector<8x256xf32>
    %183 = vector.extract_strided_slice %181 {offsets = [8, 0], sizes = [8, 256], strides = [1, 1]} : vector<32x256xf32> to vector<8x256xf32>
    %184 = vector.extract_strided_slice %181 {offsets = [16, 0], sizes = [8, 256], strides = [1, 1]} : vector<32x256xf32> to vector<8x256xf32>
    %185 = vector.extract_strided_slice %181 {offsets = [24, 0], sizes = [8, 256], strides = [1, 1]} : vector<32x256xf32> to vector<8x256xf32>
    %186 = tpu.concatenate %182, %183, %184, %185 in 1 : vector<8x256xf32>, vector<8x256xf32>, vector<8x256xf32>, vector<8x256xf32> -> vector<8x1024xf32>
    %c0_191 = arith.constant 0 : index
    %c0_192 = arith.constant 0 : index
    %187 = vector.load %arg6[%c0_191, %c0_192] : memref<1024x256xf32, #tpu.memory_space<vmem>>, vector<1024x256xf32>
    %cst_193 = arith.constant dense<0.000000e+00> : vector<8x256xf32>
    %188 = tpu.matmul %186, %187, %cst_193 {dimension_numbers = #tpu.dot_dimension_numbers<[1], [0], [0], [1], [0, 0, 1, 1], [], []>} : vector<8x1024xf32>, vector<1024x256xf32>, vector<8x256xf32> -> vector<8x256xf32>
    %c0_194 = arith.constant 0 : index
    %c0_195 = arith.constant 0 : index
    %189 = vector.load %arg7[%c0_194, %c0_195] : memref<1x256xf32, #tpu.memory_space<vmem>>, vector<1x256xf32>
    %190 = vector.broadcast %189 : vector<1x256xf32> to vector<8x256xf32>
    %191 = arith.addf %188, %190 : vector<8x256xf32>
    %c0_196 = arith.constant 0 : index
    %c0_197 = arith.constant 0 : index
    %192 = vector.load %arg1[%c0_196, %c0_197] : memref<8x16xf32, #tpu.memory_space<vmem>>, vector<8x16xf32>
    %193 = tpu.concatenate %191, %192 in 1 : vector<8x256xf32>, vector<8x16xf32> -> vector<8x272xf32>
    %c0_198 = arith.constant 0 : index
    %c0_199 = arith.constant 0 : index
    %194 = vector.load %arg8[%c0_198, %c0_199] : memref<272x256xf32, #tpu.memory_space<vmem>>, vector<272x256xf32>
    %cst_200 = arith.constant dense<0.000000e+00> : vector<8x256xf32>
    %195 = tpu.matmul %193, %194, %cst_200 {dimension_numbers = #tpu.dot_dimension_numbers<[1], [0], [0], [1], [0, 0, 1, 1], [], []>} : vector<8x272xf32>, vector<272x256xf32>, vector<8x256xf32> -> vector<8x256xf32>
    %c0_201 = arith.constant 0 : index
    %c0_202 = arith.constant 0 : index
    %196 = vector.load %arg9[%c0_201, %c0_202] : memref<1x256xf32, #tpu.memory_space<vmem>>, vector<1x256xf32>
    %197 = vector.broadcast %196 : vector<1x256xf32> to vector<8x256xf32>
    %198 = arith.addf %195, %197 : vector<8x256xf32>
    %cst_203 = arith.constant 0.000000e+00 : f32
    %199 = vector.broadcast %cst_203 : f32 to vector<8x256xf32>
    %200 = arith.cmpf oge, %198, %199 : vector<8x256xf32>
    %cst_204 = arith.constant 2.000000e-01 : f32
    %201 = vector.broadcast %cst_204 : f32 to vector<8x256xf32>
    %202 = arith.mulf %201, %198 : vector<8x256xf32>
    %203 = arith.select %200, %198, %202 : vector<8x256xi1>, vector<8x256xf32>
    %c0_205 = arith.constant 0 : index
    %c0_206 = arith.constant 0 : index
    %204 = vector.load %arg10[%c0_205, %c0_206] : memref<256x128xf32, #tpu.memory_space<vmem>>, vector<256x128xf32>
    %cst_207 = arith.constant dense<0.000000e+00> : vector<8x128xf32>
    %205 = tpu.matmul %203, %204, %cst_207 {dimension_numbers = #tpu.dot_dimension_numbers<[1], [0], [0], [1], [0, 0, 1, 1], [], []>} : vector<8x256xf32>, vector<256x128xf32>, vector<8x128xf32> -> vector<8x128xf32>
    %c0_208 = arith.constant 0 : index
    %c0_209 = arith.constant 0 : index
    %206 = vector.load %arg11[%c0_208, %c0_209] : memref<1x128xf32, #tpu.memory_space<vmem>>, vector<1x128xf32>
    %207 = vector.broadcast %206 : vector<1x128xf32> to vector<8x128xf32>
    %208 = arith.addf %205, %207 : vector<8x128xf32>
    %cst_210 = arith.constant dense<0.000000e+00> : vector<8xf32>
    %209 = vector.multi_reduction <add>, %208, %cst_210 [1] : vector<8x128xf32> to vector<8xf32>
    %210 = vector.shape_cast %209 : vector<8xf32> to vector<8x1xf32>
    %cst_211 = arith.constant 1.280000e+02 : f32
    %211 = vector.broadcast %cst_211 : f32 to vector<8x1xf32>
    %212 = arith.divf %210, %211 : vector<8x1xf32>
    %213 = vector.broadcast %212 : vector<8x1xf32> to vector<8x128xf32>
    %214 = arith.subf %208, %213 : vector<8x128xf32>
    %215 = arith.mulf %214, %214 : vector<8x128xf32>
    %cst_212 = arith.constant dense<0.000000e+00> : vector<8xf32>
    %216 = vector.multi_reduction <add>, %215, %cst_212 [1] : vector<8x128xf32> to vector<8xf32>
    %217 = vector.shape_cast %216 : vector<8xf32> to vector<8x1xf32>
    %cst_213 = arith.constant 1.280000e+02 : f32
    %218 = vector.broadcast %cst_213 : f32 to vector<8x1xf32>
    %219 = arith.divf %217, %218 : vector<8x1xf32>
    %220 = vector.broadcast %212 : vector<8x1xf32> to vector<8x128xf32>
    %221 = arith.subf %208, %220 : vector<8x128xf32>
    %cst_214 = arith.constant 9.99999974E-6 : f32
    %222 = vector.broadcast %cst_214 : f32 to vector<8x1xf32>
    %223 = arith.addf %219, %222 : vector<8x1xf32>
    %224 = math.rsqrt %223 : vector<8x1xf32>
    %225 = vector.broadcast %224 : vector<8x1xf32> to vector<8x128xf32>
    %226 = arith.mulf %221, %225 : vector<8x128xf32>
    %c0_215 = arith.constant 0 : index
    %c0_216 = arith.constant 0 : index
    %227 = vector.load %arg12[%c0_215, %c0_216] : memref<1x128xf32, #tpu.memory_space<vmem>>, vector<1x128xf32>
    %228 = vector.broadcast %227 : vector<1x128xf32> to vector<8x128xf32>
    %229 = arith.mulf %226, %228 : vector<8x128xf32>
    %c0_217 = arith.constant 0 : index
    %c0_218 = arith.constant 0 : index
    %230 = vector.load %arg13[%c0_217, %c0_218] : memref<1x128xf32, #tpu.memory_space<vmem>>, vector<1x128xf32>
    %231 = vector.broadcast %230 : vector<1x128xf32> to vector<8x128xf32>
    %232 = arith.addf %229, %231 : vector<8x128xf32>
    %cst_219 = arith.constant 0.000000e+00 : f32
    %233 = vector.broadcast %cst_219 : f32 to vector<8x128xf32>
    %234 = arith.cmpf oge, %232, %233 : vector<8x128xf32>
    %cst_220 = arith.constant 2.000000e-01 : f32
    %235 = vector.broadcast %cst_220 : f32 to vector<8x128xf32>
    %236 = arith.mulf %235, %232 : vector<8x128xf32>
    %237 = arith.select %234, %232, %236 : vector<8x128xi1>, vector<8x128xf32>
    %c0_221 = arith.constant 0 : index
    %c0_222 = arith.constant 0 : index
    %238 = vector.load %arg14[%c0_221, %c0_222] : memref<128x128xf32, #tpu.memory_space<vmem>>, vector<128x128xf32>
    %cst_223 = arith.constant dense<0.000000e+00> : vector<8x128xf32>
    %239 = tpu.matmul %237, %238, %cst_223 {dimension_numbers = #tpu.dot_dimension_numbers<[1], [0], [0], [1], [0, 0, 1, 1], [], []>} : vector<8x128xf32>, vector<128x128xf32>, vector<8x128xf32> -> vector<8x128xf32>
    %c0_224 = arith.constant 0 : index
    %c0_225 = arith.constant 0 : index
    %240 = vector.load %arg15[%c0_224, %c0_225] : memref<1x128xf32, #tpu.memory_space<vmem>>, vector<1x128xf32>
    %241 = vector.broadcast %240 : vector<1x128xf32> to vector<8x128xf32>
    %242 = arith.addf %239, %241 : vector<8x128xf32>
    %c0_226 = arith.constant 0 : index
    %c0_227 = arith.constant 0 : index
    %243 = vector.load %arg16[%c0_226, %c0_227] : memref<8x128xf32, #tpu.memory_space<vmem>>, vector<8x128xf32>
    tpu.vector_store %arg16[%c0_226, %c0_227], %242 {strides = array<i32>} : memref<8x128xf32, #tpu.memory_space<vmem>>, vector<8x128xf32>,
    return
  }
}

</mosaic_0001>

<llo_original>
// kernel: encoder_forward.1
$region0: #{encoder_forward.1}
  #allocation0 [shape = 'u32[]', space=smem, size = 0x4, offset = 0x4, fixed_abs, tag = 'smem constant byte address 0x4 - core index']
  #allocation1 [shape = 'u32[144,128]{1,0:T(1,128)}', space=vmem, size = 0x12000, scoped, tag = 'internal scratch']
  %s0 = inlined_call_operand.vmem [shape: f32[512,4], index: 0, kind: input, shape index: {}]
  %s1 = inlined_call_operand.hbm [shape: f32[8,16], index: 1, kind: input, shape index: {}]
  %s2 = inlined_call_operand.hbm [shape: f32[36,128], index: 2, kind: input, shape index: {}]
  %s3 = inlined_call_operand.hbm [shape: f32[1,128], index: 3, kind: input, shape index: {}]
  %s4 = inlined_call_operand.hbm [shape: f32[1152,256], index: 4, kind: input, shape index: {}]
  %s5 = inlined_call_operand.hbm [shape: f32[1,256], index: 5, kind: input, shape index: {}]
  %s6 = inlined_call_operand.hbm [shape: f32[1024,256], index: 6, kind: input, shape index: {}]
  %s7 = inlined_call_operand.hbm [shape: f32[1,256], index: 7, kind: input, shape index: {}]
  %s8 = inlined_call_operand.hbm [shape: f32[272,256], index: 8, kind: input, shape index: {}]
  %s9 = inlined_call_operand.hbm [shape: f32[1,256], index: 9, kind: input, shape index: {}]
  %s10 = inlined_call_operand.hbm [shape: f32[256,128], index: 10, kind: input, shape index: {}]
  %s11 = inlined_call_operand.hbm [shape: f32[1,128], index: 11, kind: input, shape index: {}]
  %s12 = inlined_call_operand.hbm [shape: f32[1,128], index: 12, kind: input, shape index: {}]
  %s13 = inlined_call_operand.hbm [shape: f32[1,128], index: 13, kind: input, shape index: {}]
  %s14 = inlined_call_operand.hbm [shape: f32[128,128], index: 14, kind: input, shape index: {}]
  %s15 = inlined_call_operand.hbm [shape: f32[1,128], index: 15, kind: input, shape index: {}]
  %s16 = inlined_call_operand.vmem [shape: f32[8,128], index: 16, kind: output, shape index: {}]
  %s17 = sld [smem:[#allocation0]]
  $region134: #{encoder_forward.1} parent=0
    _
  %s19 = ssub.s32 1, %s17
  %s20 = scalar_select 0, %s19, %s17
  $region1: #{encoder_forward.1} parent=0
    #allocation2 [shape = 'u8[4096]{0}', space=vmem, size = 0x1000, scoped, tag = 'input window, operand 1, single buffered']
    #allocation3 [shape = 's32[1]{0}', space=sflag, size = 0x4, scoped, tag = 'scoped memory for encoder_forward.1']
    #allocation4 [shape = 'u8[20480]{0}', space=vmem, size = 0x5000, scoped, tag = 'input window, operand 2, single buffered']
    #allocation5 [shape = 's32[1]{0}', space=sflag, size = 0x4, scoped, tag = 'scoped memory for encoder_forward.1']
    #allocation6 [shape = 'u8[512]{0}', space=vmem, size = 0x400, scoped, tag = 'input window, operand 3, single buffered']
    #allocation7 [shape = 'u8[1179648]{0}', space=vmem, size = 0x120000, scoped, tag = 'input window, operand 4, single buffered']
    #allocation8 [shape = 's32[1]{0}', space=sflag, size = 0x4, scoped, tag = 'scoped memory for encoder_forward.1']
    #allocation9 [shape = 'u8[1024]{0}', space=vmem, size = 0x400, scoped, tag = 'input window, operand 5, single buffered']
    #allocation10 [shape = 'u8[1048576]{0}', space=vmem, size = 0x100000, scoped, tag = 'input window, operand 6, single buffered']
    #allocation11 [shape = 's32[1]{0}', space=sflag, size = 0x4, scoped, tag = 'scoped memory for encoder_forward.1']
    #allocation12 [shape = 'u8[1024]{0}', space=vmem, size = 0x400, scoped, tag = 'input window, operand 7, single buffered']
    #allocation13 [shape = 'u8[278528]{0}', space=vmem, size = 0x44000, scoped, tag = 'input window, operand 8, single buffered']
    #allocation14 [shape = 's32[1]{0}', space=sflag, size = 0x4, scoped, tag = 'scoped memory for encoder_forward.1']
    #allocation15 [shape = 'u8[1024]{0}', space=vmem, size = 0x400, scoped, tag = 'input window, operand 9, single buffered']
    #allocation16 [shape = 'u8[131072]{0}', space=vmem, size = 0x20000, scoped, tag = 'input window, operand 10, single buffered']
    #allocation17 [shape = 's32[1]{0}', space=sflag, size = 0x4, scoped, tag = 'scoped memory for encoder_forward.1']
    #allocation18 [shape = 'u8[512]{0}', space=vmem, size = 0x400, scoped, tag = 'input window, operand 11, single buffered']
    #allocation19 [shape = 'u8[512]{0}', space=vmem, size = 0x400, scoped, tag = 'input window, operand 12, single buffered']
    #allocation20 [shape = 's32[1]{0}', space=sflag, size = 0x4, scoped, tag = 'scoped memory for encoder_forward.1']
    #allocation21 [shape = 'u8[512]{0}', space=vmem, size = 0x400, scoped, tag = 'input window, operand 13, single buffered']
    #allocation22 [shape = 'u8[65536]{0}', space=vmem, size = 0x10000, scoped, tag = 'input window, operand 14, single buffered']
    #allocation23 [shape = 's32[1]{0}', space=sflag, size = 0x4, scoped, tag = 'scoped memory for encoder_forward.1']
    #allocation24 [shape = 'u8[512]{0}', space=vmem, size = 0x400, scoped, tag = 'input window, operand 15, single buffered']
    %21 = vsyncpa [#allocation3], 0
    %22 = vsyncpa [#allocation5], 0
    %23 = vsyncpa [#allocation8], 0
    %24 = vsyncpa [#allocation11], 0
    %25 = vsyncpa [#allocation14], 0
    %26 = vsyncpa [#allocation17], 0
    %27 = vsyncpa [#allocation20], 0
    %28 = vsyncpa [#allocation23], 0
    // Predicated region
    $region2: #{encoder_forward.1} parent=1 // pred_check
      _
    $region3: #{encoder_forward.1} parent=1 // pred_check_branch
      %30 = sbr.rel (0) target = $region5
    $region4: #{encoder_forward.1} parent=1 // pred_region
      _
    $region5: #{encoder_forward.1} parent=1 // pred_fallthru
      _
    // Predicated region
    $region6: #{encoder_forward.1} parent=1 // pred_check
      _
    $region7: #{encoder_forward.1} parent=1 // pred_check_branch
      %32 = sbr.rel (0) target = $region9
    $region8: #{encoder_forward.1} parent=1 // pred_region
      %s34 = ssub.s32 128, 128
      %35 = vsyncadd [#allocation3], %s34
      %s37 = sshll.u32 [#allocation2], 4
      %s38 = int_to_ptr.vmem [resolvable:$true] %s37
      %40 = dma.hbm_to_vmem [thread:$0]  %s1, 128, %s38, [#allocation3]
    $region9: #{encoder_forward.1} parent=1 // pred_fallthru
      _
    // Predicated region
    $region10: #{encoder_forward.1} parent=1 // pred_check
      _
    $region11: #{encoder_forward.1} parent=1 // pred_check_branch
      %42 = sbr.rel (0) target = $region13
    $region12: #{encoder_forward.1} parent=1 // pred_region
      %s44 = ssub.s32 640, 640
      %45 = vsyncadd [#allocation5], %s44
      %s46 = sshll.u32 [#allocation4], 4
      %s47 = int_to_ptr.vmem [resolvable:$true] %s46
      %52 = dma.hbm_to_vmem [thread:$0]  %s2, 640, %s47, [#allocation5], 128, 128, 8
    $region13: #{encoder_forward.1} parent=1 // pred_fallthru
      _
    // Predicated region
    $region14: #{encoder_forward.1} parent=1 // pred_check
      _
    $region15: #{encoder_forward.1} parent=1 // pred_check_branch
      %54 = sbr.rel (0) target = $region17
    $region16: #{encoder_forward.1} parent=1 // pred_region
      %s56 = ssub.s32 16, 16
      %57 = vsyncadd [#allocation5], %s56
      %s59 = sshll.u32 [#allocation6], 4
      %s60 = int_to_ptr.vmem [resolvable:$true] %s59
      %62 = dma.hbm_to_vmem [thread:$0]  %s3, 16, %s60, [#allocation5]
    $region17: #{encoder_forward.1} parent=1 // pred_fallthru
      _
    // Predicated region
    $region18: #{encoder_forward.1} parent=1 // pred_check
      _
    $region19: #{encoder_forward.1} parent=1 // pred_check_branch
      %64 = sbr.rel (0) target = $region21
    $region20: #{encoder_forward.1} parent=1 // pred_region
      %s66 = ssub.s32 36864, 36864
      %67 = vsyncadd [#allocation8], %s66
      %s68 = sshll.u32 [#allocation7], 4
      %s69 = int_to_ptr.vmem [resolvable:$true] %s68
      %74 = dma.hbm_to_vmem [thread:$0]  %s4, 36864, %s69, [#allocation8], 256, 256, 16
    $region21: #{encoder_forward.1} parent=1 // pred_fallthru
      _
    // Predicated region
    $region22: #{encoder_forward.1} parent=1 // pred_check
      _
    $region23: #{encoder_forward.1} parent=1 // pred_check_branch
      %76 = sbr.rel (0) target = $region25
    $region24: #{encoder_forward.1} parent=1 // pred_region
      %s78 = ssub.s32 32, 32
      %79 = vsyncadd [#allocation8], %s78
      %s81 = sshll.u32 [#allocation9], 4
      %s82 = int_to_ptr.vmem [resolvable:$true] %s81
      %84 = dma.hbm_to_vmem [thread:$0]  %s5, 32, %s82, [#allocation8]
    $region25: #{encoder_forward.1} parent=1 // pred_fallthru
      _
    // Predicated region
    $region26: #{encoder_forward.1} parent=1 // pred_check
      _
    $region27: #{encoder_forward.1} parent=1 // pred_check_branch
      %86 = sbr.rel (0) target = $region29
    $region28: #{encoder_forward.1} parent=1 // pred_region
      %s88 = ssub.s32 32768, 32768
      %89 = vsyncadd [#allocation11], %s88
      %s90 = sshll.u32 [#allocation10], 4
      %s91 = int_to_ptr.vmem [resolvable:$true] %s90
      %96 = dma.hbm_to_vmem [thread:$0]  %s6, 32768, %s91, [#allocation11], 256, 256, 16
    $region29: #{encoder_forward.1} parent=1 // pred_fallthru
      _
    // Predicated region
    $region30: #{encoder_forward.1} parent=1 // pred_check
      _
    $region31: #{encoder_forward.1} parent=1 // pred_check_branch
      %98 = sbr.rel (0) target = $region33
    $region32: #{encoder_forward.1} parent=1 // pred_region
      %s100 = ssub.s32 32, 32
      %101 = vsyncadd [#allocation11], %s100
      %s103 = sshll.u32 [#allocation12], 4
      %s104 = int_to_ptr.vmem [resolvable:$true] %s103
      %106 = dma.hbm_to_vmem [thread:$0]  %s7, 32, %s104, [#allocation11]
    $region33: #{encoder_forward.1} parent=1 // pred_fallthru
      _
    // Predicated region
    $region34: #{encoder_forward.1} parent=1 // pred_check
      _
    $region35: #{encoder_forward.1} parent=1 // pred_check_branch
      %108 = sbr.rel (0) target = $region37
    $region36: #{encoder_forward.1} parent=1 // pred_region
      %s110 = ssub.s32 8704, 8704
      %111 = vsyncadd [#allocation14], %s110
      %s112 = sshll.u32 [#allocation13], 4
      %s113 = int_to_ptr.vmem [resolvable:$true] %s112
      %118 = dma.hbm_to_vmem [thread:$0]  %s8, 8704, %s113, [#allocation14], 256, 256, 16
    $region37: #{encoder_forward.1} parent=1 // pred_fallthru
      _
    // Predicated region
    $region38: #{encoder_forward.1} parent=1 // pred_check
      _
    $region39: #{encoder_forward.1} parent=1 // pred_check_branch
      %120 = sbr.rel (0) target = $region41
    $region40: #{encoder_forward.1} parent=1 // pred_region
      %s122 = ssub.s32 32, 32
      %123 = vsyncadd [#allocation14], %s122
      %s125 = sshll.u32 [#allocation15], 4
      %s126 = int_to_ptr.vmem [resolvable:$true] %s125
      %128 = dma.hbm_to_vmem [thread:$0]  %s9, 32, %s126, [#allocation14]
    $region41: #{encoder_forward.1} parent=1 // pred_fallthru
      _
    // Predicated region
    $region42: #{encoder_forward.1} parent=1 // pred_check
      _
    $region43: #{encoder_forward.1} parent=1 // pred_check_branch
      %130 = sbr.rel (0) target = $region45
    $region44: #{encoder_forward.1} parent=1 // pred_region
      %s132 = ssub.s32 4096, 4096
      %133 = vsyncadd [#allocation17], %s132
      %s134 = sshll.u32 [#allocation16], 4
      %s135 = int_to_ptr.vmem [resolvable:$true] %s134
      %140 = dma.hbm_to_vmem [thread:$0]  %s10, 4096, %s135, [#allocation17], 128, 128, 8
    $region45: #{encoder_forward.1} parent=1 // pred_fallthru
      _
    // Predicated region
    $region46: #{encoder_forward.1} parent=1 // pred_check
      _
    $region47: #{encoder_forward.1} parent=1 // pred_check_branch
      %142 = sbr.rel (0) target = $region49
    $region48: #{encoder_forward.1} parent=1 // pred_region
      %s144 = ssub.s32 16, 16
      %145 = vsyncadd [#allocation17], %s144
      %s147 = sshll.u32 [#allocation18], 4
      %s148 = int_to_ptr.vmem [resolvable:$true] %s147
      %150 = dma.hbm_to_vmem [thread:$0]  %s11, 16, %s148, [#allocation17]
    $region49: #{encoder_forward.1} parent=1 // pred_fallthru
      _
    // Predicated region
    $region50: #{encoder_forward.1} parent=1 // pred_check
      _
    $region51: #{encoder_forward.1} parent=1 // pred_check_branch
      %152 = sbr.rel (0) target = $region53
    $region52: #{encoder_forward.1} parent=1 // pred_region
      %s154 = ssub.s32 16, 16
      %155 = vsyncadd [#allocation20], %s154
      %s157 = sshll.u32 [#allocation19], 4
      %s158 = int_to_ptr.vmem [resolvable:$true] %s157
      %160 = dma.hbm_to_vmem [thread:$0]  %s12, 16, %s158, [#allocation20]
    $region53: #{encoder_forward.1} parent=1 // pred_fallthru
      _
    // Predicated region
    $region54: #{encoder_forward.1} parent=1 // pred_check
      _
    $region55: #{encoder_forward.1} parent=1 // pred_check_branch
      %162 = sbr.rel (0) target = $region57
    $region56: #{encoder_forward.1} parent=1 // pred_region
      %s164 = ssub.s32 16, 16
      %165 = vsyncadd [#allocation20], %s164
      %s167 = sshll.u32 [#allocation21], 4
      %s168 = int_to_ptr.vmem [resolvable:$true] %s167
      %170 = dma.hbm_to_vmem [thread:$0]  %s13, 16, %s168, [#allocation20]
    $region57: #{encoder_forward.1} parent=1 // pred_fallthru
      _
    // Predicated region
    $region58: #{encoder_forward.1} parent=1 // pred_check
      _
    $region59: #{encoder_forward.1} parent=1 // pred_check_branch
      %172 = sbr.rel (0) target = $region61
    $region60: #{encoder_forward.1} parent=1 // pred_region
      %s174 = ssub.s32 2048, 2048
      %175 = vsyncadd [#allocation23], %s174
      %s176 = sshll.u32 [#allocation22], 4
      %s177 = int_to_ptr.vmem [resolvable:$true] %s176
      %182 = dma.hbm_to_vmem [thread:$0]  %s14, 2048, %s177, [#allocation23], 128, 128, 8
    $region61: #{encoder_forward.1} parent=1 // pred_fallthru
      _
    // Predicated region
    $region62: #{encoder_forward.1} parent=1 // pred_check
      _
    $region63: #{encoder_forward.1} parent=1 // pred_check_branch
      %184 = sbr.rel (0) target = $region65
    $region64: #{encoder_forward.1} parent=1 // pred_region
      %s186 = ssub.s32 16, 16
      %187 = vsyncadd [#allocation23], %s186
      %s189 = sshll.u32 [#allocation24], 4
      %s190 = int_to_ptr.vmem [resolvable:$true] %s189
      %192 = dma.hbm_to_vmem [thread:$0]  %s15, 16, %s190, [#allocation23]
    $region65: #{encoder_forward.1} parent=1 // pred_fallthru
      _
    // Predicated region
    $region66: #{encoder_forward.1} parent=1 // pred_check
      _
    $region67: #{encoder_forward.1} parent=1 // pred_check_branch
      %194 = sbr.rel (0) target = $region69
    $region68: #{encoder_forward.1} parent=1 // pred_region
      %195 = dma.done [#allocation3], 128
    $region69: #{encoder_forward.1} parent=1 // pred_fallthru
      _
    // Predicated region
    $region70: #{encoder_forward.1} parent=1 // pred_check
      _
    $region71: #{encoder_forward.1} parent=1 // pred_check_branch
      %197 = sbr.rel (0) target = $region73
    $region72: #{encoder_forward.1} parent=1 // pred_region
      %198 = dma.done [#allocation5], 640
    $region73: #{encoder_forward.1} parent=1 // pred_fallthru
      _
    // Predicated region
    $region74: #{encoder_forward.1} parent=1 // pred_check
      _
    $region75: #{encoder_forward.1} parent=1 // pred_check_branch
      %200 = sbr.rel (0) target = $region77
    $region76: #{encoder_forward.1} parent=1 // pred_region
      %201 = dma.done [#allocation5], 16
    $region77: #{encoder_forward.1} parent=1 // pred_fallthru
      _
    // Predicated region
    $region78: #{encoder_forward.1} parent=1 // pred_check
      _
    $region79: #{encoder_forward.1} parent=1 // pred_check_branch
      %203 = sbr.rel (0) target = $region81
    $region80: #{encoder_forward.1} parent=1 // pred_region
      %204 = dma.done [#allocation8], 36864
    $region81: #{encoder_forward.1} parent=1 // pred_fallthru
      _
    // Predicated region
    $region82: #{encoder_forward.1} parent=1 // pred_check
      _
    $region83: #{encoder_forward.1} parent=1 // pred_check_branch
      %206 = sbr.rel (0) target = $region85
    $region84: #{encoder_forward.1} parent=1 // pred_region
      %207 = dma.done [#allocation8], 32
    $region85: #{encoder_forward.1} parent=1 // pred_fallthru
      _
    // Predicated region
    $region86: #{encoder_forward.1} parent=1 // pred_check
      _
    $region87: #{encoder_forward.1} parent=1 // pred_check_branch
      %209 = sbr.rel (0) target = $region89
    $region88: #{encoder_forward.1} parent=1 // pred_region
      %210 = dma.done [#allocation11], 32768
    $region89: #{encoder_forward.1} parent=1 // pred_fallthru
      _
    // Predicated region
    $region90: #{encoder_forward.1} parent=1 // pred_check
      _
    $region91: #{encoder_forward.1} parent=1 // pred_check_branch
      %212 = sbr.rel (0) target = $region93
    $region92: #{encoder_forward.1} parent=1 // pred_region
      %213 = dma.done [#allocation11], 32
    $region93: #{encoder_forward.1} parent=1 // pred_fallthru
      _
    // Predicated region
    $region94: #{encoder_forward.1} parent=1 // pred_check
      _
    $region95: #{encoder_forward.1} parent=1 // pred_check_branch
      %215 = sbr.rel (0) target = $region97
    $region96: #{encoder_forward.1} parent=1 // pred_region
      %216 = dma.done [#allocation14], 8704
    $region97: #{encoder_forward.1} parent=1 // pred_fallthru
      _
    // Predicated region
    $region98: #{encoder_forward.1} parent=1 // pred_check
      _
    $region99: #{encoder_forward.1} parent=1 // pred_check_branch
      %218 = sbr.rel (0) target = $region101
    $region100: #{encoder_forward.1} parent=1 // pred_region
      %219 = dma.done [#allocation14], 32
    $region101: #{encoder_forward.1} parent=1 // pred_fallthru
      _
    // Predicated region
    $region102: #{encoder_forward.1} parent=1 // pred_check
      _
    $region103: #{encoder_forward.1} parent=1 // pred_check_branch
      %221 = sbr.rel (0) target = $region105
    $region104: #{encoder_forward.1} parent=1 // pred_region
      %222 = dma.done [#allocation17], 4096
    $region105: #{encoder_forward.1} parent=1 // pred_fallthru
      _
    // Predicated region
    $region106: #{encoder_forward.1} parent=1 // pred_check
      _
    $region107: #{encoder_forward.1} parent=1 // pred_check_branch
      %224 = sbr.rel (0) target = $region109
    $region108: #{encoder_forward.1} parent=1 // pred_region
      %225 = dma.done [#allocation17], 16
    $region109: #{encoder_forward.1} parent=1 // pred_fallthru
      _
    // Predicated region
    $region110: #{encoder_forward.1} parent=1 // pred_check
      _
    $region111: #{encoder_forward.1} parent=1 // pred_check_branch
      %227 = sbr.rel (0) target = $region113
    $region112: #{encoder_forward.1} parent=1 // pred_region
      %228 = dma.done [#allocation20], 16
    $region113: #{encoder_forward.1} parent=1 // pred_fallthru
      _
    // Predicated region
    $region114: #{encoder_forward.1} parent=1 // pred_check
      _
    $region115: #{encoder_forward.1} parent=1 // pred_check_branch
      %230 = sbr.rel (0) target = $region117
    $region116: #{encoder_forward.1} parent=1 // pred_region
      %231 = dma.done [#allocation20], 16
    $region117: #{encoder_forward.1} parent=1 // pred_fallthru
      _
    // Predicated region
    $region118: #{encoder_forward.1} parent=1 // pred_check
      _
    $region119: #{encoder_forward.1} parent=1 // pred_check_branch
      %233 = sbr.rel (0) target = $region121
    $region120: #{encoder_forward.1} parent=1 // pred_region
      %234 = dma.done [#allocation23], 2048
    $region121: #{encoder_forward.1} parent=1 // pred_fallthru
      _
    // Predicated region
    $region122: #{encoder_forward.1} parent=1 // pred_check
      _
    $region123: #{encoder_forward.1} parent=1 // pred_check_branch
      %236 = sbr.rel (0) target = $region125
    $region124: #{encoder_forward.1} parent=1 // pred_region
      %237 = dma.done [#allocation23], 16
    $region125: #{encoder_forward.1} parent=1 // pred_fallthru
      _
    %v238 = vld [vmem:[%s0 + $0x48] sm:$0xff]
    %v239 = vld [vmem:[%s0 + $0x58] sm:$0xff]
    %v240 = vld [vmem:[%s0 + $0x68] sm:$0xff]
    %v241 = vld [vmem:[%s0 + $0xc8] sm:$0xff]
    %v242 = vld [vmem:[%s0 + $0xd8] sm:$0xff]
    %v243 = vld [vmem:[%s0 + $0xe8] sm:$0xff]
    %v244 = vld [vmem:[%s0 + $0x148] sm:$0xff]
    %v245 = vld [vmem:[%s0 + $0x158] sm:$0xff]
    %v246 = vld [vmem:[%s0 + $0x168] sm:$0xff]
    %v247 = vld [vmem:[%s0 + $0x40] sm:$0xff]
    %v248 = vld [vmem:[%s0 + $0x50] sm:$0xff]
    %v249 = vld [vmem:[%s0 + $0x60] sm:$0xff]
    %v250 = vld [vmem:[%s0 + $0x70] sm:$0xff]
    %v251 = vld [vmem:[%s0 + $0xc0] sm:$0xff]
    %v252 = vld [vmem:[%s0 + $0xd0] sm:$0xff]
    %v253 = vld [vmem:[%s0 + $0xe0] sm:$0xff]
    %v254 = vld [vmem:[%s0 + $0xf0] sm:$0xff]
    %v255 = vld [vmem:[%s0 + $0x140] sm:$0xff]
    %v256 = vld [vmem:[%s0 + $0x150] sm:$0xff]
    %v257 = vld [vmem:[%s0 + $0x160] sm:$0xff]
    %v258 = vld [vmem:[%s0 + $0x170] sm:$0xff]
    %v259 = vld [vmem:[%s0 + $0x78] sm:$0xff]
    %v260 = vld [vmem:[%s0 + $0xf8] sm:$0xff]
    %v261 = vld [vmem:[%s0 + $0x178] sm:$0xff]
    %v262 = vld [vmem:[%s0 + $0x8] sm:$0xff]
    %v263 = vld [vmem:[%s0 + $0x18] sm:$0xff]
    %v264 = vld [vmem:[%s0 + $0x28] sm:$0xff]
    %v265 = vld [vmem:[%s0 + $0x88] sm:$0xff]
    %v266 = vld [vmem:[%s0 + $0x98] sm:$0xff]
    %v267 = vld [vmem:[%s0 + $0xa8] sm:$0xff]
    %v268 = vld [vmem:[%s0 + $0x108] sm:$0xff]
    %v269 = vld [vmem:[%s0 + $0x118] sm:$0xff]
    %v270 = vld [vmem:[%s0 + $0x128] sm:$0xff]
    %v271 = vld [vmem:[%s0 + $0x188] sm:$0xff]
    %v272 = vld [vmem:[%s0 + $0x198] sm:$0xff]
    %v273 = vld [vmem:[%s0 + $0x1a8] sm:$0xff]
    %v274 = vld [vmem:[%s0] sm:$0xff]
    %v275 = vld [vmem:[%s0 + $0x10] sm:$0xff]
    %v276 = vld [vmem:[%s0 + $0x20] sm:$0xff]
    %v277 = vld [vmem:[%s0 + $0x30] sm:$0xff]
    %v278 = vld [vmem:[%s0 + $0x80] sm:$0xff]
    %v279 = vld [vmem:[%s0 + $0x90] sm:$0xff]
    %v280 = vld [vmem:[%s0 + $0xa0] sm:$0xff]
    %v281 = vld [vmem:[%s0 + $0xb0] sm:$0xff]
    %v282 = vld [vmem:[%s0 + $0x100] sm:$0xff]
    %v283 = vld [vmem:[%s0 + $0x110] sm:$0xff]
    %v284 = vld [vmem:[%s0 + $0x120] sm:$0xff]
    %v285 = vld [vmem:[%s0 + $0x130] sm:$0xff]
    %v286 = vld [vmem:[%s0 + $0x180] sm:$0xff]
    %v287 = vld [vmem:[%s0 + $0x190] sm:$0xff]
    %v288 = vld [vmem:[%s0 + $0x1a0] sm:$0xff]
    %v289 = vld [vmem:[%s0 + $0x1b0] sm:$0xff]
    %v290 = vld [vmem:[%s0 + $0x38] sm:$0xff]
    %v291 = vld [vmem:[%s0 + $0xb8] sm:$0xff]
    %v292 = vld [vmem:[%s0 + $0x138] sm:$0xff]
    %v293 = vld [vmem:[%s0 + $0x1b8] sm:$0xff]
    %v294 = vld [vmem:[%s0 + $0x1c8] sm:$0xff]
    %v295 = vld [vmem:[%s0 + $0x1d8] sm:$0xff]
    %v296 = vld [vmem:[%s0 + $0x1e8] sm:$0xff]
    %v297 = vld [vmem:[%s0 + $0x1c0] sm:$0xff]
    %v298 = vld [vmem:[%s0 + $0x1d0] sm:$0xff]
    %v299 = vld [vmem:[%s0 + $0x1e0] sm:$0xff]
    %v300 = vld [vmem:[%s0 + $0x1f0] sm:$0xff]
    %v301 = vld [vmem:[%s0 + $0x1f8] sm:$0xff]
    %315 = vrot.lane.b32.xlu0 0.0, 4
    %v316 = vpop.permute.xlu0 %315
    %317 = vrot.lane.b32.xlu0 %v247, 4
    %v318 = vpop.permute.xlu0 %317
    %319 = vrot.lane.b32.xlu0 %v248, 4
    %v320 = vpop.permute.xlu0 %319
    %321 = vrot.lane.b32.xlu0 %v249, 4
    %v322 = vpop.permute.xlu0 %321
    %323 = vrot.lane.b32.xlu0 %v250, 4
    %v324 = vpop.permute.xlu0 %323
    %325 = vrot.lane.b32.xlu0 %v251, 4
    %v326 = vpop.permute.xlu0 %325
    %327 = vrot.lane.b32.xlu0 %v252, 4
    %v328 = vpop.permute.xlu0 %327
    %329 = vrot.lane.b32.xlu0 %v253, 4
    %v330 = vpop.permute.xlu0 %329
    %331 = vrot.lane.b32.xlu0 %v254, 4
    %v332 = vpop.permute.xlu0 %331
    %333 = vrot.lane.b32.xlu0 %v255, 4
    %v334 = vpop.permute.xlu0 %333
    %335 = vrot.lane.b32.xlu0 %v256, 4
    %v336 = vpop.permute.xlu0 %335
    %337 = vrot.lane.b32.xlu0 %v257, 4
    %v338 = vpop.permute.xlu0 %337
    %339 = vrot.lane.b32.xlu0 %v258, 4
    %v340 = vpop.permute.xlu0 %339
    %366 = vrot.lane.b32.xlu0 0.0, 8
    %v367 = vpop.permute.xlu0 %366
    %368 = vrot.lane.b32.xlu0 %v238, 8
    %v369 = vpop.permute.xlu0 %368
    %370 = vrot.lane.b32.xlu0 %v239, 8
    %v371 = vpop.permute.xlu0 %370
    %372 = vrot.lane.b32.xlu0 %v240, 8
    %v373 = vpop.permute.xlu0 %372
    %374 = vrot.lane.b32.xlu0 %v259, 8
    %v375 = vpop.permute.xlu0 %374
    %376 = vrot.lane.b32.xlu0 %v241, 8
    %v377 = vpop.permute.xlu0 %376
    %378 = vrot.lane.b32.xlu0 %v242, 8
    %v379 = vpop.permute.xlu0 %378
    %380 = vrot.lane.b32.xlu0 %v243, 8
    %v381 = vpop.permute.xlu0 %380
    %382 = vrot.lane.b32.xlu0 %v260, 8
    %v383 = vpop.permute.xlu0 %382
    %384 = vrot.lane.b32.xlu0 %v244, 8
    %v385 = vpop.permute.xlu0 %384
    %386 = vrot.lane.b32.xlu0 %v245, 8
    %v387 = vpop.permute.xlu0 %386
    %388 = vrot.lane.b32.xlu0 %v246, 8
    %v389 = vpop.permute.xlu0 %388
    %390 = vrot.lane.b32.xlu0 %v261, 8
    %v391 = vpop.permute.xlu0 %390
    %417 = vrot.lane.b32.xlu0 0.0, 12
    %v418 = vpop.permute.xlu0 %417
    %419 = vrot.lane.b32.xlu0 %v262, 12
    %v420 = vpop.permute.xlu0 %419
    %421 = vrot.lane.b32.xlu0 %v263, 12
    %v422 = vpop.permute.xlu0 %421
    %423 = vrot.lane.b32.xlu0 %v264, 12
    %v424 = vpop.permute.xlu0 %423
    %425 = vrot.lane.b32.xlu0 %v265, 12
    %v426 = vpop.permute.xlu0 %425
    %427 = vrot.lane.b32.xlu0 %v266, 12
    %v428 = vpop.permute.xlu0 %427
    %429 = vrot.lane.b32.xlu0 %v267, 12
    %v430 = vpop.permute.xlu0 %429
    %431 = vrot.lane.b32.xlu0 %v268, 12
    %v432 = vpop.permute.xlu0 %431
    %433 = vrot.lane.b32.xlu0 %v269, 12
    %v434 = vpop.permute.xlu0 %433
    %435 = vrot.lane.b32.xlu0 %v270, 12
    %v436 = vpop.permute.xlu0 %435
    %437 = vrot.lane.b32.xlu0 %v271, 12
    %v438 = vpop.permute.xlu0 %437
    %439 = vrot.lane.b32.xlu0 %v272, 12
    %v440 = vpop.permute.xlu0 %439
    %441 = vrot.lane.b32.xlu0 %v273, 12
    %v442 = vpop.permute.xlu0 %441
    %472 = vrot.lane.b32.xlu0 %v274, 16
    %v473 = vpop.permute.xlu0 %472
    %474 = vrot.lane.b32.xlu0 %v275, 16
    %v475 = vpop.permute.xlu0 %474
    %476 = vrot.lane.b32.xlu0 %v276, 16
    %v477 = vpop.permute.xlu0 %476
    %478 = vrot.lane.b32.xlu0 %v277, 16
    %v479 = vpop.permute.xlu0 %478
    %480 = vrot.lane.b32.xlu0 %v278, 16
    %v481 = vpop.permute.xlu0 %480
    %482 = vrot.lane.b32.xlu0 %v279, 16
    %v483 = vpop.permute.xlu0 %482
    %484 = vrot.lane.b32.xlu0 %v280, 16
    %v485 = vpop.permute.xlu0 %484
    %486 = vrot.lane.b32.xlu0 %v281, 16
    %v487 = vpop.permute.xlu0 %486
    %488 = vrot.lane.b32.xlu0 %v282, 16
    %v489 = vpop.permute.xlu0 %488
    %490 = vrot.lane.b32.xlu0 %v283, 16
    %v491 = vpop.permute.xlu0 %490
    %492 = vrot.lane.b32.xlu0 %v284, 16
    %v493 = vpop.permute.xlu0 %492
    %494 = vrot.lane.b32.xlu0 %v285, 16
    %v495 = vpop.permute.xlu0 %494
    %496 = vrot.lane.b32.xlu0 %v286, 16
    %v497 = vpop.permute.xlu0 %496
    %498 = vrot.lane.b32.xlu0 %v287, 16
    %v499 = vpop.permute.xlu0 %498
    %500 = vrot.lane.b32.xlu0 %v288, 16
    %v501 = vpop.permute.xlu0 %500
    %502 = vrot.lane.b32.xlu0 %v289, 16
    %v503 = vpop.permute.xlu0 %502
    %524 = vrot.lane.b32.xlu0 %v262, 20
    %v525 = vpop.permute.xlu0 %524
    %526 = vrot.lane.b32.xlu0 %v263, 20
    %v527 = vpop.permute.xlu0 %526
    %528 = vrot.lane.b32.xlu0 %v264, 20
    %v529 = vpop.permute.xlu0 %528
    %530 = vrot.lane.b32.xlu0 %v290, 20
    %v531 = vpop.permute.xlu0 %530
    %532 = vrot.lane.b32.xlu0 %v265, 20
    %v533 = vpop.permute.xlu0 %532
    %534 = vrot.lane.b32.xlu0 %v266, 20
    %v535 = vpop.permute.xlu0 %534
    %536 = vrot.lane.b32.xlu0 %v267, 20
    %v537 = vpop.permute.xlu0 %536
    %538 = vrot.lane.b32.xlu0 %v291, 20
    %v539 = vpop.permute.xlu0 %538
    %540 = vrot.lane.b32.xlu0 %v268, 20
    %v541 = vpop.permute.xlu0 %540
    %542 = vrot.lane.b32.xlu0 %v269, 20
    %v543 = vpop.permute.xlu0 %542
    %544 = vrot.lane.b32.xlu0 %v270, 20
    %v545 = vpop.permute.xlu0 %544
    %546 = vrot.lane.b32.xlu0 %v292, 20
    %v547 = vpop.permute.xlu0 %546
    %548 = vrot.lane.b32.xlu0 %v271, 20
    %v549 = vpop.permute.xlu0 %548
    %550 = vrot.lane.b32.xlu0 %v272, 20
    %v551 = vpop.permute.xlu0 %550
    %552 = vrot.lane.b32.xlu0 %v273, 20
    %v553 = vpop.permute.xlu0 %552
    %554 = vrot.lane.b32.xlu0 %v293, 20
    %v555 = vpop.permute.xlu0 %554
    %575 = vrot.lane.b32.xlu0 0.0, 24
    %v576 = vpop.permute.xlu0 %575
    %577 = vrot.lane.b32.xlu0 %v238, 24
    %v578 = vpop.permute.xlu0 %577
    %579 = vrot.lane.b32.xlu0 %v239, 24
    %v580 = vpop.permute.xlu0 %579
    %581 = vrot.lane.b32.xlu0 %v240, 24
    %v582 = vpop.permute.xlu0 %581
    %583 = vrot.lane.b32.xlu0 %v241, 24
    %v584 = vpop.permute.xlu0 %583
    %585 = vrot.lane.b32.xlu0 %v242, 24
    %v586 = vpop.permute.xlu0 %585
    %587 = vrot.lane.b32.xlu0 %v243, 24
    %v588 = vpop.permute.xlu0 %587
    %589 = vrot.lane.b32.xlu0 %v244, 24
    %v590 = vpop.permute.xlu0 %589
    %591 = vrot.lane.b32.xlu0 %v245, 24
    %v592 = vpop.permute.xlu0 %591
    %593 = vrot.lane.b32.xlu0 %v246, 24
    %v594 = vpop.permute.xlu0 %593
    %595 = vrot.lane.b32.xlu0 %v294, 24
    %v596 = vpop.permute.xlu0 %595
    %597 = vrot.lane.b32.xlu0 %v295, 24
    %v598 = vpop.permute.xlu0 %597
    %599 = vrot.lane.b32.xlu0 %v296, 24
    %v600 = vpop.permute.xlu0 %599
    %618 = vrot.lane.b32.xlu0 %v247, 28
    %v619 = vpop.permute.xlu0 %618
    %620 = vrot.lane.b32.xlu0 %v248, 28
    %v621 = vpop.permute.xlu0 %620
    %622 = vrot.lane.b32.xlu0 %v249, 28
    %v623 = vpop.permute.xlu0 %622
    %624 = vrot.lane.b32.xlu0 %v250, 28
    %v625 = vpop.permute.xlu0 %624
    %626 = vrot.lane.b32.xlu0 %v251, 28
    %v627 = vpop.permute.xlu0 %626
    %628 = vrot.lane.b32.xlu0 %v252, 28
    %v629 = vpop.permute.xlu0 %628
    %630 = vrot.lane.b32.xlu0 %v253, 28
    %v631 = vpop.permute.xlu0 %630
    %632 = vrot.lane.b32.xlu0 %v254, 28
    %v633 = vpop.permute.xlu0 %632
    %634 = vrot.lane.b32.xlu0 %v255, 28
    %v635 = vpop.permute.xlu0 %634
    %636 = vrot.lane.b32.xlu0 %v256, 28
    %v637 = vpop.permute.xlu0 %636
    %638 = vrot.lane.b32.xlu0 %v257, 28
    %v639 = vpop.permute.xlu0 %638
    %640 = vrot.lane.b32.xlu0 %v258, 28
    %v641 = vpop.permute.xlu0 %640
    %642 = vrot.lane.b32.xlu0 %v297, 28
    %v643 = vpop.permute.xlu0 %642
    %644 = vrot.lane.b32.xlu0 %v298, 28
    %v645 = vpop.permute.xlu0 %644
    %646 = vrot.lane.b32.xlu0 %v299, 28
    %v647 = vpop.permute.xlu0 %646
    %648 = vrot.lane.b32.xlu0 %v300, 28
    %v649 = vpop.permute.xlu0 %648
    %667 = vrot.lane.b32.xlu0 %v238, 32
    %v668 = vpop.permute.xlu0 %667
    %669 = vrot.lane.b32.xlu0 %v239, 32
    %v670 = vpop.permute.xlu0 %669
    %671 = vrot.lane.b32.xlu0 %v240, 32
    %v672 = vpop.permute.xlu0 %671
    %673 = vrot.lane.b32.xlu0 %v259, 32
    %v674 = vpop.permute.xlu0 %673
    %675 = vrot.lane.b32.xlu0 %v241, 32
    %v676 = vpop.permute.xlu0 %675
    %677 = vrot.lane.b32.xlu0 %v242, 32
    %v678 = vpop.permute.xlu0 %677
    %679 = vrot.lane.b32.xlu0 %v243, 32
    %v680 = vpop.permute.xlu0 %679
    %681 = vrot.lane.b32.xlu0 %v260, 32
    %v682 = vpop.permute.xlu0 %681
    %683 = vrot.lane.b32.xlu0 %v244, 32
    %v684 = vpop.permute.xlu0 %683
    %685 = vrot.lane.b32.xlu0 %v245, 32
    %v686 = vpop.permute.xlu0 %685
    %687 = vrot.lane.b32.xlu0 %v246, 32
    %v688 = vpop.permute.xlu0 %687
    %689 = vrot.lane.b32.xlu0 %v261, 32
    %v690 = vpop.permute.xlu0 %689
    %691 = vrot.lane.b32.xlu0 %v294, 32
    %v692 = vpop.permute.xlu0 %691
    %693 = vrot.lane.b32.xlu0 %v295, 32
    %v694 = vpop.permute.xlu0 %693
    %695 = vrot.lane.b32.xlu0 %v296, 32
    %v696 = vpop.permute.xlu0 %695
    %697 = vrot.lane.b32.xlu0 %v301, 32
    %v698 = vpop.permute.xlu0 %697
    %vm715 = vcmask 31744
    %v716 = vsel %vm715, 0.0, %v316
    %v717 = vsel %vm715, 0.0, %v318
    %v718 = vsel %vm715, %v238, %v320
    %v719 = vsel %vm715, %v239, %v322
    %v720 = vsel %vm715, %v240, %v324
    %v721 = vsel %vm715, 0.0, %v326
    %v722 = vsel %vm715, %v241, %v328
    %v723 = vsel %vm715, %v242, %v330
    %v724 = vsel %vm715, %v243, %v332
    %v725 = vsel %vm715, 0.0, %v334
    %v726 = vsel %vm715, %v244, %v336
    %v727 = vsel %vm715, %v245, %v338
    %v728 = vsel %vm715, %v246, %v340
    %vm729 = vcmask 64512
    %v730 = vsel %vm729, %v716, %v367
    %v731 = vsel %vm729, %v717, %v369
    %v732 = vsel %vm729, %v718, %v371
    %v733 = vsel %vm729, %v719, %v373
    %v734 = vsel %vm729, %v720, %v375
    %v735 = vsel %vm729, %v721, %v377
    %v736 = vsel %vm729, %v722, %v379
    %v737 = vsel %vm729, %v723, %v381
    %v738 = vsel %vm729, %v724, %v383
    %v739 = vsel %vm729, %v725, %v385
    %v740 = vsel %vm729, %v726, %v387
    %v741 = vsel %vm729, %v727, %v389
    %v742 = vsel %vm729, %v728, %v391
    %vm743 = vcmask 97280
    %v744 = vsel %vm743, %v730, %v418
    %v745 = vsel %vm743, %v730, %v420
    %v746 = vsel %vm743, %v730, %v422
    %v747 = vsel %vm743, %v730, %v424
    %v748 = vsel %vm743, %v731, %v418
    %v749 = vsel %vm743, %v732, %v426
    %v750 = vsel %vm743, %v733, %v428
    %v751 = vsel %vm743, %v734, %v430
    %v752 = vsel %vm743, %v735, %v418
    %v753 = vsel %vm743, %v736, %v432
    %v754 = vsel %vm743, %v737, %v434
    %v755 = vsel %vm743, %v738, %v436
    %v756 = vsel %vm743, %v739, %v418
    %v757 = vsel %vm743, %v740, %v438
    %v758 = vsel %vm743, %v741, %v440
    %v759 = vsel %vm743, %v742, %v442
    %vm760 = vcmask 130048
    %v761 = vsel %vm760, %v744, %v473
    %v762 = vsel %vm760, %v745, %v475
    %v763 = vsel %vm760, %v746, %v477
    %v764 = vsel %vm760, %v747, %v479
    %v765 = vsel %vm760, %v748, %v481
    %v766 = vsel %vm760, %v749, %v483
    %v767 = vsel %vm760, %v750, %v485
    %v768 = vsel %vm760, %v751, %v487
    %v769 = vsel %vm760, %v752, %v489
    %v770 = vsel %vm760, %v753, %v491
    %v771 = vsel %vm760, %v754, %v493
    %v772 = vsel %vm760, %v755, %v495
    %v773 = vsel %vm760, %v756, %v497
    %v774 = vsel %vm760, %v757, %v499
    %v775 = vsel %vm760, %v758, %v501
    %v776 = vsel %vm760, %v759, %v503
    %vm777 = vcmask 162816
    %v778 = vsel %vm777, %v761, %v525
    %v779 = vsel %vm777, %v762, %v527
    %v780 = vsel %vm777, %v763, %v529
    %v781 = vsel %vm777, %v764, %v531
    %v782 = vsel %vm777, %v765, %v533
    %v783 = vsel %vm777, %v766, %v535
    %v784 = vsel %vm777, %v767, %v537
    %v785 = vsel %vm777, %v768, %v539
    %v786 = vsel %vm777, %v769, %v541
    %v787 = vsel %vm777, %v770, %v543
    %v788 = vsel %vm777, %v771, %v545
    %v789 = vsel %vm777, %v772, %v547
    %v790 = vsel %vm777, %v773, %v549
    %v791 = vsel %vm777, %v774, %v551
    %v792 = vsel %vm777, %v775, %v553
    %v793 = vsel %vm777, %v776, %v555
    %vm794 = vcmask 195584
    %v795 = vsel %vm794, %v778, %v576
    %v796 = vsel %vm794, %v779, %v578
    %v797 = vsel %vm794, %v780, %v580
    %v798 = vsel %vm794, %v781, %v582
    %v799 = vsel %vm794, %v782, %v576
    %v800 = vsel %vm794, %v783, %v584
    %v801 = vsel %vm794, %v784, %v586
    %v802 = vsel %vm794, %v785, %v588
    %v803 = vsel %vm794, %v786, %v576
    %v804 = vsel %vm794, %v787, %v590
    %v805 = vsel %vm794, %v788, %v592
    %v806 = vsel %vm794, %v789, %v594
    %v807 = vsel %vm794, %v790, %v576
    %v808 = vsel %vm794, %v791, %v596
    %v809 = vsel %vm794, %v792, %v598
    %v810 = vsel %vm794, %v793, %v600
    %vm811 = vcmask 228352
    %v812 = vsel %vm811, %v795, %v619
    %v813 = vsel %vm811, %v796, %v621
    %v814 = vsel %vm811, %v797, %v623
    %v815 = vsel %vm811, %v798, %v625
    %v816 = vsel %vm811, %v799, %v627
    %v817 = vsel %vm811, %v800, %v629
    %v818 = vsel %vm811, %v801, %v631
    %v819 = vsel %vm811, %v802, %v633
    %v820 = vsel %vm811, %v803, %v635
    %v821 = vsel %vm811, %v804, %v637
    %v822 = vsel %vm811, %v805, %v639
    %v823 = vsel %vm811, %v806, %v641
    %v824 = vsel %vm811, %v807, %v643
    %v825 = vsel %vm811, %v808, %v645
    %v826 = vsel %vm811, %v809, %v647
    %v827 = vsel %vm811, %v810, %v649
    %vm828 = vcmask 261120
    %v829 = vsel %vm828, %v812, %v668
    %v830 = vsel %vm828, %v813, %v670
    %v831 = vsel %vm828, %v814, %v672
    %v832 = vsel %vm828, %v815, %v674
    %v833 = vsel %vm828, %v816, %v676
    %v834 = vsel %vm828, %v817, %v678
    %v835 = vsel %vm828, %v818, %v680
    %v836 = vsel %vm828, %v819, %v682
    %v837 = vsel %vm828, %v820, %v684
    %v838 = vsel %vm828, %v821, %v686
    %v839 = vsel %vm828, %v822, %v688
    %v840 = vsel %vm828, %v823, %v690
    %v841 = vsel %vm828, %v824, %v692
    %v842 = vsel %vm828, %v825, %v694
    %v843 = vsel %vm828, %v826, %v696
    %v844 = vsel %vm828, %v827, %v698
    %v845 = vld [vmem:[#allocation4] sm:$0xff]
    %v846 = vld [vmem:[#allocation4 + $0x8] sm:$0xff]
    %v847 = vld [vmem:[#allocation4 + $0x10] sm:$0xff]
    %v848 = vld [vmem:[#allocation4 + $0x18] sm:$0xff]
    %v849 = vld [vmem:[#allocation4 + $0x20] sm:$0xf]
    %v850 = vld [vmem:[#allocation6] sm:$0x1]
    %v852 = vlaneseq
    %v853 = vshrl.u32 %v852, 7
    %v854 = vsub.s32 0, %v853
    %v855 = vrot.slane %v850, %v854
    %vm857 = vcmask 293888
    %v859 = vsel %vm857, %v829, 0
    %v862 = vsel %vm857, %v830, 0
    %v865 = vsel %vm857, %v831, 0
    %v868 = vsel %vm857, %v832, 0
    %v871 = vsel %vm857, %v833, 0
    %v874 = vsel %vm857, %v834, 0
    %v877 = vsel %vm857, %v835, 0
    %v880 = vsel %vm857, %v836, 0
    %v883 = vsel %vm857, %v837, 0
    %v886 = vsel %vm857, %v838, 0
    %v889 = vsel %vm857, %v839, 0
    %v892 = vsel %vm857, %v840, 0
    %v895 = vsel %vm857, %v841, 0
    %v898 = vsel %vm857, %v842, 0
    %v901 = vsel %vm857, %v843, 0
    %v904 = vsel %vm857, %v844, 0
    %vm906 = vcmask 1043456
    %v908 = vsel %vm906, %v849, 0
    %910 = vmatprep.subr.mxu0 0.0
    %911 = vmatpush1.msra.mxu0 %v845
    %912 = vmatprep.subr.mxu0 0.0
    %913 = vmatpush1.msra.mxu0 %v846
    %914 = vmatprep.subr.mxu0 0.0
    %915 = vmatpush1.msra.mxu0 %v847
    %916 = vmatprep.subr.mxu0 0.0
    %917 = vmatpush1.msra.mxu0 %v848
    %918 = vmatprep.subr.mxu0 0.0
    %919 = vmatpush1.msra.mxu0 %v908
    %920 = vmatprep.subr.mxu0 0.0
    %921 = vmatpush1.msra.mxu0 0.0
    %922 = vmatprep.subr.mxu0 0.0
    %923 = vmatpush1.msra.mxu0 0.0
    %924 = vmatprep.subr.mxu0 0.0
    %925 = vmatpush1.msra.mxu0 0.0
    %926 = vmatprep.subr.mxu0 0.0
    %927 = vmatpush1.msra.mxu0 0.0
    %928 = vmatprep.subr.mxu0 0.0
    %929 = vmatpush1.msra.mxu0 0.0
    %930 = vmatprep.subr.mxu0 0.0
    %931 = vmatpush1.msra.mxu0 0.0
    %932 = vmatprep.subr.mxu0 0.0
    %933 = vmatpush1.msra.mxu0 0.0
    %934 = vmatprep.subr.mxu0 0.0
    %935 = vmatpush1.msra.mxu0 0.0
    %936 = vmatprep.subr.mxu0 0.0
    %937 = vmatpush1.msra.mxu0 0.0
    %938 = vmatprep.subr.mxu0 0.0
    %939 = vmatpush1.msra.mxu0 0.0
    %940 = vmatprep.subr.mxu0 0.0
    %941 = vmatpush1.msra.mxu0 0.0
    %942 = vmatprep.subr.mxu0 0.0
    %943 = vmatpush1.msra.mxu0 0.0
    %944 = vmatprep.subr.mxu0 0.0
    %945 = vmatpush1.msra.mxu0 0.0
    %946 = vmatprep.subr.mxu0 0.0
    %947 = vmatpush1.msra.mxu0 0.0
    %948 = vmatprep.subr.mxu0 0.0
    %949 = vmatpush1.msra.mxu0 0.0
    %950 = vmatprep.subr.mxu0 0.0
    %951 = vmatpush1.msra.mxu0 0.0
    %952 = vmatprep.subr.mxu0 0.0
    %953 = vmatpush1.msra.mxu0 0.0
    %954 = vmatprep.subr.mxu0 0.0
    %955 = vmatpush1.msra.mxu0 0.0
    %956 = vmatprep.subr.mxu0 0.0
    %957 = vmatpush1.msra.mxu0 0.0
    %958 = vmatprep.subr.mxu0 0.0
    %959 = vmatpush1.msra.mxu0 0.0
    %960 = vmatprep.subr.mxu0 0.0
    %961 = vmatpush1.msra.mxu0 0.0
    %962 = vmatprep.subr.mxu0 0.0
    %963 = vmatpush1.msra.mxu0 0.0
    %964 = vmatprep.subr.mxu0 0.0
    %965 = vmatpush1.msra.mxu0 0.0
    %966 = vmatprep.subr.mxu0 0.0
    %967 = vmatpush1.msra.mxu0 0.0
    %968 = vmatprep.subr.mxu0 0.0
    %969 = vmatpush1.msra.mxu0 0.0
    %970 = vmatprep.subr.mxu0 0.0
    %971 = vmatpush1.msra.mxu0 0.0
    %972 = vmatprep.subr.mxu0 0.0
    %973 = vmatpush1.msra.mxu0 0.0
    %974 = vmatprep.mubr.f32.mxu0 0.0
    %975 = vmatmul.mubr.f32.gmra.mrb[0].mxu0 %v859
    %v976 = vpop.f32.mrb[0].mxu0
    %v977 = vadd.f32 %v855, %v976
    %v978 = vpop.f32.mrb[0].mxu0
    %979 = vmatprep.mubr.f32.mxu0 0.0
    %980 = vmatmul.mubr.f32.gmra.mrb[0].mxu0 %v862
    %v981 = vpop.f32.mrb[0].mxu0
    %v982 = vadd.f32 %v855, %v981
    %v983 = vpop.f32.mrb[0].mxu0
    %984 = vmatprep.mubr.f32.mxu0 0.0
    %985 = vmatmul.mubr.f32.gmra.mrb[0].mxu0 %v865
    %v986 = vpop.f32.mrb[0].mxu0
    %v987 = vadd.f32 %v855, %v986
    %v988 = vpop.f32.mrb[0].mxu0
    %989 = vmatprep.mubr.f32.mxu0 0.0
    %990 = vmatmul.mubr.f32.gmra.mrb[0].mxu0 %v868
    %v991 = vpop.f32.mrb[0].mxu0
    %v992 = vadd.f32 %v855, %v991
    %v993 = vpop.f32.mrb[0].mxu0
    %994 = vmatprep.mubr.f32.mxu0 0.0
    %995 = vmatmul.mubr.f32.gmra.mrb[0].mxu0 %v871
    %v996 = vpop.f32.mrb[0].mxu0
    %v997 = vadd.f32 %v855, %v996
    %v998 = vpop.f32.mrb[0].mxu0
    %999 = vmatprep.mubr.f32.mxu0 0.0
    %1000 = vmatmul.mubr.f32.gmra.mrb[0].mxu0 %v874
    %v1001 = vpop.f32.mrb[0].mxu0
    %v1002 = vadd.f32 %v855, %v1001
    %v1003 = vpop.f32.mrb[0].mxu0
    %1004 = vmatprep.mubr.f32.mxu0 0.0
    %1005 = vmatmul.mubr.f32.gmra.mrb[0].mxu0 %v877
    %v1006 = vpop.f32.mrb[0].mxu0
    %v1007 = vadd.f32 %v855, %v1006
    %v1008 = vpop.f32.mrb[0].mxu0
    %1009 = vmatprep.mubr.f32.mxu0 0.0
    %1010 = vmatmul.mubr.f32.gmra.mrb[0].mxu0 %v880
    %v1011 = vpop.f32.mrb[0].mxu0
    %v1012 = vadd.f32 %v855, %v1011
    %v1013 = vpop.f32.mrb[0].mxu0
    %1014 = vmatprep.mubr.f32.mxu0 0.0
    %1015 = vmatmul.mubr.f32.gmra.mrb[0].mxu0 %v883
    %v1016 = vpop.f32.mrb[0].mxu0
    %v1017 = vadd.f32 %v855, %v1016
    %v1018 = vpop.f32.mrb[0].mxu0
    %1019 = vmatprep.mubr.f32.mxu0 0.0
    %1020 = vmatmul.mubr.f32.gmra.mrb[0].mxu0 %v886
    %v1021 = vpop.f32.mrb[0].mxu0
    %v1022 = vadd.f32 %v855, %v1021
    %v1023 = vpop.f32.mrb[0].mxu0
    %1024 = vmatprep.mubr.f32.mxu0 0.0
    %1025 = vmatmul.mubr.f32.gmra.mrb[0].mxu0 %v889
    %v1026 = vpop.f32.mrb[0].mxu0
    %v1027 = vadd.f32 %v855, %v1026
    %v1028 = vpop.f32.mrb[0].mxu0
    %1029 = vmatprep.mubr.f32.mxu0 0.0
    %1030 = vmatmul.mubr.f32.gmra.mrb[0].mxu0 %v892
    %v1031 = vpop.f32.mrb[0].mxu0
    %v1032 = vadd.f32 %v855, %v1031
    %v1033 = vpop.f32.mrb[0].mxu0
    %1034 = vmatprep.mubr.f32.mxu0 0.0
    %1035 = vmatmul.mubr.f32.gmra.mrb[0].mxu0 %v895
    %v1036 = vpop.f32.mrb[0].mxu0
    %v1037 = vadd.f32 %v855, %v1036
    %v1038 = vpop.f32.mrb[0].mxu0
    %1039 = vmatprep.mubr.f32.mxu0 0.0
    %1040 = vmatmul.mubr.f32.gmra.mrb[0].mxu0 %v898
    %v1041 = vpop.f32.mrb[0].mxu0
    %v1042 = vadd.f32 %v855, %v1041
    %v1043 = vpop.f32.mrb[0].mxu0
    %1044 = vmatprep.mubr.f32.mxu0 0.0
    %1045 = vmatmul.mubr.f32.gmra.mrb[0].mxu0 %v901
    %v1046 = vpop.f32.mrb[0].mxu0
    %v1047 = vadd.f32 %v855, %v1046
    %v1048 = vpop.f32.mrb[0].mxu0
    %1049 = vmatprep.mubr.f32.mxu0 0.0
    %1050 = vmatmul.mubr.f32.gmra.mrb[0].mxu0 %v904
    %v1051 = vpop.f32.mrb[0].mxu0
    %v1052 = vadd.f32 %v855, %v1051
    %v1053 = vpop.f32.mrb[0].mxu0
    %1054 = vdwg.mxu0
    %v1055 = vmax.f32 %v977, 0.0
    %v1056 = vmax.f32 %v982, 0.0
    %v1057 = vmax.f32 %v987, 0.0
    %v1058 = vmax.f32 %v992, 0.0
    %v1059 = vmax.f32 %v997, 0.0
    %v1060 = vmax.f32 %v1002, 0.0
    %v1061 = vmax.f32 %v1007, 0.0
    %v1062 = vmax.f32 %v1012, 0.0
    %v1063 = vmax.f32 %v1017, 0.0
    %v1064 = vmax.f32 %v1022, 0.0
    %v1065 = vmax.f32 %v1027, 0.0
    %v1066 = vmax.f32 %v1032, 0.0
    %v1067 = vmax.f32 %v1037, 0.0
    %v1068 = vmax.f32 %v1042, 0.0
    %v1069 = vmax.f32 %v1047, 0.0
    %v1070 = vmax.f32 %v1052, 0.0
    %v1071 = vld [vmem:[#allocation7] sm:$0xff]
    %v1072 = vld [vmem:[#allocation7 + $0x8] sm:$0xff]
    %v1073 = vld [vmem:[#allocation7 + $0x10] sm:$0xff]
    %v1074 = vld [vmem:[#allocation7 + $0x18] sm:$0xff]
    %v1075 = vld [vmem:[#allocation7 + $0x20] sm:$0xff]
    %v1076 = vld [vmem:[#allocation7 + $0x28] sm:$0xff]
    %v1077 = vld [vmem:[#allocation7 + $0x30] sm:$0xff]
    %v1078 = vld [vmem:[#allocation7 + $0x38] sm:$0xff]
    %v1079 = vld [vmem:[#allocation7 + $0x40] sm:$0xff]
    %v1080 = vld [vmem:[#allocation7 + $0x48] sm:$0xff]
    %v1081 = vld [vmem:[#allocation7 + $0x50] sm:$0xff]
    %v1082 = vld [vmem:[#allocation7 + $0x58] sm:$0xff]
    %v1083 = vld [vmem:[#allocation7 + $0x60] sm:$0xff]
    %v1084 = vld [vmem:[#allocation7 + $0x68] sm:$0xff]
    %v1085 = vld [vmem:[#allocation7 + $0x70] sm:$0xff]
    %v1086 = vld [vmem:[#allocation7 + $0x78] sm:$0xff]
    %v1087 = vld [vmem:[#allocation7 + $0x80] sm:$0xff]
    %v1088 = vld [vmem:[#allocation7 + $0x88] sm:$0xff]
    %v1089 = vld [vmem:[#allocation7 + $0x90] sm:$0xff]
    %v1090 = vld [vmem:[#allocation7 + $0x98] sm:$0xff]
    %v1091 = vld [vmem:[#allocation7 + $0xa0] sm:$0xff]
    %v1092 = vld [vmem:[#allocation7 + $0xa8] sm:$0xff]
    %v1093 = vld [vmem:[#allocation7 + $0xb0] sm:$0xff]
    %v1094 = vld [vmem:[#allocation7 + $0xb8] sm:$0xff]
    %v1095 = vld [vmem:[#allocation7 + $0xc0] sm:$0xff]
    %v1096 = vld [vmem:[#allocation7 + $0xc8] sm:$0xff]
    %v1097 = vld [vmem:[#allocation7 + $0xd0] sm:$0xff]
    %v1098 = vld [vmem:[#allocation7 + $0xd8] sm:$0xff]
    %v1099 = vld [vmem:[#allocation7 + $0xe0] sm:$0xff]
    %v1100 = vld [vmem:[#allocation7 + $0xe8] sm:$0xff]
    %v1101 = vld [vmem:[#allocation7 + $0xf0] sm:$0xff]
    %v1102 = vld [vmem:[#allocation7 + $0xf8] sm:$0xff]
    %v1103 = vld [vmem:[#allocation7 + $0x100] sm:$0xff]
    %v1104 = vld [vmem:[#allocation7 + $0x108] sm:$0xff]
    %v1105 = vld [vmem:[#allocation7 + $0x110] sm:$0xff]
    %v1106 = vld [vmem:[#allocation7 + $0x118] sm:$0xff]
    %v1107 = vld [vmem:[#allocation7 + $0x120] sm:$0xff]
    %v1108 = vld [vmem:[#allocation7 + $0x128] sm:$0xff]
    %v1109 = vld [vmem:[#allocation7 + $0x130] sm:$0xff]
    %v1110 = vld [vmem:[#allocation7 + $0x138] sm:$0xff]
    %v1111 = vld [vmem:[#allocation7 + $0x140] sm:$0xff]
    %v1112 = vld [vmem:[#allocation7 + $0x148] sm:$0xff]
    %v1113 = vld [vmem:[#allocation7 + $0x150] sm:$0xff]
    %v1114 = vld [vmem:[#allocation7 + $0x158] sm:$0xff]
    %v1115 = vld [vmem:[#allocation7 + $0x160] sm:$0xff]
    %v1116 = vld [vmem:[#allocation7 + $0x168] sm:$0xff]
    %v1117 = vld [vmem:[#allocation7 + $0x170] sm:$0xff]
    %v1118 = vld [vmem:[#allocation7 + $0x178] sm:$0xff]
    %v1119 = vld [vmem:[#allocation7 + $0x180] sm:$0xff]
    %v1120 = vld [vmem:[#allocation7 + $0x188] sm:$0xff]
    %v1121 = vld [vmem:[#allocation7 + $0x190] sm:$0xff]
    %v1122 = vld [vmem:[#allocation7 + $0x198] sm:$0xff]
    %v1123 = vld [vmem:[#allocation7 + $0x1a0] sm:$0xff]
    %v1124 = vld [vmem:[#allocation7 + $0x1a8] sm:$0xff]
    %v1125 = vld [vmem:[#allocation7 + $0x1b0] sm:$0xff]
    %v1126 = vld [vmem:[#allocation7 + $0x1b8] sm:$0xff]
    %v1127 = vld [vmem:[#allocation7 + $0x1c0] sm:$0xff]
    %v1128 = vld [vmem:[#allocation7 + $0x1c8] sm:$0xff]
    %v1129 = vld [vmem:[#allocation7 + $0x1d0] sm:$0xff]
    %v1130 = vld [vmem:[#allocation7 + $0x1d8] sm:$0xff]
    %v1131 = vld [vmem:[#allocation7 + $0x1e0] sm:$0xff]
    %v1132 = vld [vmem:[#allocation7 + $0x1e8] sm:$0xff]
    %v1133 = vld [vmem:[#allocation7 + $0x1f0] sm:$0xff]
    %v1134 = vld [vmem:[#allocation7 + $0x1f8] sm:$0xff]
    %v1135 = vld [vmem:[#allocation7 + $0x200] sm:$0xff]
    %v1136 = vld [vmem:[#allocation7 + $0x208] sm:$0xff]
    %v1137 = vld [vmem:[#allocation7 + $0x210] sm:$0xff]
    %v1138 = vld [vmem:[#allocation7 + $0x218] sm:$0xff]
    %v1139 = vld [vmem:[#allocation7 + $0x220] sm:$0xff]
    %v1140 = vld [vmem:[#allocation7 + $0x228] sm:$0xff]
    %v1141 = vld [vmem:[#allocation7 + $0x230] sm:$0xff]
    %v1142 = vld [vmem:[#allocation7 + $0x238] sm:$0xff]
    %v1143 = vld [vmem:[#allocation7 + $0x240] sm:$0xff]
    %v1144 = vld [vmem:[#allocation7 + $0x248] sm:$0xff]
    %v1145 = vld [vmem:[#allocation7 + $0x250] sm:$0xff]
    %v1146 = vld [vmem:[#allocation7 + $0x258] sm:$0xff]
    %v1147 = vld [vmem:[#allocation7 + $0x260] sm:$0xff]
    %v1148 = vld [vmem:[#allocation7 + $0x268] sm:$0xff]
    %v1149 = vld [vmem:[#allocation7 + $0x270] sm:$0xff]
    %v1150 = vld [vmem:[#allocation7 + $0x278] sm:$0xff]
    %v1151 = vld [vmem:[#allocation7 + $0x280] sm:$0xff]
    %v1152 = vld [vmem:[#allocation7 + $0x288] sm:$0xff]
    %v1153 = vld [vmem:[#allocation7 + $0x290] sm:$0xff]
    %v1154 = vld [vmem:[#allocation7 + $0x298] sm:$0xff]
    %v1155 = vld [vmem:[#allocation7 + $0x2a0] sm:$0xff]
    %v1156 = vld [vmem:[#allocation7 + $0x2a8] sm:$0xff]
    %v1157 = vld [vmem:[#allocation7 + $0x2b0] sm:$0xff]
    %v1158 = vld [vmem:[#allocation7 + $0x2b8] sm:$0xff]
    %v1159 = vld [vmem:[#allocation7 + $0x2c0] sm:$0xff]
    %v1160 = vld [vmem:[#allocation7 + $0x2c8] sm:$0xff]
    %v1161 = vld [vmem:[#allocation7 + $0x2d0] sm:$0xff]
    %v1162 = vld [vmem:[#allocation7 + $0x2d8] sm:$0xff]
    %v1163 = vld [vmem:[#allocation7 + $0x2e0] sm:$0xff]
    %v1164 = vld [vmem:[#allocation7 + $0x2e8] sm:$0xff]
    %v1165 = vld [vmem:[#allocation7 + $0x2f0] sm:$0xff]
    %v1166 = vld [vmem:[#allocation7 + $0x2f8] sm:$0xff]
    %v1167 = vld [vmem:[#allocation7 + $0x300] sm:$0xff]
    %v1168 = vld [vmem:[#allocation7 + $0x308] sm:$0xff]
    %v1169 = vld [vmem:[#allocation7 + $0x310] sm:$0xff]
    %v1170 = vld [vmem:[#allocation7 + $0x318] sm:$0xff]
    %v1171 = vld [vmem:[#allocation7 + $0x320] sm:$0xff]
    %v1172 = vld [vmem:[#allocation7 + $0x328] sm:$0xff]
    %v1173 = vld [vmem:[#allocation7 + $0x330] sm:$0xff]
    %v1174 = vld [vmem:[#allocation7 + $0x338] sm:$0xff]
    %v1175 = vld [vmem:[#allocation7 + $0x340] sm:$0xff]
    %v1176 = vld [vmem:[#allocation7 + $0x348] sm:$0xff]
    %v1177 = vld [vmem:[#allocation7 + $0x350] sm:$0xff]
    %v1178 = vld [vmem:[#allocation7 + $0x358] sm:$0xff]
    %v1179 = vld [vmem:[#allocation7 + $0x360] sm:$0xff]
    %v1180 = vld [vmem:[#allocation7 + $0x368] sm:$0xff]
    %v1181 = vld [vmem:[#allocation7 + $0x370] sm:$0xff]
    %v1182 = vld [vmem:[#allocation7 + $0x378] sm:$0xff]
    %v1183 = vld [vmem:[#allocation7 + $0x380] sm:$0xff]
    %v1184 = vld [vmem:[#allocation7 + $0x388] sm:$0xff]
    %v1185 = vld [vmem:[#allocation7 + $0x390] sm:$0xff]
    %v1186 = vld [vmem:[#allocation7 + $0x398] sm:$0xff]
    %v1187 = vld [vmem:[#allocation7 + $0x3a0] sm:$0xff]
    %v1188 = vld [vmem:[#allocation7 + $0x3a8] sm:$0xff]
    %v1189 = vld [vmem:[#allocation7 + $0x3b0] sm:$0xff]
    %v1190 = vld [vmem:[#allocation7 + $0x3b8] sm:$0xff]
    %v1191 = vld [vmem:[#allocation7 + $0x3c0] sm:$0xff]
    %v1192 = vld [vmem:[#allocation7 + $0x3c8] sm:$0xff]
    %v1193 = vld [vmem:[#allocation7 + $0x3d0] sm:$0xff]
    %v1194 = vld [vmem:[#allocation7 + $0x3d8] sm:$0xff]
    %v1195 = vld [vmem:[#allocation7 + $0x3e0] sm:$0xff]
    %v1196 = vld [vmem:[#allocation7 + $0x3e8] sm:$0xff]
    %v1197 = vld [vmem:[#allocation7 + $0x3f0] sm:$0xff]
    %v1198 = vld [vmem:[#allocation7 + $0x3f8] sm:$0xff]
    %v1199 = vld [vmem:[#allocation7 + $0x400] sm:$0xff]
    %v1200 = vld [vmem:[#allocation7 + $0x408] sm:$0xff]
    %v1201 = vld [vmem:[#allocation7 + $0x410] sm:$0xff]
    %v1202 = vld [vmem:[#allocation7 + $0x418] sm:$0xff]
    %v1203 = vld [vmem:[#allocation7 + $0x420] sm:$0xff]
    %v1204 = vld [vmem:[#allocation7 + $0x428] sm:$0xff]
    %v1205 = vld [vmem:[#allocation7 + $0x430] sm:$0xff]
    %v1206 = vld [vmem:[#allocation7 + $0x438] sm:$0xff]
    %v1207 = vld [vmem:[#allocation7 + $0x440] sm:$0xff]
    %v1208 = vld [vmem:[#allocation7 + $0x448] sm:$0xff]
    %v1209 = vld [vmem:[#allocation7 + $0x450] sm:$0xff]
    %v1210 = vld [vmem:[#allocation7 + $0x458] sm:$0xff]
    %v1211 = vld [vmem:[#allocation7 + $0x460] sm:$0xff]
    %v1212 = vld [vmem:[#allocation7 + $0x468] sm:$0xff]
    %v1213 = vld [vmem:[#allocation7 + $0x470] sm:$0xff]
    %v1214 = vld [vmem:[#allocation7 + $0x478] sm:$0xff]
    %v1215 = vld [vmem:[#allocation7 + $0x480] sm:$0xff]
    %v1216 = vld [vmem:[#allocation7 + $0x488] sm:$0xff]
    %v1217 = vld [vmem:[#allocation7 + $0x490] sm:$0xff]
    %v1218 = vld [vmem:[#allocation7 + $0x498] sm:$0xff]
    %v1219 = vld [vmem:[#allocation7 + $0x4a0] sm:$0xff]
    %v1220 = vld [vmem:[#allocation7 + $0x4a8] sm:$0xff]
    %v1221 = vld [vmem:[#allocation7 + $0x4b0] sm:$0xff]
    %v1222 = vld [vmem:[#allocation7 + $0x4b8] sm:$0xff]
    %v1223 = vld [vmem:[#allocation7 + $0x4c0] sm:$0xff]
    %v1224 = vld [vmem:[#allocation7 + $0x4c8] sm:$0xff]
    %v1225 = vld [vmem:[#allocation7 + $0x4d0] sm:$0xff]
    %v1226 = vld [vmem:[#allocation7 + $0x4d8] sm:$0xff]
    %v1227 = vld [vmem:[#allocation7 + $0x4e0] sm:$0xff]
    %v1228 = vld [vmem:[#allocation7 + $0x4e8] sm:$0xff]
    %v1229 = vld [vmem:[#allocation7 + $0x4f0] sm:$0xff]
    %v1230 = vld [vmem:[#allocation7 + $0x4f8] sm:$0xff]
    %v1231 = vld [vmem:[#allocation7 + $0x500] sm:$0xff]
    %v1232 = vld [vmem:[#allocation7 + $0x508] sm:$0xff]
    %v1233 = vld [vmem:[#allocation7 + $0x510] sm:$0xff]
    %v1234 = vld [vmem:[#allocation7 + $0x518] sm:$0xff]
    %v1235 = vld [vmem:[#allocation7 + $0x520] sm:$0xff]
    %v1236 = vld [vmem:[#allocation7 + $0x528] sm:$0xff]
    %v1237 = vld [vmem:[#allocation7 + $0x530] sm:$0xff]
    %v1238 = vld [vmem:[#allocation7 + $0x538] sm:$0xff]
    %v1239 = vld [vmem:[#allocation7 + $0x540] sm:$0xff]
    %v1240 = vld [vmem:[#allocation7 + $0x548] sm:$0xff]
    %v1241 = vld [vmem:[#allocation7 + $0x550] sm:$0xff]
    %v1242 = vld [vmem:[#allocation7 + $0x558] sm:$0xff]
    %v1243 = vld [vmem:[#allocation7 + $0x560] sm:$0xff]
    %v1244 = vld [vmem:[#allocation7 + $0x568] sm:$0xff]
    %v1245 = vld [vmem:[#allocation7 + $0x570] sm:$0xff]
    %v1246 = vld [vmem:[#allocation7 + $0x578] sm:$0xff]
    %v1247 = vld [vmem:[#allocation7 + $0x580] sm:$0xff]
    %v1248 = vld [vmem:[#allocation7 + $0x588] sm:$0xff]
    %v1249 = vld [vmem:[#allocation7 + $0x590] sm:$0xff]
    %v1250 = vld [vmem:[#allocation7 + $0x598] sm:$0xff]
    %v1251 = vld [vmem:[#allocation7 + $0x5a0] sm:$0xff]
    %v1252 = vld [vmem:[#allocation7 + $0x5a8] sm:$0xff]
    %v1253 = vld [vmem:[#allocation7 + $0x5b0] sm:$0xff]
    %v1254 = vld [vmem:[#allocation7 + $0x5b8] sm:$0xff]
    %v1255 = vld [vmem:[#allocation7 + $0x5c0] sm:$0xff]
    %v1256 = vld [vmem:[#allocation7 + $0x5c8] sm:$0xff]
    %v1257 = vld [vmem:[#allocation7 + $0x5d0] sm:$0xff]
    %v1258 = vld [vmem:[#allocation7 + $0x5d8] sm:$0xff]
    %v1259 = vld [vmem:[#allocation7 + $0x5e0] sm:$0xff]
    %v1260 = vld [vmem:[#allocation7 + $0x5e8] sm:$0xff]
    %v1261 = vld [vmem:[#allocation7 + $0x5f0] sm:$0xff]
    %v1262 = vld [vmem:[#allocation7 + $0x5f8] sm:$0xff]
    %v1263 = vld [vmem:[#allocation7 + $0x600] sm:$0xff]
    %v1264 = vld [vmem:[#allocation7 + $0x608] sm:$0xff]
    %v1265 = vld [vmem:[#allocation7 + $0x610] sm:$0xff]
    %v1266 = vld [vmem:[#allocation7 + $0x618] sm:$0xff]
    %v1267 = vld [vmem:[#allocation7 + $0x620] sm:$0xff]
    %v1268 = vld [vmem:[#allocation7 + $0x628] sm:$0xff]
    %v1269 = vld [vmem:[#allocation7 + $0x630] sm:$0xff]
    %v1270 = vld [vmem:[#allocation7 + $0x638] sm:$0xff]
    %v1271 = vld [vmem:[#allocation7 + $0x640] sm:$0xff]
    %v1272 = vld [vmem:[#allocation7 + $0x648] sm:$0xff]
    %v1273 = vld [vmem:[#allocation7 + $0x650] sm:$0xff]
    %v1274 = vld [vmem:[#allocation7 + $0x658] sm:$0xff]
    %v1275 = vld [vmem:[#allocation7 + $0x660] sm:$0xff]
    %v1276 = vld [vmem:[#allocation7 + $0x668] sm:$0xff]
    %v1277 = vld [vmem:[#allocation7 + $0x670] sm:$0xff]
    %v1278 = vld [vmem:[#allocation7 + $0x678] sm:$0xff]
    %v1279 = vld [vmem:[#allocation7 + $0x680] sm:$0xff]
    %v1280 = vld [vmem:[#allocation7 + $0x688] sm:$0xff]
    %v1281 = vld [vmem:[#allocation7 + $0x690] sm:$0xff]
    %v1282 = vld [vmem:[#allocation7 + $0x698] sm:$0xff]
    %v1283 = vld [vmem:[#allocation7 + $0x6a0] sm:$0xff]
    %v1284 = vld [vmem:[#allocation7 + $0x6a8] sm:$0xff]
    %v1285 = vld [vmem:[#allocation7 + $0x6b0] sm:$0xff]
    %v1286 = vld [vmem:[#allocation7 + $0x6b8] sm:$0xff]
    %v1287 = vld [vmem:[#allocation7 + $0x6c0] sm:$0xff]
    %v1288 = vld [vmem:[#allocation7 + $0x6c8] sm:$0xff]
    %v1289 = vld [vmem:[#allocation7 + $0x6d0] sm:$0xff]
    %v1290 = vld [vmem:[#allocation7 + $0x6d8] sm:$0xff]
    %v1291 = vld [vmem:[#allocation7 + $0x6e0] sm:$0xff]
    %v1292 = vld [vmem:[#allocation7 + $0x6e8] sm:$0xff]
    %v1293 = vld [vmem:[#allocation7 + $0x6f0] sm:$0xff]
    %v1294 = vld [vmem:[#allocation7 + $0x6f8] sm:$0xff]
    %v1295 = vld [vmem:[#allocation7 + $0x700] sm:$0xff]
    %v1296 = vld [vmem:[#allocation7 + $0x708] sm:$0xff]
    %v1297 = vld [vmem:[#allocation7 + $0x710] sm:$0xff]
    %v1298 = vld [vmem:[#allocation7 + $0x718] sm:$0xff]
    %v1299 = vld [vmem:[#allocation7 + $0x720] sm:$0xff]
    %v1300 = vld [vmem:[#allocation7 + $0x728] sm:$0xff]
    %v1301 = vld [vmem:[#allocation7 + $0x730] sm:$0xff]
    %v1302 = vld [vmem:[#allocation7 + $0x738] sm:$0xff]
    %v1303 = vld [vmem:[#allocation7 + $0x740] sm:$0xff]
    %v1304 = vld [vmem:[#allocation7 + $0x748] sm:$0xff]
    %v1305 = vld [vmem:[#allocation7 + $0x750] sm:$0xff]
    %v1306 = vld [vmem:[#allocation7 + $0x758] sm:$0xff]
    %v1307 = vld [vmem:[#allocation7 + $0x760] sm:$0xff]
    %v1308 = vld [vmem:[#allocation7 + $0x768] sm:$0xff]
    %v1309 = vld [vmem:[#allocation7 + $0x770] sm:$0xff]
    %v1310 = vld [vmem:[#allocation7 + $0x778] sm:$0xff]
    %v1311 = vld [vmem:[#allocation7 + $0x780] sm:$0xff]
    %v1312 = vld [vmem:[#allocation7 + $0x788] sm:$0xff]
    %v1313 = vld [vmem:[#allocation7 + $0x790] sm:$0xff]
    %v1314 = vld [vmem:[#allocation7 + $0x798] sm:$0xff]
    %v1315 = vld [vmem:[#allocation7 + $0x7a0] sm:$0xff]
    %v1316 = vld [vmem:[#allocation7 + $0x7a8] sm:$0xff]
    %v1317 = vld [vmem:[#allocation7 + $0x7b0] sm:$0xff]
    %v1318 = vld [vmem:[#allocation7 + $0x7b8] sm:$0xff]
    %v1319 = vld [vmem:[#allocation7 + $0x7c0] sm:$0xff]
    %v1320 = vld [vmem:[#allocation7 + $0x7c8] sm:$0xff]
    %v1321 = vld [vmem:[#allocation7 + $0x7d0] sm:$0xff]
    %v1322 = vld [vmem:[#allocation7 + $0x7d8] sm:$0xff]
    %v1323 = vld [vmem:[#allocation7 + $0x7e0] sm:$0xff]
    %v1324 = vld [vmem:[#allocation7 + $0x7e8] sm:$0xff]
    %v1325 = vld [vmem:[#allocation7 + $0x7f0] sm:$0xff]
    %v1326 = vld [vmem:[#allocation7 + $0x7f8] sm:$0xff]
    %v1327 = vld [vmem:[#allocation7 + $0x800] sm:$0xff]
    %v1328 = vld [vmem:[#allocation7 + $0x808] sm:$0xff]
    %v1329 = vld [vmem:[#allocation7 + $0x810] sm:$0xff]
    %v1330 = vld [vmem:[#allocation7 + $0x818] sm:$0xff]
    %v1331 = vld [vmem:[#allocation7 + $0x820] sm:$0xff]
    %v1332 = vld [vmem:[#allocation7 + $0x828] sm:$0xff]
    %v1333 = vld [vmem:[#allocation7 + $0x830] sm:$0xff]
    %v1334 = vld [vmem:[#allocation7 + $0x838] sm:$0xff]
    %v1335 = vld [vmem:[#allocation7 + $0x840] sm:$0xff]
    %v1336 = vld [vmem:[#allocation7 + $0x848] sm:$0xff]
    %v1337 = vld [vmem:[#allocation7 + $0x850] sm:$0xff]
    %v1338 = vld [vmem:[#allocation7 + $0x858] sm:$0xff]
    %v1339 = vld [vmem:[#allocation7 + $0x860] sm:$0xff]
    %v1340 = vld [vmem:[#allocation7 + $0x868] sm:$0xff]
    %v1341 = vld [vmem:[#allocation7 + $0x870] sm:$0xff]
    %v1342 = vld [vmem:[#allocation7 + $0x878] sm:$0xff]
    %v1343 = vld [vmem:[#allocation7 + $0x880] sm:$0xff]
    %v1344 = vld [vmem:[#allocation7 + $0x888] sm:$0xff]
    %v1345 = vld [vmem:[#allocation7 + $0x890] sm:$0xff]
    %v1346 = vld [vmem:[#allocation7 + $0x898] sm:$0xff]
    %v1347 = vld [vmem:[#allocation7 + $0x8a0] sm:$0xff]
    %v1348 = vld [vmem:[#allocation7 + $0x8a8] sm:$0xff]
    %v1349 = vld [vmem:[#allocation7 + $0x8b0] sm:$0xff]
    %v1350 = vld [vmem:[#allocation7 + $0x8b8] sm:$0xff]
    %v1351 = vld [vmem:[#allocation7 + $0x8c0] sm:$0xff]
    %v1352 = vld [vmem:[#allocation7 + $0x8c8] sm:$0xff]
    %v1353 = vld [vmem:[#allocation7 + $0x8d0] sm:$0xff]
    %v1354 = vld [vmem:[#allocation7 + $0x8d8] sm:$0xff]
    %v1355 = vld [vmem:[#allocation7 + $0x8e0] sm:$0xff]
    %v1356 = vld [vmem:[#allocation7 + $0x8e8] sm:$0xff]
    %v1357 = vld [vmem:[#allocation7 + $0x8f0] sm:$0xff]
    %v1358 = vld [vmem:[#allocation7 + $0x8f8] sm:$0xff]
    %v1359 = vld [vmem:[#allocation9] sm:$0x3]
    %v1361 = vlaneseq
    %v1362 = vshrl.u32 %v1361, 7
    %v1363 = vsub.s32 0, %v1362
    %v1364 = vrot.slane %v1359, %v1363
    %v1365 = vlaneseq
    %v1366 = vshrl.u32 %v1365, 7
    %v1367 = vsub.s32 1, %v1366
    %v1368 = vrot.slane %v1359, %v1367
    %1371 = vmatprep.subr.mxu0 %v1072
    %1372 = vmatpush1.msra.mxu0 %v1071
    %1373 = vmatprep.subr.mxu0 %v1074
    %1374 = vmatpush1.msra.mxu0 %v1073
    %1375 = vmatprep.subr.mxu0 %v1076
    %1376 = vmatpush1.msra.mxu0 %v1075
    %1377 = vmatprep.subr.mxu0 %v1078
    %1378 = vmatpush1.msra.mxu0 %v1077
    %1379 = vmatprep.subr.mxu0 %v1080
    %1380 = vmatpush1.msra.mxu0 %v1079
    %1381 = vmatprep.subr.mxu0 %v1082
    %1382 = vmatpush1.msra.mxu0 %v1081
    %1383 = vmatprep.subr.mxu0 %v1084
    %1384 = vmatpush1.msra.mxu0 %v1083
    %1385 = vmatprep.subr.mxu0 %v1086
    %1386 = vmatpush1.msra.mxu0 %v1085
    %1387 = vmatprep.subr.mxu0 %v1088
    %1388 = vmatpush1.msra.mxu0 %v1087
    %1389 = vmatprep.subr.mxu0 %v1090
    %1390 = vmatpush1.msra.mxu0 %v1089
    %1391 = vmatprep.subr.mxu0 %v1092
    %1392 = vmatpush1.msra.mxu0 %v1091
    %1393 = vmatprep.subr.mxu0 %v1094
    %1394 = vmatpush1.msra.mxu0 %v1093
    %1395 = vmatprep.subr.mxu0 %v1096
    %1396 = vmatpush1.msra.mxu0 %v1095
    %1397 = vmatprep.subr.mxu0 %v1098
    %1398 = vmatpush1.msra.mxu0 %v1097
    %1399 = vmatprep.subr.mxu0 %v1100
    %1400 = vmatpush1.msra.mxu0 %v1099
    %1401 = vmatprep.subr.mxu0 %v1102
    %1402 = vmatpush1.msra.mxu0 %v1101
    %1403 = vmatprep.subr.mxu0 %v1104
    %1404 = vmatpush1.msra.mxu0 %v1103
    %1405 = vmatprep.subr.mxu0 %v1106
    %1406 = vmatpush1.msra.mxu0 %v1105
    %1407 = vmatprep.subr.mxu0 %v1108
    %1408 = vmatpush1.msra.mxu0 %v1107
    %1409 = vmatprep.subr.mxu0 %v1110
    %1410 = vmatpush1.msra.mxu0 %v1109
    %1411 = vmatprep.subr.mxu0 %v1112
    %1412 = vmatpush1.msra.mxu0 %v1111
    %1413 = vmatprep.subr.mxu0 %v1114
    %1414 = vmatpush1.msra.mxu0 %v1113
    %1415 = vmatprep.subr.mxu0 %v1116
    %1416 = vmatpush1.msra.mxu0 %v1115
    %1417 = vmatprep.subr.mxu0 %v1118
    %1418 = vmatpush1.msra.mxu0 %v1117
    %1419 = vmatprep.subr.mxu0 %v1120
    %1420 = vmatpush1.msra.mxu0 %v1119
    %1421 = vmatprep.subr.mxu0 %v1122
    %1422 = vmatpush1.msra.mxu0 %v1121
    %1423 = vmatprep.subr.mxu0 %v1124
    %1424 = vmatpush1.msra.mxu0 %v1123
    %1425 = vmatprep.subr.mxu0 %v1126
    %1426 = vmatpush1.msra.mxu0 %v1125
    %1427 = vmatprep.subr.mxu0 %v1128
    %1428 = vmatpush1.msra.mxu0 %v1127
    %1429 = vmatprep.subr.mxu0 %v1130
    %1430 = vmatpush1.msra.mxu0 %v1129
    %1431 = vmatprep.subr.mxu0 %v1132
    %1432 = vmatpush1.msra.mxu0 %v1131
    %1433 = vmatprep.subr.mxu0 %v1134
    %1434 = vmatpush1.msra.mxu0 %v1133
    %1435 = vmatprep.mubr.f32.mxu0 0.0
    %1436 = vmatmul.mubr.f32.gmra.mrb[0].mxu0 0.0
    %v1437 = vpop.f32.mrb[0].mxu0
    %v1438 = vadd.f32 %v1364, %v1437
    %v1439 = vpop.f32.mrb[0].mxu0
    %v1440 = vadd.f32 %v1368, %v1439
    %1441 = vmatprep.mubr.f32.mxu0 0.0
    %1442 = vmatmul.mubr.f32.gmra.mrb[0].mxu0 0.0
    %v1443 = vpop.f32.mrb[0].mxu0
    %v1444 = vadd.f32 %v1364, %v1443
    %v1445 = vpop.f32.mrb[0].mxu0
    %v1446 = vadd.f32 %v1368, %v1445
    %1447 = vmatprep.mubr.f32.mxu0 %v1059
    %1448 = vmatmul.mubr.f32.gmra.mrb[0].mxu0 0.0
    %v1449 = vpop.f32.mrb[0].mxu0
    %v1450 = vadd.f32 %v1364, %v1449
    %v1451 = vpop.f32.mrb[0].mxu0
    %v1452 = vadd.f32 %v1368, %v1451
    %1453 = vmatprep.mubr.f32.mxu0 %v1061
    %1454 = vmatmul.mubr.f32.gmra.mrb[0].mxu0 %v1060
    %v1455 = vpop.f32.mrb[0].mxu0
    %v1456 = vadd.f32 %v1364, %v1455
    %v1457 = vpop.f32.mrb[0].mxu0
    %v1458 = vadd.f32 %v1368, %v1457
    %1459 = vdwg.mxu0
    %1460 = vmatprep.subr.mxu0 %v1136
    %1461 = vmatpush1.msra.mxu0 %v1135
    %1462 = vmatprep.subr.mxu0 %v1138
    %1463 = vmatpush1.msra.mxu0 %v1137
    %1464 = vmatprep.subr.mxu0 %v1140
    %1465 = vmatpush1.msra.mxu0 %v1139
    %1466 = vmatprep.subr.mxu0 %v1142
    %1467 = vmatpush1.msra.mxu0 %v1141
    %1468 = vmatprep.subr.mxu0 %v1144
    %1469 = vmatpush1.msra.mxu0 %v1143
    %1470 = vmatprep.subr.mxu0 %v1146
    %1471 = vmatpush1.msra.mxu0 %v1145
    %1472 = vmatprep.subr.mxu0 %v1148
    %1473 = vmatpush1.msra.mxu0 %v1147
    %1474 = vmatprep.subr.mxu0 %v1150
    %1475 = vmatpush1.msra.mxu0 %v1149
    %1476 = vmatprep.subr.mxu0 %v1152
    %1477 = vmatpush1.msra.mxu0 %v1151
    %1478 = vmatprep.subr.mxu0 %v1154
    %1479 = vmatpush1.msra.mxu0 %v1153
    %1480 = vmatprep.subr.mxu0 %v1156
    %1481 = vmatpush1.msra.mxu0 %v1155
    %1482 = vmatprep.subr.mxu0 %v1158
    %1483 = vmatpush1.msra.mxu0 %v1157
    %1484 = vmatprep.subr.mxu0 %v1160
    %1485 = vmatpush1.msra.mxu0 %v1159
    %1486 = vmatprep.subr.mxu0 %v1162
    %1487 = vmatpush1.msra.mxu0 %v1161
    %1488 = vmatprep.subr.mxu0 %v1164
    %1489 = vmatpush1.msra.mxu0 %v1163
    %1490 = vmatprep.subr.mxu0 %v1166
    %1491 = vmatpush1.msra.mxu0 %v1165
    %1492 = vmatprep.subr.mxu0 %v1168
    %1493 = vmatpush1.msra.mxu0 %v1167
    %1494 = vmatprep.subr.mxu0 %v1170
    %1495 = vmatpush1.msra.mxu0 %v1169
    %1496 = vmatprep.subr.mxu0 %v1172
    %1497 = vmatpush1.msra.mxu0 %v1171
    %1498 = vmatprep.subr.mxu0 %v1174
    %1499 = vmatpush1.msra.mxu0 %v1173
    %1500 = vmatprep.subr.mxu0 %v1176
    %1501 = vmatpush1.msra.mxu0 %v1175
    %1502 = vmatprep.subr.mxu0 %v1178
    %1503 = vmatpush1.msra.mxu0 %v1177
    %1504 = vmatprep.subr.mxu0 %v1180
    %1505 = vmatpush1.msra.mxu0 %v1179
    %1506 = vmatprep.subr.mxu0 %v1182
    %1507 = vmatpush1.msra.mxu0 %v1181
    %1508 = vmatprep.subr.mxu0 %v1184
    %1509 = vmatpush1.msra.mxu0 %v1183
    %1510 = vmatprep.subr.mxu0 %v1186
    %1511 = vmatpush1.msra.mxu0 %v1185
    %1512 = vmatprep.subr.mxu0 %v1188
    %1513 = vmatpush1.msra.mxu0 %v1187
    %1514 = vmatprep.subr.mxu0 %v1190
    %1515 = vmatpush1.msra.mxu0 %v1189
    %1516 = vmatprep.subr.mxu0 %v1192
    %1517 = vmatpush1.msra.mxu0 %v1191
    %1518 = vmatprep.subr.mxu0 %v1194
    %1519 = vmatpush1.msra.mxu0 %v1193
    %1520 = vmatprep.subr.mxu0 %v1196
    %1521 = vmatpush1.msra.mxu0 %v1195
    %1522 = vmatprep.subr.mxu0 %v1198
    %1523 = vmatpush1.msra.mxu0 %v1197
    %1524 = vmatprep.mubr.f32.mxu0 0.0
    %1525 = vmatmul.mubr.f32.gmra.mrb[0].mxu0 0.0
    %v1526 = vpop.f32.mrb[0].mxu0
    %v1527 = vadd.f32 %v1438, %v1526
    %v1528 = vpop.f32.mrb[0].mxu0
    %v1529 = vadd.f32 %v1440, %v1528
    %1530 = vmatprep.mubr.f32.mxu0 %v1056
    %1531 = vmatmul.mubr.f32.gmra.mrb[0].mxu0 0.0
    %v1532 = vpop.f32.mrb[0].mxu0
    %v1533 = vadd.f32 %v1444, %v1532
    %v1534 = vpop.f32.mrb[0].mxu0
    %v1535 = vadd.f32 %v1446, %v1534
    %1536 = vmatprep.mubr.f32.mxu0 0.0
    %1537 = vmatmul.mubr.f32.gmra.mrb[0].mxu0 %v1060
    %v1538 = vpop.f32.mrb[0].mxu0
    %v1539 = vadd.f32 %v1450, %v1538
    %v1540 = vpop.f32.mrb[0].mxu0
    %v1541 = vadd.f32 %v1452, %v1540
    %1542 = vmatprep.mubr.f32.mxu0 %v1064
    %1543 = vmatmul.mubr.f32.gmra.mrb[0].mxu0 %v1062
    %v1544 = vpop.f32.mrb[0].mxu0
    %v1545 = vadd.f32 %v1456, %v1544
    %v1546 = vpop.f32.mrb[0].mxu0
    %v1547 = vadd.f32 %v1458, %v1546
    %1548 = vdwg.mxu0
    %1549 = vmatprep.subr.mxu0 %v1200
    %1550 = vmatpush1.msra.mxu0 %v1199
    %1551 = vmatprep.subr.mxu0 %v1202
    %1552 = vmatpush1.msra.mxu0 %v1201
    %1553 = vmatprep.subr.mxu0 %v1204
    %1554 = vmatpush1.msra.mxu0 %v1203
    %1555 = vmatprep.subr.mxu0 %v1206
    %1556 = vmatpush1.msra.mxu0 %v1205
    %1557 = vmatprep.subr.mxu0 %v1208
    %1558 = vmatpush1.msra.mxu0 %v1207
    %1559 = vmatprep.subr.mxu0 %v1210
    %1560 = vmatpush1.msra.mxu0 %v1209
    %1561 = vmatprep.subr.mxu0 %v1212
    %1562 = vmatpush1.msra.mxu0 %v1211
    %1563 = vmatprep.subr.mxu0 %v1214
    %1564 = vmatpush1.msra.mxu0 %v1213
    %1565 = vmatprep.subr.mxu0 %v1216
    %1566 = vmatpush1.msra.mxu0 %v1215
    %1567 = vmatprep.subr.mxu0 %v1218
    %1568 = vmatpush1.msra.mxu0 %v1217
    %1569 = vmatprep.subr.mxu0 %v1220
    %1570 = vmatpush1.msra.mxu0 %v1219
    %1571 = vmatprep.subr.mxu0 %v1222
    %1572 = vmatpush1.msra.mxu0 %v1221
    %1573 = vmatprep.subr.mxu0 %v1224
    %1574 = vmatpush1.msra.mxu0 %v1223
    %1575 = vmatprep.subr.mxu0 %v1226
    %1576 = vmatpush1.msra.mxu0 %v1225
    %1577 = vmatprep.subr.mxu0 %v1228
    %1578 = vmatpush1.msra.mxu0 %v1227
    %1579 = vmatprep.subr.mxu0 %v1230
    %1580 = vmatpush1.msra.mxu0 %v1229
    %1581 = vmatprep.subr.mxu0 %v1232
    %1582 = vmatpush1.msra.mxu0 %v1231
    %1583 = vmatprep.subr.mxu0 %v1234
    %1584 = vmatpush1.msra.mxu0 %v1233
    %1585 = vmatprep.subr.mxu0 %v1236
    %1586 = vmatpush1.msra.mxu0 %v1235
    %1587 = vmatprep.subr.mxu0 %v1238
    %1588 = vmatpush1.msra.mxu0 %v1237
    %1589 = vmatprep.subr.mxu0 %v1240
    %1590 = vmatpush1.msra.mxu0 %v1239
    %1591 = vmatprep.subr.mxu0 %v1242
    %1592 = vmatpush1.msra.mxu0 %v1241
    %1593 = vmatprep.subr.mxu0 %v1244
    %1594 = vmatpush1.msra.mxu0 %v1243
    %1595 = vmatprep.subr.mxu0 %v1246
    %1596 = vmatpush1.msra.mxu0 %v1245
    %1597 = vmatprep.subr.mxu0 %v1248
    %1598 = vmatpush1.msra.mxu0 %v1247
    %1599 = vmatprep.subr.mxu0 %v1250
    %1600 = vmatpush1.msra.mxu0 %v1249
    %1601 = vmatprep.subr.mxu0 %v1252
    %1602 = vmatpush1.msra.mxu0 %v1251
    %1603 = vmatprep.subr.mxu0 %v1254
    %1604 = vmatpush1.msra.mxu0 %v1253
    %1605 = vmatprep.subr.mxu0 %v1256
    %1606 = vmatpush1.msra.mxu0 %v1255
    %1607 = vmatprep.subr.mxu0 %v1258
    %1608 = vmatpush1.msra.mxu0 %v1257
    %1609 = vmatprep.subr.mxu0 %v1260
    %1610 = vmatpush1.msra.mxu0 %v1259
    %1611 = vmatprep.subr.mxu0 %v1262
    %1612 = vmatpush1.msra.mxu0 %v1261
    %1613 = vmatprep.mubr.f32.mxu0 %v1056
    %1614 = vmatmul.mubr.f32.gmra.mrb[0].mxu0 %v1055
    %v1615 = vpop.f32.mrb[0].mxu0
    %v1616 = vadd.f32 %v1527, %v1615
    %v1617 = vpop.f32.mrb[0].mxu0
    %v1618 = vadd.f32 %v1529, %v1617
    %1619 = vmatprep.mubr.f32.mxu0 %v1058
    %1620 = vmatmul.mubr.f32.gmra.mrb[0].mxu0 %v1057
    %v1621 = vpop.f32.mrb[0].mxu0
    %v1622 = vadd.f32 %v1533, %v1621
    %v1623 = vpop.f32.mrb[0].mxu0
    %v1624 = vadd.f32 %v1535, %v1623
    %1625 = vmatprep.mubr.f32.mxu0 %v1064
    %1626 = vmatmul.mubr.f32.gmra.mrb[0].mxu0 %v1063
    %v1627 = vpop.f32.mrb[0].mxu0
    %v1628 = vadd.f32 %v1539, %v1627
    %v1629 = vpop.f32.mrb[0].mxu0
    %v1630 = vadd.f32 %v1541, %v1629
    %1631 = vmatprep.mubr.f32.mxu0 %v1066
    %1632 = vmatmul.mubr.f32.gmra.mrb[0].mxu0 %v1065
    %v1633 = vpop.f32.mrb[0].mxu0
    %v1634 = vadd.f32 %v1545, %v1633
    %v1635 = vpop.f32.mrb[0].mxu0
    %v1636 = vadd.f32 %v1547, %v1635
    %1637 = vdwg.mxu0
    %1638 = vmatprep.subr.mxu0 %v1264
    %1639 = vmatpush1.msra.mxu0 %v1263
    %1640 = vmatprep.subr.mxu0 %v1266
    %1641 = vmatpush1.msra.mxu0 %v1265
    %1642 = vmatprep.subr.mxu0 %v1268
    %1643 = vmatpush1.msra.mxu0 %v1267
    %1644 = vmatprep.subr.mxu0 %v1270
    %1645 = vmatpush1.msra.mxu0 %v1269
    %1646 = vmatprep.subr.mxu0 %v1272
    %1647 = vmatpush1.msra.mxu0 %v1271
    %1648 = vmatprep.subr.mxu0 %v1274
    %1649 = vmatpush1.msra.mxu0 %v1273
    %1650 = vmatprep.subr.mxu0 %v1276
    %1651 = vmatpush1.msra.mxu0 %v1275
    %1652 = vmatprep.subr.mxu0 %v1278
    %1653 = vmatpush1.msra.mxu0 %v1277
    %1654 = vmatprep.subr.mxu0 %v1280
    %1655 = vmatpush1.msra.mxu0 %v1279
    %1656 = vmatprep.subr.mxu0 %v1282
    %1657 = vmatpush1.msra.mxu0 %v1281
    %1658 = vmatprep.subr.mxu0 %v1284
    %1659 = vmatpush1.msra.mxu0 %v1283
    %1660 = vmatprep.subr.mxu0 %v1286
    %1661 = vmatpush1.msra.mxu0 %v1285
    %1662 = vmatprep.subr.mxu0 %v1288
    %1663 = vmatpush1.msra.mxu0 %v1287
    %1664 = vmatprep.subr.mxu0 %v1290
    %1665 = vmatpush1.msra.mxu0 %v1289
    %1666 = vmatprep.subr.mxu0 %v1292
    %1667 = vmatpush1.msra.mxu0 %v1291
    %1668 = vmatprep.subr.mxu0 %v1294
    %1669 = vmatpush1.msra.mxu0 %v1293
    %1670 = vmatprep.subr.mxu0 %v1296
    %1671 = vmatpush1.msra.mxu0 %v1295
    %1672 = vmatprep.subr.mxu0 %v1298
    %1673 = vmatpush1.msra.mxu0 %v1297
    %1674 = vmatprep.subr.mxu0 %v1300
    %1675 = vmatpush1.msra.mxu0 %v1299
    %1676 = vmatprep.subr.mxu0 %v1302
    %1677 = vmatpush1.msra.mxu0 %v1301
    %1678 = vmatprep.subr.mxu0 %v1304
    %1679 = vmatpush1.msra.mxu0 %v1303
    %1680 = vmatprep.subr.mxu0 %v1306
    %1681 = vmatpush1.msra.mxu0 %v1305
    %1682 = vmatprep.subr.mxu0 %v1308
    %1683 = vmatpush1.msra.mxu0 %v1307
    %1684 = vmatprep.subr.mxu0 %v1310
    %1685 = vmatpush1.msra.mxu0 %v1309
    %1686 = vmatprep.subr.mxu0 %v1312
    %1687 = vmatpush1.msra.mxu0 %v1311
    %1688 = vmatprep.subr.mxu0 %v1314
    %1689 = vmatpush1.msra.mxu0 %v1313
    %1690 = vmatprep.subr.mxu0 %v1316
    %1691 = vmatpush1.msra.mxu0 %v1315
    %1692 = vmatprep.subr.mxu0 %v1318
    %1693 = vmatpush1.msra.mxu0 %v1317
    %1694 = vmatprep.subr.mxu0 %v1320
    %1695 = vmatpush1.msra.mxu0 %v1319
    %1696 = vmatprep.subr.mxu0 %v1322
    %1697 = vmatpush1.msra.mxu0 %v1321
    %1698 = vmatprep.subr.mxu0 %v1324
    %1699 = vmatpush1.msra.mxu0 %v1323
    %1700 = vmatprep.subr.mxu0 %v1326
    %1701 = vmatpush1.msra.mxu0 %v1325
    %1702 = vmatprep.mubr.f32.mxu0 %v1059
    %1703 = vmatmul.mubr.f32.gmra.mrb[0].mxu0 0.0
    %v1704 = vpop.f32.mrb[0].mxu0
    %v1705 = vadd.f32 %v1616, %v1704
    %v1706 = vpop.f32.mrb[0].mxu0
    %v1707 = vadd.f32 %v1618, %v1706
    %1708 = vmatprep.mubr.f32.mxu0 %v1061
    %1709 = vmatmul.mubr.f32.gmra.mrb[0].mxu0 %v1060
    %v1710 = vpop.f32.mrb[0].mxu0
    %v1711 = vadd.f32 %v1622, %v1710
    %v1712 = vpop.f32.mrb[0].mxu0
    %v1713 = vadd.f32 %v1624, %v1712
    %1714 = vmatprep.mubr.f32.mxu0 %v1067
    %1715 = vmatmul.mubr.f32.gmra.mrb[0].mxu0 0.0
    %v1716 = vpop.f32.mrb[0].mxu0
    %v1717 = vadd.f32 %v1628, %v1716
    %v1718 = vpop.f32.mrb[0].mxu0
    %v1719 = vadd.f32 %v1630, %v1718
    %1720 = vmatprep.mubr.f32.mxu0 %v1069
    %1721 = vmatmul.mubr.f32.gmra.mrb[0].mxu0 %v1068
    %v1722 = vpop.f32.mrb[0].mxu0
    %v1723 = vadd.f32 %v1634, %v1722
    %v1724 = vpop.f32.mrb[0].mxu0
    %v1725 = vadd.f32 %v1636, %v1724
    %1726 = vdwg.mxu0
    %1727 = vmatprep.subr.mxu0 %v1328
    %1728 = vmatpush1.msra.mxu0 %v1327
    %1729 = vmatprep.subr.mxu0 %v1330
    %1730 = vmatpush1.msra.mxu0 %v1329
    %1731 = vmatprep.subr.mxu0 %v1332
    %1732 = vmatpush1.msra.mxu0 %v1331
    %1733 = vmatprep.subr.mxu0 %v1334
    %1734 = vmatpush1.msra.mxu0 %v1333
    %1735 = vmatprep.subr.mxu0 %v1336
    %1736 = vmatpush1.msra.mxu0 %v1335
    %1737 = vmatprep.subr.mxu0 %v1338
    %1738 = vmatpush1.msra.mxu0 %v1337
    %1739 = vmatprep.subr.mxu0 %v1340
    %1740 = vmatpush1.msra.mxu0 %v1339
    %1741 = vmatprep.subr.mxu0 %v1342
    %1742 = vmatpush1.msra.mxu0 %v1341
    %1743 = vmatprep.subr.mxu0 %v1344
    %1744 = vmatpush1.msra.mxu0 %v1343
    %1745 = vmatprep.subr.mxu0 %v1346
    %1746 = vmatpush1.msra.mxu0 %v1345
    %1747 = vmatprep.subr.mxu0 %v1348
    %1748 = vmatpush1.msra.mxu0 %v1347
    %1749 = vmatprep.subr.mxu0 %v1350
    %1750 = vmatpush1.msra.mxu0 %v1349
    %1751 = vmatprep.subr.mxu0 %v1352
    %1752 = vmatpush1.msra.mxu0 %v1351
    %1753 = vmatprep.subr.mxu0 %v1354
    %1754 = vmatpush1.msra.mxu0 %v1353
    %1755 = vmatprep.subr.mxu0 %v1356
    %1756 = vmatpush1.msra.mxu0 %v1355
    %1757 = vmatprep.subr.mxu0 %v1358
    %1758 = vmatpush1.msra.mxu0 %v1357
    %1759 = vmatprep.subr.mxu0 0.0
    %1760 = vmatpush1.msra.mxu0 0.0
    %1761 = vmatprep.subr.mxu0 0.0
    %1762 = vmatpush1.msra.mxu0 0.0
    %1763 = vmatprep.subr.mxu0 0.0
    %1764 = vmatpush1.msra.mxu0 0.0
    %1765 = vmatprep.subr.mxu0 0.0
    %1766 = vmatpush1.msra.mxu0 0.0
    %1767 = vmatprep.subr.mxu0 0.0
    %1768 = vmatpush1.msra.mxu0 0.0
    %1769 = vmatprep.subr.mxu0 0.0
    %1770 = vmatpush1.msra.mxu0 0.0
    %1771 = vmatprep.subr.mxu0 0.0
    %1772 = vmatpush1.msra.mxu0 0.0
    %1773 = vmatprep.subr.mxu0 0.0
    %1774 = vmatpush1.msra.mxu0 0.0
    %1775 = vmatprep.subr.mxu0 0.0
    %1776 = vmatpush1.msra.mxu0 0.0
    %1777 = vmatprep.subr.mxu0 0.0
    %1778 = vmatpush1.msra.mxu0 0.0
    %1779 = vmatprep.subr.mxu0 0.0
    %1780 = vmatpush1.msra.mxu0 0.0
    %1781 = vmatprep.subr.mxu0 0.0
    %1782 = vmatpush1.msra.mxu0 0.0
    %1783 = vmatprep.subr.mxu0 0.0
    %1784 = vmatpush1.msra.mxu0 0.0
    %1785 = vmatprep.subr.mxu0 0.0
    %1786 = vmatpush1.msra.mxu0 0.0
    %1787 = vmatprep.subr.mxu0 0.0
    %1788 = vmatpush1.msra.mxu0 0.0
    %1789 = vmatprep.subr.mxu0 0.0
    %1790 = vmatpush1.msra.mxu0 0.0
    %1791 = vmatprep.mubr.f32.mxu0 0.0
    %1792 = vmatmul.mubr.f32.gmra.mrb[0].mxu0 %v1060
    %v1793 = vpop.f32.mrb[0].mxu0
    %v1794 = vadd.f32 %v1705, %v1793
    %v1795 = vpop.f32.mrb[0].mxu0
    %v1796 = vadd.f32 %v1707, %v1795
    %1797 = vmatprep.mubr.f32.mxu0 0.0
    %1798 = vmatmul.mubr.f32.gmra.mrb[0].mxu0 %v1062
    %v1799 = vpop.f32.mrb[0].mxu0
    %v1800 = vadd.f32 %v1711, %v1799
    %v1801 = vpop.f32.mrb[0].mxu0
    %v1802 = vadd.f32 %v1713, %v1801
    %1803 = vmatprep.mubr.f32.mxu0 0.0
    %1804 = vmatmul.mubr.f32.gmra.mrb[0].mxu0 %v1068
    %v1805 = vpop.f32.mrb[0].mxu0
    %v1806 = vadd.f32 %v1717, %v1805
    %v1807 = vpop.f32.mrb[0].mxu0
    %v1808 = vadd.f32 %v1719, %v1807
    %1809 = vmatprep.mubr.f32.mxu0 0.0
    %1810 = vmatmul.mubr.f32.gmra.mrb[0].mxu0 %v1070
    %v1811 = vpop.f32.mrb[0].mxu0
    %v1812 = vadd.f32 %v1723, %v1811
    %v1813 = vpop.f32.mrb[0].mxu0
    %v1814 = vadd.f32 %v1725, %v1813
    %1815 = vdwg.mxu0
    %v1816 = vmax.f32 %v1794, 0.0
    %v1817 = vmax.f32 %v1796, 0.0
    %v1818 = vmax.f32 %v1800, 0.0
    %v1819 = vmax.f32 %v1802, 0.0
    %v1820 = vmax.f32 %v1806, 0.0
    %v1821 = vmax.f32 %v1808, 0.0
    %v1822 = vmax.f32 %v1812, 0.0
    %v1823 = vmax.f32 %v1814, 0.0
    %v1824 = vld [vmem:[#allocation10] sm:$0xff]
    %v1825 = vld [vmem:[#allocation10 + $0x8] sm:$0xff]
    %v1826 = vld [vmem:[#allocation10 + $0x10] sm:$0xff]
    %v1827 = vld [vmem:[#allocation10 + $0x18] sm:$0xff]
    %v1828 = vld [vmem:[#allocation10 + $0x20] sm:$0xff]
    %v1829 = vld [vmem:[#allocation10 + $0x28] sm:$0xff]
    %v1830 = vld [vmem:[#allocation10 + $0x30] sm:$0xff]
    %v1831 = vld [vmem:[#allocation10 + $0x38] sm:$0xff]
    %v1832 = vld [vmem:[#allocation10 + $0x40] sm:$0xff]
    %v1833 = vld [vmem:[#allocation10 + $0x48] sm:$0xff]
    %v1834 = vld [vmem:[#allocation10 + $0x50] sm:$0xff]
    %v1835 = vld [vmem:[#allocation10 + $0x58] sm:$0xff]
    %v1836 = vld [vmem:[#allocation10 + $0x60] sm:$0xff]
    %v1837 = vld [vmem:[#allocation10 + $0x68] sm:$0xff]
    %v1838 = vld [vmem:[#allocation10 + $0x70] sm:$0xff]
    %v1839 = vld [vmem:[#allocation10 + $0x78] sm:$0xff]
    %v1840 = vld [vmem:[#allocation10 + $0x80] sm:$0xff]
    %v1841 = vld [vmem:[#allocation10 + $0x88] sm:$0xff]
    %v1842 = vld [vmem:[#allocation10 + $0x90] sm:$0xff]
    %v1843 = vld [vmem:[#allocation10 + $0x98] sm:$0xff]
    %v1844 = vld [vmem:[#allocation10 + $0xa0] sm:$0xff]
    %v1845 = vld [vmem:[#allocation10 + $0xa8] sm:$0xff]
    %v1846 = vld [vmem:[#allocation10 + $0xb0] sm:$0xff]
    %v1847 = vld [vmem:[#allocation10 + $0xb8] sm:$0xff]
    %v1848 = vld [vmem:[#allocation10 + $0xc0] sm:$0xff]
    %v1849 = vld [vmem:[#allocation10 + $0xc8] sm:$0xff]
    %v1850 = vld [vmem:[#allocation10 + $0xd0] sm:$0xff]
    %v1851 = vld [vmem:[#allocation10 + $0xd8] sm:$0xff]
    %v1852 = vld [vmem:[#allocation10 + $0xe0] sm:$0xff]
    %v1853 = vld [vmem:[#allocation10 + $0xe8] sm:$0xff]
    %v1854 = vld [vmem:[#allocation10 + $0xf0] sm:$0xff]
    %v1855 = vld [vmem:[#allocation10 + $0xf8] sm:$0xff]
    %v1856 = vld [vmem:[#allocation10 + $0x100] sm:$0xff]
    %v1857 = vld [vmem:[#allocation10 + $0x108] sm:$0xff]
    %v1858 = vld [vmem:[#allocation10 + $0x110] sm:$0xff]
    %v1859 = vld [vmem:[#allocation10 + $0x118] sm:$0xff]
    %v1860 = vld [vmem:[#allocation10 + $0x120] sm:$0xff]
    %v1861 = vld [vmem:[#allocation10 + $0x128] sm:$0xff]
    %v1862 = vld [vmem:[#allocation10 + $0x130] sm:$0xff]
    %v1863 = vld [vmem:[#allocation10 + $0x138] sm:$0xff]
    %v1864 = vld [vmem:[#allocation10 + $0x140] sm:$0xff]
    %v1865 = vld [vmem:[#allocation10 + $0x148] sm:$0xff]
    %v1866 = vld [vmem:[#allocation10 + $0x150] sm:$0xff]
    %v1867 = vld [vmem:[#allocation10 + $0x158] sm:$0xff]
    %v1868 = vld [vmem:[#allocation10 + $0x160] sm:$0xff]
    %v1869 = vld [vmem:[#allocation10 + $0x168] sm:$0xff]
    %v1870 = vld [vmem:[#allocation10 + $0x170] sm:$0xff]
    %v1871 = vld [vmem:[#allocation10 + $0x178] sm:$0xff]
    %v1872 = vld [vmem:[#allocation10 + $0x180] sm:$0xff]
    %v1873 = vld [vmem:[#allocation10 + $0x188] sm:$0xff]
    %v1874 = vld [vmem:[#allocation10 + $0x190] sm:$0xff]
    %v1875 = vld [vmem:[#allocation10 + $0x198] sm:$0xff]
    %v1876 = vld [vmem:[#allocation10 + $0x1a0] sm:$0xff]
    %v1877 = vld [vmem:[#allocation10 + $0x1a8] sm:$0xff]
    %v1878 = vld [vmem:[#allocation10 + $0x1b0] sm:$0xff]
    %v1879 = vld [vmem:[#allocation10 + $0x1b8] sm:$0xff]
    %v1880 = vld [vmem:[#allocation10 + $0x1c0] sm:$0xff]
    %v1881 = vld [vmem:[#allocation10 + $0x1c8] sm:$0xff]
    %v1882 = vld [vmem:[#allocation10 + $0x1d0] sm:$0xff]
    %v1883 = vld [vmem:[#allocation10 + $0x1d8] sm:$0xff]
    %v1884 = vld [vmem:[#allocation10 + $0x1e0] sm:$0xff]
    %v1885 = vld [vmem:[#allocation10 + $0x1e8] sm:$0xff]
    %v1886 = vld [vmem:[#allocation10 + $0x1f0] sm:$0xff]
    %v1887 = vld [vmem:[#allocation10 + $0x1f8] sm:$0xff]
    %v1888 = vld [vmem:[#allocation10 + $0x200] sm:$0xff]
    %v1889 = vld [vmem:[#allocation10 + $0x208] sm:$0xff]
    %v1890 = vld [vmem:[#allocation10 + $0x210] sm:$0xff]
    %v1891 = vld [vmem:[#allocation10 + $0x218] sm:$0xff]
    %v1892 = vld [vmem:[#allocation10 + $0x220] sm:$0xff]
    %v1893 = vld [vmem:[#allocation10 + $0x228] sm:$0xff]
    %v1894 = vld [vmem:[#allocation10 + $0x230] sm:$0xff]
    %v1895 = vld [vmem:[#allocation10 + $0x238] sm:$0xff]
    %v1896 = vld [vmem:[#allocation10 + $0x240] sm:$0xff]
    %v1897 = vld [vmem:[#allocation10 + $0x248] sm:$0xff]
    %v1898 = vld [vmem:[#allocation10 + $0x250] sm:$0xff]
    %v1899 = vld [vmem:[#allocation10 + $0x258] sm:$0xff]
    %v1900 = vld [vmem:[#allocation10 + $0x260] sm:$0xff]
    %v1901 = vld [vmem:[#allocation10 + $0x268] sm:$0xff]
    %v1902 = vld [vmem:[#allocation10 + $0x270] sm:$0xff]
    %v1903 = vld [vmem:[#allocation10 + $0x278] sm:$0xff]
    %v1904 = vld [vmem:[#allocation10 + $0x280] sm:$0xff]
    %v1905 = vld [vmem:[#allocation10 + $0x288] sm:$0xff]
    %v1906 = vld [vmem:[#allocation10 + $0x290] sm:$0xff]
    %v1907 = vld [vmem:[#allocation10 + $0x298] sm:$0xff]
    %v1908 = vld [vmem:[#allocation10 + $0x2a0] sm:$0xff]
    %v1909 = vld [vmem:[#allocation10 + $0x2a8] sm:$0xff]
    %v1910 = vld [vmem:[#allocation10 + $0x2b0] sm:$0xff]
    %v1911 = vld [vmem:[#allocation10 + $0x2b8] sm:$0xff]
    %v1912 = vld [vmem:[#allocation10 + $0x2c0] sm:$0xff]
    %v1913 = vld [vmem:[#allocation10 + $0x2c8] sm:$0xff]
    %v1914 = vld [vmem:[#allocation10 + $0x2d0] sm:$0xff]
    %v1915 = vld [vmem:[#allocation10 + $0x2d8] sm:$0xff]
    %v1916 = vld [vmem:[#allocation10 + $0x2e0] sm:$0xff]
    %v1917 = vld [vmem:[#allocation10 + $0x2e8] sm:$0xff]
    %v1918 = vld [vmem:[#allocation10 + $0x2f0] sm:$0xff]
    %v1919 = vld [vmem:[#allocation10 + $0x2f8] sm:$0xff]
    %v1920 = vld [vmem:[#allocation10 + $0x300] sm:$0xff]
    %v1921 = vld [vmem:[#allocation10 + $0x308] sm:$0xff]
    %v1922 = vld [vmem:[#allocation10 + $0x310] sm:$0xff]
    %v1923 = vld [vmem:[#allocation10 + $0x318] sm:$0xff]
    %v1924 = vld [vmem:[#allocation10 + $0x320] sm:$0xff]
    %v1925 = vld [vmem:[#allocation10 + $0x328] sm:$0xff]
    %v1926 = vld [vmem:[#allocation10 + $0x330] sm:$0xff]
    %v1927 = vld [vmem:[#allocation10 + $0x338] sm:$0xff]
    %v1928 = vld [vmem:[#allocation10 + $0x340] sm:$0xff]
    %v1929 = vld [vmem:[#allocation10 + $0x348] sm:$0xff]
    %v1930 = vld [vmem:[#allocation10 + $0x350] sm:$0xff]
    %v1931 = vld [vmem:[#allocation10 + $0x358] sm:$0xff]
    %v1932 = vld [vmem:[#allocation10 + $0x360] sm:$0xff]
    %v1933 = vld [vmem:[#allocation10 + $0x368] sm:$0xff]
    %v1934 = vld [vmem:[#allocation10 + $0x370] sm:$0xff]
    %v1935 = vld [vmem:[#allocation10 + $0x378] sm:$0xff]
    %v1936 = vld [vmem:[#allocation10 + $0x380] sm:$0xff]
    %v1937 = vld [vmem:[#allocation10 + $0x388] sm:$0xff]
    %v1938 = vld [vmem:[#allocation10 + $0x390] sm:$0xff]
    %v1939 = vld [vmem:[#allocation10 + $0x398] sm:$0xff]
    %v1940 = vld [vmem:[#allocation10 + $0x3a0] sm:$0xff]
    %v1941 = vld [vmem:[#allocation10 + $0x3a8] sm:$0xff]
    %v1942 = vld [vmem:[#allocation10 + $0x3b0] sm:$0xff]
    %v1943 = vld [vmem:[#allocation10 + $0x3b8] sm:$0xff]
    %v1944 = vld [vmem:[#allocation10 + $0x3c0] sm:$0xff]
    %v1945 = vld [vmem:[#allocation10 + $0x3c8] sm:$0xff]
    %v1946 = vld [vmem:[#allocation10 + $0x3d0] sm:$0xff]
    %v1947 = vld [vmem:[#allocation10 + $0x3d8] sm:$0xff]
    %v1948 = vld [vmem:[#allocation10 + $0x3e0] sm:$0xff]
    %v1949 = vld [vmem:[#allocation10 + $0x3e8] sm:$0xff]
    %v1950 = vld [vmem:[#allocation10 + $0x3f0] sm:$0xff]
    %v1951 = vld [vmem:[#allocation10 + $0x3f8] sm:$0xff]
    %v1952 = vld [vmem:[#allocation10 + $0x400] sm:$0xff]
    %v1953 = vld [vmem:[#allocation10 + $0x408] sm:$0xff]
    %v1954 = vld [vmem:[#allocation10 + $0x410] sm:$0xff]
    %v1955 = vld [vmem:[#allocation10 + $0x418] sm:$0xff]
    %v1956 = vld [vmem:[#allocation10 + $0x420] sm:$0xff]
    %v1957 = vld [vmem:[#allocation10 + $0x428] sm:$0xff]
    %v1958 = vld [vmem:[#allocation10 + $0x430] sm:$0xff]
    %v1959 = vld [vmem:[#allocation10 + $0x438] sm:$0xff]
    %v1960 = vld [vmem:[#allocation10 + $0x440] sm:$0xff]
    %v1961 = vld [vmem:[#allocation10 + $0x448] sm:$0xff]
    %v1962 = vld [vmem:[#allocation10 + $0x450] sm:$0xff]
    %v1963 = vld [vmem:[#allocation10 + $0x458] sm:$0xff]
    %v1964 = vld [vmem:[#allocation10 + $0x460] sm:$0xff]
    %v1965 = vld [vmem:[#allocation10 + $0x468] sm:$0xff]
    %v1966 = vld [vmem:[#allocation10 + $0x470] sm:$0xff]
    %v1967 = vld [vmem:[#allocation10 + $0x478] sm:$0xff]
    %v1968 = vld [vmem:[#allocation10 + $0x480] sm:$0xff]
    %v1969 = vld [vmem:[#allocation10 + $0x488] sm:$0xff]
    %v1970 = vld [vmem:[#allocation10 + $0x490] sm:$0xff]
    %v1971 = vld [vmem:[#allocation10 + $0x498] sm:$0xff]
    %v1972 = vld [vmem:[#allocation10 + $0x4a0] sm:$0xff]
    %v1973 = vld [vmem:[#allocation10 + $0x4a8] sm:$0xff]
    %v1974 = vld [vmem:[#allocation10 + $0x4b0] sm:$0xff]
    %v1975 = vld [vmem:[#allocation10 + $0x4b8] sm:$0xff]
    %v1976 = vld [vmem:[#allocation10 + $0x4c0] sm:$0xff]
    %v1977 = vld [vmem:[#allocation10 + $0x4c8] sm:$0xff]
    %v1978 = vld [vmem:[#allocation10 + $0x4d0] sm:$0xff]
    %v1979 = vld [vmem:[#allocation10 + $0x4d8] sm:$0xff]
    %v1980 = vld [vmem:[#allocation10 + $0x4e0] sm:$0xff]
    %v1981 = vld [vmem:[#allocation10 + $0x4e8] sm:$0xff]
    %v1982 = vld [vmem:[#allocation10 + $0x4f0] sm:$0xff]
    %v1983 = vld [vmem:[#allocation10 + $0x4f8] sm:$0xff]
    %v1984 = vld [vmem:[#allocation10 + $0x500] sm:$0xff]
    %v1985 = vld [vmem:[#allocation10 + $0x508] sm:$0xff]
    %v1986 = vld [vmem:[#allocation10 + $0x510] sm:$0xff]
    %v1987 = vld [vmem:[#allocation10 + $0x518] sm:$0xff]
    %v1988 = vld [vmem:[#allocation10 + $0x520] sm:$0xff]
    %v1989 = vld [vmem:[#allocation10 + $0x528] sm:$0xff]
    %v1990 = vld [vmem:[#allocation10 + $0x530] sm:$0xff]
    %v1991 = vld [vmem:[#allocation10 + $0x538] sm:$0xff]
    %v1992 = vld [vmem:[#allocation10 + $0x540] sm:$0xff]
    %v1993 = vld [vmem:[#allocation10 + $0x548] sm:$0xff]
    %v1994 = vld [vmem:[#allocation10 + $0x550] sm:$0xff]
    %v1995 = vld [vmem:[#allocation10 + $0x558] sm:$0xff]
    %v1996 = vld [vmem:[#allocation10 + $0x560] sm:$0xff]
    %v1997 = vld [vmem:[#allocation10 + $0x568] sm:$0xff]
    %v1998 = vld [vmem:[#allocation10 + $0x570] sm:$0xff]
    %v1999 = vld [vmem:[#allocation10 + $0x578] sm:$0xff]
    %v2000 = vld [vmem:[#allocation10 + $0x580] sm:$0xff]
    %v2001 = vld [vmem:[#allocation10 + $0x588] sm:$0xff]
    %v2002 = vld [vmem:[#allocation10 + $0x590] sm:$0xff]
    %v2003 = vld [vmem:[#allocation10 + $0x598] sm:$0xff]
    %v2004 = vld [vmem:[#allocation10 + $0x5a0] sm:$0xff]
    %v2005 = vld [vmem:[#allocation10 + $0x5a8] sm:$0xff]
    %v2006 = vld [vmem:[#allocation10 + $0x5b0] sm:$0xff]
    %v2007 = vld [vmem:[#allocation10 + $0x5b8] sm:$0xff]
    %v2008 = vld [vmem:[#allocation10 + $0x5c0] sm:$0xff]
    %v2009 = vld [vmem:[#allocation10 + $0x5c8] sm:$0xff]
    %v2010 = vld [vmem:[#allocation10 + $0x5d0] sm:$0xff]
    %v2011 = vld [vmem:[#allocation10 + $0x5d8] sm:$0xff]
    %v2012 = vld [vmem:[#allocation10 + $0x5e0] sm:$0xff]
    %v2013 = vld [vmem:[#allocation10 + $0x5e8] sm:$0xff]
    %v2014 = vld [vmem:[#allocation10 + $0x5f0] sm:$0xff]
    %v2015 = vld [vmem:[#allocation10 + $0x5f8] sm:$0xff]
    %v2016 = vld [vmem:[#allocation10 + $0x600] sm:$0xff]
    %v2017 = vld [vmem:[#allocation10 + $0x608] sm:$0xff]
    %v2018 = vld [vmem:[#allocation10 + $0x610] sm:$0xff]
    %v2019 = vld [vmem:[#allocation10 + $0x618] sm:$0xff]
    %v2020 = vld [vmem:[#allocation10 + $0x620] sm:$0xff]
    %v2021 = vld [vmem:[#allocation10 + $0x628] sm:$0xff]
    %v2022 = vld [vmem:[#allocation10 + $0x630] sm:$0xff]
    %v2023 = vld [vmem:[#allocation10 + $0x638] sm:$0xff]
    %v2024 = vld [vmem:[#allocation10 + $0x640] sm:$0xff]
    %v2025 = vld [vmem:[#allocation10 + $0x648] sm:$0xff]
    %v2026 = vld [vmem:[#allocation10 + $0x650] sm:$0xff]
    %v2027 = vld [vmem:[#allocation10 + $0x658] sm:$0xff]
    %v2028 = vld [vmem:[#allocation10 + $0x660] sm:$0xff]
    %v2029 = vld [vmem:[#allocation10 + $0x668] sm:$0xff]
    %v2030 = vld [vmem:[#allocation10 + $0x670] sm:$0xff]
    %v2031 = vld [vmem:[#allocation10 + $0x678] sm:$0xff]
    %v2032 = vld [vmem:[#allocation10 + $0x680] sm:$0xff]
    %v2033 = vld [vmem:[#allocation10 + $0x688] sm:$0xff]
    %v2034 = vld [vmem:[#allocation10 + $0x690] sm:$0xff]
    %v2035 = vld [vmem:[#allocation10 + $0x698] sm:$0xff]
    %v2036 = vld [vmem:[#allocation10 + $0x6a0] sm:$0xff]
    %v2037 = vld [vmem:[#allocation10 + $0x6a8] sm:$0xff]
    %v2038 = vld [vmem:[#allocation10 + $0x6b0] sm:$0xff]
    %v2039 = vld [vmem:[#allocation10 + $0x6b8] sm:$0xff]
    %v2040 = vld [vmem:[#allocation10 + $0x6c0] sm:$0xff]
    %v2041 = vld [vmem:[#allocation10 + $0x6c8] sm:$0xff]
    %v2042 = vld [vmem:[#allocation10 + $0x6d0] sm:$0xff]
    %v2043 = vld [vmem:[#allocation10 + $0x6d8] sm:$0xff]
    %v2044 = vld [vmem:[#allocation10 + $0x6e0] sm:$0xff]
    %v2045 = vld [vmem:[#allocation10 + $0x6e8] sm:$0xff]
    %v2046 = vld [vmem:[#allocation10 + $0x6f0] sm:$0xff]
    %v2047 = vld [vmem:[#allocation10 + $0x6f8] sm:$0xff]
    %v2048 = vld [vmem:[#allocation10 + $0x700] sm:$0xff]
    %v2049 = vld [vmem:[#allocation10 + $0x708] sm:$0xff]
    %v2050 = vld [vmem:[#allocation10 + $0x710] sm:$0xff]
    %v2051 = vld [vmem:[#allocation10 + $0x718] sm:$0xff]
    %v2052 = vld [vmem:[#allocation10 + $0x720] sm:$0xff]
    %v2053 = vld [vmem:[#allocation10 + $0x728] sm:$0xff]
    %v2054 = vld [vmem:[#allocation10 + $0x730] sm:$0xff]
    %v2055 = vld [vmem:[#allocation10 + $0x738] sm:$0xff]
    %v2056 = vld [vmem:[#allocation10 + $0x740] sm:$0xff]
    %v2057 = vld [vmem:[#allocation10 + $0x748] sm:$0xff]
    %v2058 = vld [vmem:[#allocation10 + $0x750] sm:$0xff]
    %v2059 = vld [vmem:[#allocation10 + $0x758] sm:$0xff]
    %v2060 = vld [vmem:[#allocation10 + $0x760] sm:$0xff]
    %v2061 = vld [vmem:[#allocation10 + $0x768] sm:$0xff]
    %v2062 = vld [vmem:[#allocation10 + $0x770] sm:$0xff]
    %v2063 = vld [vmem:[#allocation10 + $0x778] sm:$0xff]
    %v2064 = vld [vmem:[#allocation10 + $0x780] sm:$0xff]
    %v2065 = vld [vmem:[#allocation10 + $0x788] sm:$0xff]
    %v2066 = vld [vmem:[#allocation10 + $0x790] sm:$0xff]
    %v2067 = vld [vmem:[#allocation10 + $0x798] sm:$0xff]
    %v2068 = vld [vmem:[#allocation10 + $0x7a0] sm:$0xff]
    %v2069 = vld [vmem:[#allocation10 + $0x7a8] sm:$0xff]
    %v2070 = vld [vmem:[#allocation10 + $0x7b0] sm:$0xff]
    %v2071 = vld [vmem:[#allocation10 + $0x7b8] sm:$0xff]
    %v2072 = vld [vmem:[#allocation10 + $0x7c0] sm:$0xff]
    %v2073 = vld [vmem:[#allocation10 + $0x7c8] sm:$0xff]
    %v2074 = vld [vmem:[#allocation10 + $0x7d0] sm:$0xff]
    %v2075 = vld [vmem:[#allocation10 + $0x7d8] sm:$0xff]
    %v2076 = vld [vmem:[#allocation10 + $0x7e0] sm:$0xff]
    %v2077 = vld [vmem:[#allocation10 + $0x7e8] sm:$0xff]
    %v2078 = vld [vmem:[#allocation10 + $0x7f0] sm:$0xff]
    %v2079 = vld [vmem:[#allocation10 + $0x7f8] sm:$0xff]
    %v2080 = vld [vmem:[#allocation12] sm:$0x3]
    %v2082 = vlaneseq
    %v2083 = vshrl.u32 %v2082, 7
    %v2084 = vsub.s32 0, %v2083
    %v2085 = vrot.slane %v2080, %v2084
    %v2086 = vlaneseq
    %v2087 = vshrl.u32 %v2086, 7
    %v2088 = vsub.s32 1, %v2087
    %v2089 = vrot.slane %v2080, %v2088
    %2092 = vmatprep.subr.mxu0 %v1825
    %2093 = vmatpush1.msra.mxu0 %v1824
    %2094 = vmatprep.subr.mxu0 %v1827
    %2095 = vmatpush1.msra.mxu0 %v1826
    %2096 = vmatprep.subr.mxu0 %v1829
    %2097 = vmatpush1.msra.mxu0 %v1828
    %2098 = vmatprep.subr.mxu0 %v1831
    %2099 = vmatpush1.msra.mxu0 %v1830
    %2100 = vmatprep.subr.mxu0 %v1833
    %2101 = vmatpush1.msra.mxu0 %v1832
    %2102 = vmatprep.subr.mxu0 %v1835
    %2103 = vmatpush1.msra.mxu0 %v1834
    %2104 = vmatprep.subr.mxu0 %v1837
    %2105 = vmatpush1.msra.mxu0 %v1836
    %2106 = vmatprep.subr.mxu0 %v1839
    %2107 = vmatpush1.msra.mxu0 %v1838
    %2108 = vmatprep.subr.mxu0 %v1841
    %2109 = vmatpush1.msra.mxu0 %v1840
    %2110 = vmatprep.subr.mxu0 %v1843
    %2111 = vmatpush1.msra.mxu0 %v1842
    %2112 = vmatprep.subr.mxu0 %v1845
    %2113 = vmatpush1.msra.mxu0 %v1844
    %2114 = vmatprep.subr.mxu0 %v1847
    %2115 = vmatpush1.msra.mxu0 %v1846
    %2116 = vmatprep.subr.mxu0 %v1849
    %2117 = vmatpush1.msra.mxu0 %v1848
    %2118 = vmatprep.subr.mxu0 %v1851
    %2119 = vmatpush1.msra.mxu0 %v1850
    %2120 = vmatprep.subr.mxu0 %v1853
    %2121 = vmatpush1.msra.mxu0 %v1852
    %2122 = vmatprep.subr.mxu0 %v1855
    %2123 = vmatpush1.msra.mxu0 %v1854
    %2124 = vmatprep.subr.mxu0 %v1857
    %2125 = vmatpush1.msra.mxu0 %v1856
    %2126 = vmatprep.subr.mxu0 %v1859
    %2127 = vmatpush1.msra.mxu0 %v1858
    %2128 = vmatprep.subr.mxu0 %v1861
    %2129 = vmatpush1.msra.mxu0 %v1860
    %2130 = vmatprep.subr.mxu0 %v1863
    %2131 = vmatpush1.msra.mxu0 %v1862
    %2132 = vmatprep.subr.mxu0 %v1865
    %2133 = vmatpush1.msra.mxu0 %v1864
    %2134 = vmatprep.subr.mxu0 %v1867
    %2135 = vmatpush1.msra.mxu0 %v1866
    %2136 = vmatprep.subr.mxu0 %v1869
    %2137 = vmatpush1.msra.mxu0 %v1868
    %2138 = vmatprep.subr.mxu0 %v1871
    %2139 = vmatpush1.msra.mxu0 %v1870
    %2140 = vmatprep.subr.mxu0 %v1873
    %2141 = vmatpush1.msra.mxu0 %v1872
    %2142 = vmatprep.subr.mxu0 %v1875
    %2143 = vmatpush1.msra.mxu0 %v1874
    %2144 = vmatprep.subr.mxu0 %v1877
    %2145 = vmatpush1.msra.mxu0 %v1876
    %2146 = vmatprep.subr.mxu0 %v1879
    %2147 = vmatpush1.msra.mxu0 %v1878
    %2148 = vmatprep.subr.mxu0 %v1881
    %2149 = vmatpush1.msra.mxu0 %v1880
    %2150 = vmatprep.subr.mxu0 %v1883
    %2151 = vmatpush1.msra.mxu0 %v1882
    %2152 = vmatprep.subr.mxu0 %v1885
    %2153 = vmatpush1.msra.mxu0 %v1884
    %2154 = vmatprep.subr.mxu0 %v1887
    %2155 = vmatpush1.msra.mxu0 %v1886
    %2156 = vmatprep.mubr.f32.mxu0 %v1817
    %2157 = vmatmul.mubr.f32.gmra.mrb[0].mxu0 %v1816
    %v2158 = vpop.f32.mrb[0].mxu0
    %v2159 = vadd.f32 %v2085, %v2158
    %v2160 = vpop.f32.mrb[0].mxu0
    %v2161 = vadd.f32 %v2089, %v2160
    %2162 = vdwg.mxu0
    %2163 = vmatprep.subr.mxu0 %v1889
    %2164 = vmatpush1.msra.mxu0 %v1888
    %2165 = vmatprep.subr.mxu0 %v1891
    %2166 = vmatpush1.msra.mxu0 %v1890
    %2167 = vmatprep.subr.mxu0 %v1893
    %2168 = vmatpush1.msra.mxu0 %v1892
    %2169 = vmatprep.subr.mxu0 %v1895
    %2170 = vmatpush1.msra.mxu0 %v1894
    %2171 = vmatprep.subr.mxu0 %v1897
    %2172 = vmatpush1.msra.mxu0 %v1896
    %2173 = vmatprep.subr.mxu0 %v1899
    %2174 = vmatpush1.msra.mxu0 %v1898
    %2175 = vmatprep.subr.mxu0 %v1901
    %2176 = vmatpush1.msra.mxu0 %v1900
    %2177 = vmatprep.subr.mxu0 %v1903
    %2178 = vmatpush1.msra.mxu0 %v1902
    %2179 = vmatprep.subr.mxu0 %v1905
    %2180 = vmatpush1.msra.mxu0 %v1904
    %2181 = vmatprep.subr.mxu0 %v1907
    %2182 = vmatpush1.msra.mxu0 %v1906
    %2183 = vmatprep.subr.mxu0 %v1909
    %2184 = vmatpush1.msra.mxu0 %v1908
    %2185 = vmatprep.subr.mxu0 %v1911
    %2186 = vmatpush1.msra.mxu0 %v1910
    %2187 = vmatprep.subr.mxu0 %v1913
    %2188 = vmatpush1.msra.mxu0 %v1912
    %2189 = vmatprep.subr.mxu0 %v1915
    %2190 = vmatpush1.msra.mxu0 %v1914
    %2191 = vmatprep.subr.mxu0 %v1917
    %2192 = vmatpush1.msra.mxu0 %v1916
    %2193 = vmatprep.subr.mxu0 %v1919
    %2194 = vmatpush1.msra.mxu0 %v1918
    %2195 = vmatprep.subr.mxu0 %v1921
    %2196 = vmatpush1.msra.mxu0 %v1920
    %2197 = vmatprep.subr.mxu0 %v1923
    %2198 = vmatpush1.msra.mxu0 %v1922
    %2199 = vmatprep.subr.mxu0 %v1925
    %2200 = vmatpush1.msra.mxu0 %v1924
    %2201 = vmatprep.subr.mxu0 %v1927
    %2202 = vmatpush1.msra.mxu0 %v1926
    %2203 = vmatprep.subr.mxu0 %v1929
    %2204 = vmatpush1.msra.mxu0 %v1928
    %2205 = vmatprep.subr.mxu0 %v1931
    %2206 = vmatpush1.msra.mxu0 %v1930
    %2207 = vmatprep.subr.mxu0 %v1933
    %2208 = vmatpush1.msra.mxu0 %v1932
    %2209 = vmatprep.subr.mxu0 %v1935
    %2210 = vmatpush1.msra.mxu0 %v1934
    %2211 = vmatprep.subr.mxu0 %v1937
    %2212 = vmatpush1.msra.mxu0 %v1936
    %2213 = vmatprep.subr.mxu0 %v1939
    %2214 = vmatpush1.msra.mxu0 %v1938
    %2215 = vmatprep.subr.mxu0 %v1941
    %2216 = vmatpush1.msra.mxu0 %v1940
    %2217 = vmatprep.subr.mxu0 %v1943
    %2218 = vmatpush1.msra.mxu0 %v1942
    %2219 = vmatprep.subr.mxu0 %v1945
    %2220 = vmatpush1.msra.mxu0 %v1944
    %2221 = vmatprep.subr.mxu0 %v1947
    %2222 = vmatpush1.msra.mxu0 %v1946
    %2223 = vmatprep.subr.mxu0 %v1949
    %2224 = vmatpush1.msra.mxu0 %v1948
    %2225 = vmatprep.subr.mxu0 %v1951
    %2226 = vmatpush1.msra.mxu0 %v1950
    %2227 = vmatprep.mubr.f32.mxu0 %v1819
    %2228 = vmatmul.mubr.f32.gmra.mrb[0].mxu0 %v1818
    %v2229 = vpop.f32.mrb[0].mxu0
    %v2230 = vadd.f32 %v2159, %v2229
    %v2231 = vpop.f32.mrb[0].mxu0
    %v2232 = vadd.f32 %v2161, %v2231
    %2233 = vdwg.mxu0
    %2234 = vmatprep.subr.mxu0 %v1953
    %2235 = vmatpush1.msra.mxu0 %v1952
    %2236 = vmatprep.subr.mxu0 %v1955
    %2237 = vmatpush1.msra.mxu0 %v1954
    %2238 = vmatprep.subr.mxu0 %v1957
    %2239 = vmatpush1.msra.mxu0 %v1956
    %2240 = vmatprep.subr.mxu0 %v1959
    %2241 = vmatpush1.msra.mxu0 %v1958
    %2242 = vmatprep.subr.mxu0 %v1961
    %2243 = vmatpush1.msra.mxu0 %v1960
    %2244 = vmatprep.subr.mxu0 %v1963
    %2245 = vmatpush1.msra.mxu0 %v1962
    %2246 = vmatprep.subr.mxu0 %v1965
    %2247 = vmatpush1.msra.mxu0 %v1964
    %2248 = vmatprep.subr.mxu0 %v1967
    %2249 = vmatpush1.msra.mxu0 %v1966
    %2250 = vmatprep.subr.mxu0 %v1969
    %2251 = vmatpush1.msra.mxu0 %v1968
    %2252 = vmatprep.subr.mxu0 %v1971
    %2253 = vmatpush1.msra.mxu0 %v1970
    %2254 = vmatprep.subr.mxu0 %v1973
    %2255 = vmatpush1.msra.mxu0 %v1972
    %2256 = vmatprep.subr.mxu0 %v1975
    %2257 = vmatpush1.msra.mxu0 %v1974
    %2258 = vmatprep.subr.mxu0 %v1977
    %2259 = vmatpush1.msra.mxu0 %v1976
    %2260 = vmatprep.subr.mxu0 %v1979
    %2261 = vmatpush1.msra.mxu0 %v1978
    %2262 = vmatprep.subr.mxu0 %v1981
    %2263 = vmatpush1.msra.mxu0 %v1980
    %2264 = vmatprep.subr.mxu0 %v1983
    %2265 = vmatpush1.msra.mxu0 %v1982
    %2266 = vmatprep.subr.mxu0 %v1985
    %2267 = vmatpush1.msra.mxu0 %v1984
    %2268 = vmatprep.subr.mxu0 %v1987
    %2269 = vmatpush1.msra.mxu0 %v1986
    %2270 = vmatprep.subr.mxu0 %v1989
    %2271 = vmatpush1.msra.mxu0 %v1988
    %2272 = vmatprep.subr.mxu0 %v1991
    %2273 = vmatpush1.msra.mxu0 %v1990
    %2274 = vmatprep.subr.mxu0 %v1993
    %2275 = vmatpush1.msra.mxu0 %v1992
    %2276 = vmatprep.subr.mxu0 %v1995
    %2277 = vmatpush1.msra.mxu0 %v1994
    %2278 = vmatprep.subr.mxu0 %v1997
    %2279 = vmatpush1.msra.mxu0 %v1996
    %2280 = vmatprep.subr.mxu0 %v1999
    %2281 = vmatpush1.msra.mxu0 %v1998
    %2282 = vmatprep.subr.mxu0 %v2001
    %2283 = vmatpush1.msra.mxu0 %v2000
    %2284 = vmatprep.subr.mxu0 %v2003
    %2285 = vmatpush1.msra.mxu0 %v2002
    %2286 = vmatprep.subr.mxu0 %v2005
    %2287 = vmatpush1.msra.mxu0 %v2004
    %2288 = vmatprep.subr.mxu0 %v2007
    %2289 = vmatpush1.msra.mxu0 %v2006
    %2290 = vmatprep.subr.mxu0 %v2009
    %2291 = vmatpush1.msra.mxu0 %v2008
    %2292 = vmatprep.subr.mxu0 %v2011
    %2293 = vmatpush1.msra.mxu0 %v2010
    %2294 = vmatprep.subr.mxu0 %v2013
    %2295 = vmatpush1.msra.mxu0 %v2012
    %2296 = vmatprep.subr.mxu0 %v2015
    %2297 = vmatpush1.msra.mxu0 %v2014
    %2298 = vmatprep.mubr.f32.mxu0 %v1821
    %2299 = vmatmul.mubr.f32.gmra.mrb[0].mxu0 %v1820
    %v2300 = vpop.f32.mrb[0].mxu0
    %v2301 = vadd.f32 %v2230, %v2300
    %v2302 = vpop.f32.mrb[0].mxu0
    %v2303 = vadd.f32 %v2232, %v2302
    %2304 = vdwg.mxu0
    %2305 = vmatprep.subr.mxu0 %v2017
    %2306 = vmatpush1.msra.mxu0 %v2016
    %2307 = vmatprep.subr.mxu0 %v2019
    %2308 = vmatpush1.msra.mxu0 %v2018
    %2309 = vmatprep.subr.mxu0 %v2021
    %2310 = vmatpush1.msra.mxu0 %v2020
    %2311 = vmatprep.subr.mxu0 %v2023
    %2312 = vmatpush1.msra.mxu0 %v2022
    %2313 = vmatprep.subr.mxu0 %v2025
    %2314 = vmatpush1.msra.mxu0 %v2024
    %2315 = vmatprep.subr.mxu0 %v2027
    %2316 = vmatpush1.msra.mxu0 %v2026
    %2317 = vmatprep.subr.mxu0 %v2029
    %2318 = vmatpush1.msra.mxu0 %v2028
    %2319 = vmatprep.subr.mxu0 %v2031
    %2320 = vmatpush1.msra.mxu0 %v2030
    %2321 = vmatprep.subr.mxu0 %v2033
    %2322 = vmatpush1.msra.mxu0 %v2032
    %2323 = vmatprep.subr.mxu0 %v2035
    %2324 = vmatpush1.msra.mxu0 %v2034
    %2325 = vmatprep.subr.mxu0 %v2037
    %2326 = vmatpush1.msra.mxu0 %v2036
    %2327 = vmatprep.subr.mxu0 %v2039
    %2328 = vmatpush1.msra.mxu0 %v2038
    %2329 = vmatprep.subr.mxu0 %v2041
    %2330 = vmatpush1.msra.mxu0 %v2040
    %2331 = vmatprep.subr.mxu0 %v2043
    %2332 = vmatpush1.msra.mxu0 %v2042
    %2333 = vmatprep.subr.mxu0 %v2045
    %2334 = vmatpush1.msra.mxu0 %v2044
    %2335 = vmatprep.subr.mxu0 %v2047
    %2336 = vmatpush1.msra.mxu0 %v2046
    %2337 = vmatprep.subr.mxu0 %v2049
    %2338 = vmatpush1.msra.mxu0 %v2048
    %2339 = vmatprep.subr.mxu0 %v2051
    %2340 = vmatpush1.msra.mxu0 %v2050
    %2341 = vmatprep.subr.mxu0 %v2053
    %2342 = vmatpush1.msra.mxu0 %v2052
    %2343 = vmatprep.subr.mxu0 %v2055
    %2344 = vmatpush1.msra.mxu0 %v2054
    %2345 = vmatprep.subr.mxu0 %v2057
    %2346 = vmatpush1.msra.mxu0 %v2056
    %2347 = vmatprep.subr.mxu0 %v2059
    %2348 = vmatpush1.msra.mxu0 %v2058
    %2349 = vmatprep.subr.mxu0 %v2061
    %2350 = vmatpush1.msra.mxu0 %v2060
    %2351 = vmatprep.subr.mxu0 %v2063
    %2352 = vmatpush1.msra.mxu0 %v2062
    %2353 = vmatprep.subr.mxu0 %v2065
    %2354 = vmatpush1.msra.mxu0 %v2064
    %2355 = vmatprep.subr.mxu0 %v2067
    %2356 = vmatpush1.msra.mxu0 %v2066
    %2357 = vmatprep.subr.mxu0 %v2069
    %2358 = vmatpush1.msra.mxu0 %v2068
    %2359 = vmatprep.subr.mxu0 %v2071
    %2360 = vmatpush1.msra.mxu0 %v2070
    %2361 = vmatprep.subr.mxu0 %v2073
    %2362 = vmatpush1.msra.mxu0 %v2072
    %2363 = vmatprep.subr.mxu0 %v2075
    %2364 = vmatpush1.msra.mxu0 %v2074
    %2365 = vmatprep.subr.mxu0 %v2077
    %2366 = vmatpush1.msra.mxu0 %v2076
    %2367 = vmatprep.subr.mxu0 %v2079
    %2368 = vmatpush1.msra.mxu0 %v2078
    %2369 = vmatprep.mubr.f32.mxu0 %v1823
    %2370 = vmatmul.mubr.f32.gmra.mrb[0].mxu0 %v1822
    %v2371 = vpop.f32.mrb[0].mxu0
    %v2372 = vadd.f32 %v2301, %v2371
    %v2373 = vpop.f32.mrb[0].mxu0
    %v2374 = vadd.f32 %v2303, %v2373
    %2375 = vdwg.mxu0
    %v2376 = vld [vmem:[#allocation2] sm:$0xff]
    %v2377 = vld [vmem:[#allocation13] sm:$0xff]
    %v2378 = vld [vmem:[#allocation13 + $0x8] sm:$0xff]
    %v2379 = vld [vmem:[#allocation13 + $0x10] sm:$0xff]
    %v2380 = vld [vmem:[#allocation13 + $0x18] sm:$0xff]
    %v2381 = vld [vmem:[#allocation13 + $0x20] sm:$0xff]
    %v2382 = vld [vmem:[#allocation13 + $0x28] sm:$0xff]
    %v2383 = vld [vmem:[#allocation13 + $0x30] sm:$0xff]
    %v2384 = vld [vmem:[#allocation13 + $0x38] sm:$0xff]
    %v2385 = vld [vmem:[#allocation13 + $0x40] sm:$0xff]
    %v2386 = vld [vmem:[#allocation13 + $0x48] sm:$0xff]
    %v2387 = vld [vmem:[#allocation13 + $0x50] sm:$0xff]
    %v2388 = vld [vmem:[#allocation13 + $0x58] sm:$0xff]
    %v2389 = vld [vmem:[#allocation13 + $0x60] sm:$0xff]
    %v2390 = vld [vmem:[#allocation13 + $0x68] sm:$0xff]
    %v2391 = vld [vmem:[#allocation13 + $0x70] sm:$0xff]
    %v2392 = vld [vmem:[#allocation13 + $0x78] sm:$0xff]
    %v2393 = vld [vmem:[#allocation13 + $0x80] sm:$0xff]
    %v2394 = vld [vmem:[#allocation13 + $0x88] sm:$0xff]
    %v2395 = vld [vmem:[#allocation13 + $0x90] sm:$0xff]
    %v2396 = vld [vmem:[#allocation13 + $0x98] sm:$0xff]
    %v2397 = vld [vmem:[#allocation13 + $0xa0] sm:$0xff]
    %v2398 = vld [vmem:[#allocation13 + $0xa8] sm:$0xff]
    %v2399 = vld [vmem:[#allocation13 + $0xb0] sm:$0xff]
    %v2400 = vld [vmem:[#allocation13 + $0xb8] sm:$0xff]
    %v2401 = vld [vmem:[#allocation13 + $0xc0] sm:$0xff]
    %v2402 = vld [vmem:[#allocation13 + $0xc8] sm:$0xff]
    %v2403 = vld [vmem:[#allocation13 + $0xd0] sm:$0xff]
    %v2404 = vld [vmem:[#allocation13 + $0xd8] sm:$0xff]
    %v2405 = vld [vmem:[#allocation13 + $0xe0] sm:$0xff]
    %v2406 = vld [vmem:[#allocation13 + $0xe8] sm:$0xff]
    %v2407 = vld [vmem:[#allocation13 + $0xf0] sm:$0xff]
    %v2408 = vld [vmem:[#allocation13 + $0xf8] sm:$0xff]
    %v2409 = vld [vmem:[#allocation13 + $0x100] sm:$0xff]
    %v2410 = vld [vmem:[#allocation13 + $0x108] sm:$0xff]
    %v2411 = vld [vmem:[#allocation13 + $0x110] sm:$0xff]
    %v2412 = vld [vmem:[#allocation13 + $0x118] sm:$0xff]
    %v2413 = vld [vmem:[#allocation13 + $0x120] sm:$0xff]
    %v2414 = vld [vmem:[#allocation13 + $0x128] sm:$0xff]
    %v2415 = vld [vmem:[#allocation13 + $0x130] sm:$0xff]
    %v2416 = vld [vmem:[#allocation13 + $0x138] sm:$0xff]
    %v2417 = vld [vmem:[#allocation13 + $0x140] sm:$0xff]
    %v2418 = vld [vmem:[#allocation13 + $0x148] sm:$0xff]
    %v2419 = vld [vmem:[#allocation13 + $0x150] sm:$0xff]
    %v2420 = vld [vmem:[#allocation13 + $0x158] sm:$0xff]
    %v2421 = vld [vmem:[#allocation13 + $0x160] sm:$0xff]
    %v2422 = vld [vmem:[#allocation13 + $0x168] sm:$0xff]
    %v2423 = vld [vmem:[#allocation13 + $0x170] sm:$0xff]
    %v2424 = vld [vmem:[#allocation13 + $0x178] sm:$0xff]
    %v2425 = vld [vmem:[#allocation13 + $0x180] sm:$0xff]
    %v2426 = vld [vmem:[#allocation13 + $0x188] sm:$0xff]
    %v2427 = vld [vmem:[#allocation13 + $0x190] sm:$0xff]
    %v2428 = vld [vmem:[#allocation13 + $0x198] sm:$0xff]
    %v2429 = vld [vmem:[#allocation13 + $0x1a0] sm:$0xff]
    %v2430 = vld [vmem:[#allocation13 + $0x1a8] sm:$0xff]
    %v2431 = vld [vmem:[#allocation13 + $0x1b0] sm:$0xff]
    %v2432 = vld [vmem:[#allocation13 + $0x1b8] sm:$0xff]
    %v2433 = vld [vmem:[#allocation13 + $0x1c0] sm:$0xff]
    %v2434 = vld [vmem:[#allocation13 + $0x1c8] sm:$0xff]
    %v2435 = vld [vmem:[#allocation13 + $0x1d0] sm:$0xff]
    %v2436 = vld [vmem:[#allocation13 + $0x1d8] sm:$0xff]
    %v2437 = vld [vmem:[#allocation13 + $0x1e0] sm:$0xff]
    %v2438 = vld [vmem:[#allocation13 + $0x1e8] sm:$0xff]
    %v2439 = vld [vmem:[#allocation13 + $0x1f0] sm:$0xff]
    %v2440 = vld [vmem:[#allocation13 + $0x1f8] sm:$0xff]
    %v2441 = vld [vmem:[#allocation13 + $0x200] sm:$0xff]
    %v2442 = vld [vmem:[#allocation13 + $0x208] sm:$0xff]
    %v2443 = vld [vmem:[#allocation13 + $0x210] sm:$0xff]
    %v2444 = vld [vmem:[#allocation13 + $0x218] sm:$0xff]
    %v2445 = vld [vmem:[#allocation15] sm:$0x3]
    %v2447 = vlaneseq
    %v2448 = vshrl.u32 %v2447, 7
    %v2449 = vsub.s32 0, %v2448
    %v2450 = vrot.slane %v2445, %v2449
    %v2451 = vlaneseq
    %v2452 = vshrl.u32 %v2451, 7
    %v2453 = vsub.s32 1, %v2452
    %v2454 = vrot.slane %v2445, %v2453
    %v2458 = vsel %vm760, %v2376, 0
    %2460 = vmatprep.subr.mxu0 %v2378
    %2461 = vmatpush1.msra.mxu0 %v2377
    %2462 = vmatprep.subr.mxu0 %v2380
    %2463 = vmatpush1.msra.mxu0 %v2379
    %2464 = vmatprep.subr.mxu0 %v2382
    %2465 = vmatpush1.msra.mxu0 %v2381
    %2466 = vmatprep.subr.mxu0 %v2384
    %2467 = vmatpush1.msra.mxu0 %v2383
    %2468 = vmatprep.subr.mxu0 %v2386
    %2469 = vmatpush1.msra.mxu0 %v2385
    %2470 = vmatprep.subr.mxu0 %v2388
    %2471 = vmatpush1.msra.mxu0 %v2387
    %2472 = vmatprep.subr.mxu0 %v2390
    %2473 = vmatpush1.msra.mxu0 %v2389
    %2474 = vmatprep.subr.mxu0 %v2392
    %2475 = vmatpush1.msra.mxu0 %v2391
    %2476 = vmatprep.subr.mxu0 %v2394
    %2477 = vmatpush1.msra.mxu0 %v2393
    %2478 = vmatprep.subr.mxu0 %v2396
    %2479 = vmatpush1.msra.mxu0 %v2395
    %2480 = vmatprep.subr.mxu0 %v2398
    %2481 = vmatpush1.msra.mxu0 %v2397
    %2482 = vmatprep.subr.mxu0 %v2400
    %2483 = vmatpush1.msra.mxu0 %v2399
    %2484 = vmatprep.subr.mxu0 %v2402
    %2485 = vmatpush1.msra.mxu0 %v2401
    %2486 = vmatprep.subr.mxu0 %v2404
    %2487 = vmatpush1.msra.mxu0 %v2403
    %2488 = vmatprep.subr.mxu0 %v2406
    %2489 = vmatpush1.msra.mxu0 %v2405
    %2490 = vmatprep.subr.mxu0 %v2408
    %2491 = vmatpush1.msra.mxu0 %v2407
    %2492 = vmatprep.subr.mxu0 %v2410
    %2493 = vmatpush1.msra.mxu0 %v2409
    %2494 = vmatprep.subr.mxu0 %v2412
    %2495 = vmatpush1.msra.mxu0 %v2411
    %2496 = vmatprep.subr.mxu0 %v2414
    %2497 = vmatpush1.msra.mxu0 %v2413
    %2498 = vmatprep.subr.mxu0 %v2416
    %2499 = vmatpush1.msra.mxu0 %v2415
    %2500 = vmatprep.subr.mxu0 %v2418
    %2501 = vmatpush1.msra.mxu0 %v2417
    %2502 = vmatprep.subr.mxu0 %v2420
    %2503 = vmatpush1.msra.mxu0 %v2419
    %2504 = vmatprep.subr.mxu0 %v2422
    %2505 = vmatpush1.msra.mxu0 %v2421
    %2506 = vmatprep.subr.mxu0 %v2424
    %2507 = vmatpush1.msra.mxu0 %v2423
    %2508 = vmatprep.subr.mxu0 %v2426
    %2509 = vmatpush1.msra.mxu0 %v2425
    %2510 = vmatprep.subr.mxu0 %v2428
    %2511 = vmatpush1.msra.mxu0 %v2427
    %2512 = vmatprep.subr.mxu0 %v2430
    %2513 = vmatpush1.msra.mxu0 %v2429
    %2514 = vmatprep.subr.mxu0 %v2432
    %2515 = vmatpush1.msra.mxu0 %v2431
    %2516 = vmatprep.subr.mxu0 %v2434
    %2517 = vmatpush1.msra.mxu0 %v2433
    %2518 = vmatprep.subr.mxu0 %v2436
    %2519 = vmatpush1.msra.mxu0 %v2435
    %2520 = vmatprep.subr.mxu0 %v2438
    %2521 = vmatpush1.msra.mxu0 %v2437
    %2522 = vmatprep.subr.mxu0 %v2440
    %2523 = vmatpush1.msra.mxu0 %v2439
    %2524 = vmatprep.mubr.f32.mxu0 %v2374
    %2525 = vmatmul.mubr.f32.gmra.mrb[0].mxu0 %v2372
    %v2526 = vpop.f32.mrb[0].mxu0
    %v2527 = vadd.f32 %v2450, %v2526
    %v2528 = vpop.f32.mrb[0].mxu0
    %v2529 = vadd.f32 %v2454, %v2528
    %2530 = vdwg.mxu0
    %2531 = vmatprep.subr.mxu0 %v2442
    %2532 = vmatpush1.msra.mxu0 %v2441
    %2533 = vmatprep.subr.mxu0 %v2444
    %2534 = vmatpush1.msra.mxu0 %v2443
    %2535 = vmatprep.subr.mxu0 0.0
    %2536 = vmatpush1.msra.mxu0 0.0
    %2537 = vmatprep.subr.mxu0 0.0
    %2538 = vmatpush1.msra.mxu0 0.0
    %2539 = vmatprep.subr.mxu0 0.0
    %2540 = vmatpush1.msra.mxu0 0.0
    %2541 = vmatprep.subr.mxu0 0.0
    %2542 = vmatpush1.msra.mxu0 0.0
    %2543 = vmatprep.subr.mxu0 0.0
    %2544 = vmatpush1.msra.mxu0 0.0
    %2545 = vmatprep.subr.mxu0 0.0
    %2546 = vmatpush1.msra.mxu0 0.0
    %2547 = vmatprep.subr.mxu0 0.0
    %2548 = vmatpush1.msra.mxu0 0.0
    %2549 = vmatprep.subr.mxu0 0.0
    %2550 = vmatpush1.msra.mxu0 0.0
    %2551 = vmatprep.subr.mxu0 0.0
    %2552 = vmatpush1.msra.mxu0 0.0
    %2553 = vmatprep.subr.mxu0 0.0
    %2554 = vmatpush1.msra.mxu0 0.0
    %2555 = vmatprep.subr.mxu0 0.0
    %2556 = vmatpush1.msra.mxu0 0.0
    %2557 = vmatprep.subr.mxu0 0.0
    %2558 = vmatpush1.msra.mxu0 0.0
    %2559 = vmatprep.subr.mxu0 0.0
    %2560 = vmatpush1.msra.mxu0 0.0
    %2561 = vmatprep.subr.mxu0 0.0
    %2562 = vmatpush1.msra.mxu0 0.0
    %2563 = vmatprep.subr.mxu0 0.0
    %2564 = vmatpush1.msra.mxu0 0.0
    %2565 = vmatprep.subr.mxu0 0.0
    %2566 = vmatpush1.msra.mxu0 0.0
    %2567 = vmatprep.subr.mxu0 0.0
    %2568 = vmatpush1.msra.mxu0 0.0
    %2569 = vmatprep.subr.mxu0 0.0
    %2570 = vmatpush1.msra.mxu0 0.0
    %2571 = vmatprep.subr.mxu0 0.0
    %2572 = vmatpush1.msra.mxu0 0.0
    %2573 = vmatprep.subr.mxu0 0.0
    %2574 = vmatpush1.msra.mxu0 0.0
    %2575 = vmatprep.subr.mxu0 0.0
    %2576 = vmatpush1.msra.mxu0 0.0
    %2577 = vmatprep.subr.mxu0 0.0
    %2578 = vmatpush1.msra.mxu0 0.0
    %2579 = vmatprep.subr.mxu0 0.0
    %2580 = vmatpush1.msra.mxu0 0.0
    %2581 = vmatprep.subr.mxu0 0.0
    %2582 = vmatpush1.msra.mxu0 0.0
    %2583 = vmatprep.subr.mxu0 0.0
    %2584 = vmatpush1.msra.mxu0 0.0
    %2585 = vmatprep.subr.mxu0 0.0
    %2586 = vmatpush1.msra.mxu0 0.0
    %2587 = vmatprep.subr.mxu0 0.0
    %2588 = vmatpush1.msra.mxu0 0.0
    %2589 = vmatprep.subr.mxu0 0.0
    %2590 = vmatpush1.msra.mxu0 0.0
    %2591 = vmatprep.subr.mxu0 0.0
    %2592 = vmatpush1.msra.mxu0 0.0
    %2593 = vmatprep.subr.mxu0 0.0
    %2594 = vmatpush1.msra.mxu0 0.0
    %2595 = vmatprep.mubr.f32.mxu0 0.0
    %2596 = vmatmul.mubr.f32.gmra.mrb[0].mxu0 %v2458
    %v2597 = vpop.f32.mrb[0].mxu0
    %v2598 = vadd.f32 %v2527, %v2597
    %v2599 = vpop.f32.mrb[0].mxu0
    %v2600 = vadd.f32 %v2529, %v2599
    %2601 = vdwg.mxu0
    %vm2602 = vcmp.ge.f32.partialorder %v2598, 0.0
    %vm2603 = vcmp.ge.f32.partialorder %v2600, 0.0
    %v2604 = vmul.f32 %v2598, 0.2
    %v2605 = vmul.f32 %v2600, 0.2
    %v2606 = vsel %vm2602, %v2598, %v2604
    %v2607 = vsel %vm2603, %v2600, %v2605
    %v2608 = vld [vmem:[#allocation16] sm:$0xff]
    %v2609 = vld [vmem:[#allocation16 + $0x8] sm:$0xff]
    %v2610 = vld [vmem:[#allocation16 + $0x10] sm:$0xff]
    %v2611 = vld [vmem:[#allocation16 + $0x18] sm:$0xff]
    %v2612 = vld [vmem:[#allocation16 + $0x20] sm:$0xff]
    %v2613 = vld [vmem:[#allocation16 + $0x28] sm:$0xff]
    %v2614 = vld [vmem:[#allocation16 + $0x30] sm:$0xff]
    %v2615 = vld [vmem:[#allocation16 + $0x38] sm:$0xff]
    %v2616 = vld [vmem:[#allocation16 + $0x40] sm:$0xff]
    %v2617 = vld [vmem:[#allocation16 + $0x48] sm:$0xff]
    %v2618 = vld [vmem:[#allocation16 + $0x50] sm:$0xff]
    %v2619 = vld [vmem:[#allocation16 + $0x58] sm:$0xff]
    %v2620 = vld [vmem:[#allocation16 + $0x60] sm:$0xff]
    %v2621 = vld [vmem:[#allocation16 + $0x68] sm:$0xff]
    %v2622 = vld [vmem:[#allocation16 + $0x70] sm:$0xff]
    %v2623 = vld [vmem:[#allocation16 + $0x78] sm:$0xff]
    %v2624 = vld [vmem:[#allocation16 + $0x80] sm:$0xff]
    %v2625 = vld [vmem:[#allocation16 + $0x88] sm:$0xff]
    %v2626 = vld [vmem:[#allocation16 + $0x90] sm:$0xff]
    %v2627 = vld [vmem:[#allocation16 + $0x98] sm:$0xff]
    %v2628 = vld [vmem:[#allocation16 + $0xa0] sm:$0xff]
    %v2629 = vld [vmem:[#allocation16 + $0xa8] sm:$0xff]
    %v2630 = vld [vmem:[#allocation16 + $0xb0] sm:$0xff]
    %v2631 = vld [vmem:[#allocation16 + $0xb8] sm:$0xff]
    %v2632 = vld [vmem:[#allocation16 + $0xc0] sm:$0xff]
    %v2633 = vld [vmem:[#allocation16 + $0xc8] sm:$0xff]
    %v2634 = vld [vmem:[#allocation16 + $0xd0] sm:$0xff]
    %v2635 = vld [vmem:[#allocation16 + $0xd8] sm:$0xff]
    %v2636 = vld [vmem:[#allocation16 + $0xe0] sm:$0xff]
    %v2637 = vld [vmem:[#allocation16 + $0xe8] sm:$0xff]
    %v2638 = vld [vmem:[#allocation16 + $0xf0] sm:$0xff]
    %v2639 = vld [vmem:[#allocation16 + $0xf8] sm:$0xff]
    %v2640 = vld [vmem:[#allocation18] sm:$0x1]
    %v2642 = vlaneseq
    %v2643 = vshrl.u32 %v2642, 7
    %v2644 = vsub.s32 0, %v2643
    %v2645 = vrot.slane %v2640, %v2644
    %2647 = vmatprep.subr.mxu0 0.0
    %2648 = vmatpush1.msra.mxu0 %v2608
    %2649 = vmatprep.subr.mxu0 0.0
    %2650 = vmatpush1.msra.mxu0 %v2609
    %2651 = vmatprep.subr.mxu0 0.0
    %2652 = vmatpush1.msra.mxu0 %v2610
    %2653 = vmatprep.subr.mxu0 0.0
    %2654 = vmatpush1.msra.mxu0 %v2611
    %2655 = vmatprep.subr.mxu0 0.0
    %2656 = vmatpush1.msra.mxu0 %v2612
    %2657 = vmatprep.subr.mxu0 0.0
    %2658 = vmatpush1.msra.mxu0 %v2613
    %2659 = vmatprep.subr.mxu0 0.0
    %2660 = vmatpush1.msra.mxu0 %v2614
    %2661 = vmatprep.subr.mxu0 0.0
    %2662 = vmatpush1.msra.mxu0 %v2615
    %2663 = vmatprep.subr.mxu0 0.0
    %2664 = vmatpush1.msra.mxu0 %v2616
    %2665 = vmatprep.subr.mxu0 0.0
    %2666 = vmatpush1.msra.mxu0 %v2617
    %2667 = vmatprep.subr.mxu0 0.0
    %2668 = vmatpush1.msra.mxu0 %v2618
    %2669 = vmatprep.subr.mxu0 0.0
    %2670 = vmatpush1.msra.mxu0 %v2619
    %2671 = vmatprep.subr.mxu0 0.0
    %2672 = vmatpush1.msra.mxu0 %v2620
    %2673 = vmatprep.subr.mxu0 0.0
    %2674 = vmatpush1.msra.mxu0 %v2621
    %2675 = vmatprep.subr.mxu0 0.0
    %2676 = vmatpush1.msra.mxu0 %v2622
    %2677 = vmatprep.subr.mxu0 0.0
    %2678 = vmatpush1.msra.mxu0 %v2623
    %2679 = vmatprep.subr.mxu0 0.0
    %2680 = vmatpush1.msra.mxu0 %v2624
    %2681 = vmatprep.subr.mxu0 0.0
    %2682 = vmatpush1.msra.mxu0 %v2625
    %2683 = vmatprep.subr.mxu0 0.0
    %2684 = vmatpush1.msra.mxu0 %v2626
    %2685 = vmatprep.subr.mxu0 0.0
    %2686 = vmatpush1.msra.mxu0 %v2627
    %2687 = vmatprep.subr.mxu0 0.0
    %2688 = vmatpush1.msra.mxu0 %v2628
    %2689 = vmatprep.subr.mxu0 0.0
    %2690 = vmatpush1.msra.mxu0 %v2629
    %2691 = vmatprep.subr.mxu0 0.0
    %2692 = vmatpush1.msra.mxu0 %v2630
    %2693 = vmatprep.subr.mxu0 0.0
    %2694 = vmatpush1.msra.mxu0 %v2631
    %2695 = vmatprep.subr.mxu0 0.0
    %2696 = vmatpush1.msra.mxu0 %v2632
    %2697 = vmatprep.subr.mxu0 0.0
    %2698 = vmatpush1.msra.mxu0 %v2633
    %2699 = vmatprep.subr.mxu0 0.0
    %2700 = vmatpush1.msra.mxu0 %v2634
    %2701 = vmatprep.subr.mxu0 0.0
    %2702 = vmatpush1.msra.mxu0 %v2635
    %2703 = vmatprep.subr.mxu0 0.0
    %2704 = vmatpush1.msra.mxu0 %v2636
    %2705 = vmatprep.subr.mxu0 0.0
    %2706 = vmatpush1.msra.mxu0 %v2637
    %2707 = vmatprep.subr.mxu0 0.0
    %2708 = vmatpush1.msra.mxu0 %v2638
    %2709 = vmatprep.subr.mxu0 0.0
    %2710 = vmatpush1.msra.mxu0 %v2639
    %2711 = vmatprep.mubr.f32.mxu0 %v2607
    %2712 = vmatmul.mubr.f32.gmra.mrb[0].mxu0 %v2606
    %v2713 = vpop.f32.mrb[0].mxu0
    %v2714 = vadd.f32 %v2645, %v2713
    %v2715 = vpop.f32.mrb[0].mxu0
    %2716 = vdwg.mxu0
    %2717 = vadd.xlane.f32.xlu0 %v2714
    %v2718 = vpop.xlane.xlu0 %2717
    %v2719 = vrcp.pop 128.0
    %v2720 = vmul.f32 %v2718, %v2719
    %v2721 = vsub.f32 %v2714, %v2720
    %v2722 = vmul.f32 %v2721, %v2721
    %2723 = vadd.xlane.f32.xlu0 %v2722
    %v2724 = vpop.xlane.xlu0 %2723
    %v2725 = vmul.f32 %v2724, %v2719
    %v2726 = vadd.f32 %v2725, 1e-05
    %v2727 = vrsqrt.pop %v2726
    %v2728 = vmul.f32 %v2721, %v2727
    %v2729 = vld [vmem:[#allocation19] sm:$0x1]
    %v2731 = vlaneseq
    %v2732 = vshrl.u32 %v2731, 7
    %v2733 = vsub.s32 0, %v2732
    %v2734 = vrot.slane %v2729, %v2733
    %v2736 = vmul.f32 %v2728, %v2734
    %v2737 = vld [vmem:[#allocation21] sm:$0x1]
    %v2739 = vlaneseq
    %v2740 = vshrl.u32 %v2739, 7
    %v2741 = vsub.s32 0, %v2740
    %v2742 = vrot.slane %v2737, %v2741
    %v2744 = vadd.f32 %v2736, %v2742
    %vm2745 = vcmp.ge.f32.partialorder %v2744, 0.0
    %v2746 = vmul.f32 %v2744, 0.2
    %v2747 = vsel %vm2745, %v2744, %v2746
    %v2748 = vld [vmem:[#allocation22] sm:$0xff]
    %v2749 = vld [vmem:[#allocation22 + $0x8] sm:$0xff]
    %v2750 = vld [vmem:[#allocation22 + $0x10] sm:$0xff]
    %v2751 = vld [vmem:[#allocation22 + $0x18] sm:$0xff]
    %v2752 = vld [vmem:[#allocation22 + $0x20] sm:$0xff]
    %v2753 = vld [vmem:[#allocation22 + $0x28] sm:$0xff]
    %v2754 = vld [vmem:[#allocation22 + $0x30] sm:$0xff]
    %v2755 = vld [vmem:[#allocation22 + $0x38] sm:$0xff]
    %v2756 = vld [vmem:[#allocation22 + $0x40] sm:$0xff]
    %v2757 = vld [vmem:[#allocation22 + $0x48] sm:$0xff]
    %v2758 = vld [vmem:[#allocation22 + $0x50] sm:$0xff]
    %v2759 = vld [vmem:[#allocation22 + $0x58] sm:$0xff]
    %v2760 = vld [vmem:[#allocation22 + $0x60] sm:$0xff]
    %v2761 = vld [vmem:[#allocation22 + $0x68] sm:$0xff]
    %v2762 = vld [vmem:[#allocation22 + $0x70] sm:$0xff]
    %v2763 = vld [vmem:[#allocation22 + $0x78] sm:$0xff]
    %v2764 = vld [vmem:[#allocation24] sm:$0x1]
    %v2766 = vlaneseq
    %v2767 = vshrl.u32 %v2766, 7
    %v2768 = vsub.s32 0, %v2767
    %v2769 = vrot.slane %v2764, %v2768
    %2771 = vmatprep.subr.mxu0 0.0
    %2772 = vmatpush1.msra.mxu0 %v2748
    %2773 = vmatprep.subr.mxu0 0.0
    %2774 = vmatpush1.msra.mxu0 %v2749
    %2775 = vmatprep.subr.mxu0 0.0
    %2776 = vmatpush1.msra.mxu0 %v2750
    %2777 = vmatprep.subr.mxu0 0.0
    %2778 = vmatpush1.msra.mxu0 %v2751
    %2779 = vmatprep.subr.mxu0 0.0
    %2780 = vmatpush1.msra.mxu0 %v2752
    %2781 = vmatprep.subr.mxu0 0.0
    %2782 = vmatpush1.msra.mxu0 %v2753
    %2783 = vmatprep.subr.mxu0 0.0
    %2784 = vmatpush1.msra.mxu0 %v2754
    %2785 = vmatprep.subr.mxu0 0.0
    %2786 = vmatpush1.msra.mxu0 %v2755
    %2787 = vmatprep.subr.mxu0 0.0
    %2788 = vmatpush1.msra.mxu0 %v2756
    %2789 = vmatprep.subr.mxu0 0.0
    %2790 = vmatpush1.msra.mxu0 %v2757
    %2791 = vmatprep.subr.mxu0 0.0
    %2792 = vmatpush1.msra.mxu0 %v2758
    %2793 = vmatprep.subr.mxu0 0.0
    %2794 = vmatpush1.msra.mxu0 %v2759
    %2795 = vmatprep.subr.mxu0 0.0
    %2796 = vmatpush1.msra.mxu0 %v2760
    %2797 = vmatprep.subr.mxu0 0.0
    %2798 = vmatpush1.msra.mxu0 %v2761
    %2799 = vmatprep.subr.mxu0 0.0
    %2800 = vmatpush1.msra.mxu0 %v2762
    %2801 = vmatprep.subr.mxu0 0.0
    %2802 = vmatpush1.msra.mxu0 %v2763
    %2803 = vmatprep.subr.mxu0 0.0
    %2804 = vmatpush1.msra.mxu0 0.0
    %2805 = vmatprep.subr.mxu0 0.0
    %2806 = vmatpush1.msra.mxu0 0.0
    %2807 = vmatprep.subr.mxu0 0.0
    %2808 = vmatpush1.msra.mxu0 0.0
    %2809 = vmatprep.subr.mxu0 0.0
    %2810 = vmatpush1.msra.mxu0 0.0
    %2811 = vmatprep.subr.mxu0 0.0
    %2812 = vmatpush1.msra.mxu0 0.0
    %2813 = vmatprep.subr.mxu0 0.0
    %2814 = vmatpush1.msra.mxu0 0.0
    %2815 = vmatprep.subr.mxu0 0.0
    %2816 = vmatpush1.msra.mxu0 0.0
    %2817 = vmatprep.subr.mxu0 0.0
    %2818 = vmatpush1.msra.mxu0 0.0
    %2819 = vmatprep.subr.mxu0 0.0
    %2820 = vmatpush1.msra.mxu0 0.0
    %2821 = vmatprep.subr.mxu0 0.0
    %2822 = vmatpush1.msra.mxu0 0.0
    %2823 = vmatprep.subr.mxu0 0.0
    %2824 = vmatpush1.msra.mxu0 0.0
    %2825 = vmatprep.subr.mxu0 0.0
    %2826 = vmatpush1.msra.mxu0 0.0
    %2827 = vmatprep.subr.mxu0 0.0
    %2828 = vmatpush1.msra.mxu0 0.0
    %2829 = vmatprep.subr.mxu0 0.0
    %2830 = vmatpush1.msra.mxu0 0.0
    %2831 = vmatprep.subr.mxu0 0.0
    %2832 = vmatpush1.msra.mxu0 0.0
    %2833 = vmatprep.subr.mxu0 0.0
    %2834 = vmatpush1.msra.mxu0 0.0
    %2835 = vmatprep.mubr.f32.mxu0 0.0
    %2836 = vmatmul.mubr.f32.gmra.mrb[0].mxu0 %v2747
    %v2837 = vpop.f32.mrb[0].mxu0
    %v2838 = vadd.f32 %v2769, %v2837
    %v2839 = vpop.f32.mrb[0].mxu0
    %2840 = vdwg.mxu0
    %2841 = vst [vmem:[%s16] sm:$0xff] %v2838
    // Predicated region
    $region126: #{encoder_forward.1} parent=1 // pred_check
      _
    $region127: #{encoder_forward.1} parent=1 // pred_check_branch
      %2843 = sbr.rel (0) target = $region129
    $region128: #{encoder_forward.1} parent=1 // pred_region
      _
    $region129: #{encoder_forward.1} parent=1 // pred_fallthru
      _
    // Predicated region
    $region130: #{encoder_forward.1} parent=1 // pred_check
      _
    $region131: #{encoder_forward.1} parent=1 // pred_check_branch
      %2845 = sbr.rel (0) target = $region133
    $region132: #{encoder_forward.1} parent=1 // pred_region
      _
    $region133: #{encoder_forward.1} parent=1 // pred_fallthru
      _
    %2846 = vsyncpa [#allocation3], 1
    %2847 = vsyncpa [#allocation5], 1
    %2848 = vsyncpa [#allocation8], 1
    %2849 = vsyncpa [#allocation11], 1
    %2850 = vsyncpa [#allocation14], 1
    %2851 = vsyncpa [#allocation17], 1
    %2852 = vsyncpa [#allocation20], 1
    %2853 = vsyncpa [#allocation23], 1

</llo_original>
